<compile_context>
chip_gen: v5e
topology: v5e:2x2
jax: 0.10.0
libtpu: 0.0.40
codegen_flags: <defaults>
</compile_context>

<pallas_src>
import jax
import jax.numpy as jnp
from jax.experimental import pallas as pl
from jax.experimental.pallas import tpu as pltpu

# ----------------- small config, same structure as ViT-B/16 ------------------
B = 2                  # batch
C = 3                  # RGB input channels
IMG = 16               # image height/width
P = 4                  # patch size
NP = (IMG // P) ** 2   # 16 patches
N = NP + 1             # +1 cls token -> 17 tokens
D = 32                 # embed dim
HEADS = 4
DH = D // HEADS        # 8
MLP = 4 * D            # 128  (mlp_ratio = 4)
DEPTH = 2              # transformer blocks
NCLS = 10              # new head: nn.Linear(in_features, n_classes)
EPS = 1e-6             # timm ViT LayerNorm eps
CPP = C * P * P        # flattened patch length = 48
CPPP = 128             # lane-padded patch length
BN = B * N             # 34 token rows, batch stacked


def _pad8(n):
    return (n + 7) // 8 * 8


# ---- f32 constants-slab row layout (128 lanes wide) -------------------------
TMPL_R = 0                         # BN rows: token template (cols :D)
MASK_R = _pad8(BN)                 # BN rows: additive attention bias (cols :BN)
VEC_R = MASK_R + _pad8(BN)         # DEPTH blocks of 8 rows:
#   +0 ln1_g  +1 ln1_b  +2 qkv_b(:3D)  +3 proj_b  +4 ln2_g  +5 ln2_b
#   +6 fc1_b(:MLP)  +7 fc2_b
FIN_R = VEC_R + 8 * DEPTH          # +0 norm_g  +1 norm_b  +2 head_b(:128)
C_ROWS = FIN_R + 8

# ---- bf16 weight-slab row layout (128 lanes wide) ----------------------------
PW_R = 0                           # CPPP rows: patch_w (CPP used, cols :D)
LAYER_R = CPPP
LROWS = 3 * D + MLP                # qkv_w D | proj_w D | fc1_w D | fc2_w MLP
HEAD_R = LAYER_R + DEPTH * LROWS
W_ROWS = HEAD_R + D


# --------------------------- fused forward kernel ----------------------------
def _vit_kernel(patches_ref, wslab_ref, cslab_ref, out_ref):
    f32, bf16 = jnp.float32, jnp.bfloat16

    def ln(x, g, b):
        mu = jnp.mean(x, axis=-1, keepdims=True)
        xc = x - mu
        var = jnp.mean(xc * xc, axis=-1, keepdims=True)
        return xc * jax.lax.rsqrt(var + EPS) * g + b

    def gelu(y):  # exact erf GELU (nn.GELU default in timm ViT)
        return 0.5 * y * (1.0 + jax.lax.erf(y * 0.7071067811865476))

    # ---- patch embed + cls token + pos embed (batch stacked along rows) ----
    # patches rows b*N+NP are zero (cls slots); tmpl rows hold
    # patch_bias + pos_embed[1:] / cls_token + pos_embed[0], tiled over batch.
    pw = wslab_ref[PW_R:PW_R + CPPP, :]                              # (128,128) bf16
    tmpl = cslab_ref[TMPL_R:TMPL_R + BN, :][:, :D]                   # (BN, D) f32
    h = jnp.dot(patches_ref[...], pw, preferred_element_type=f32)[:, :D] + tmpl

    # block-diagonal (per-image) additive bias: 0 within an image, -1e30 across
    attn_bias = cslab_ref[MASK_R:MASK_R + BN, :][:, :BN]             # (BN, BN) f32

    # ---- transformer blocks (static unroll, everything VMEM/vreg-resident) --
    for l in range(DEPTH):
        base = LAYER_R + l * LROWS
        vec = cslab_ref[VEC_R + 8 * l:VEC_R + 8 * (l + 1), :]        # (8,128) f32
        ln1_g, ln1_b = vec[0:1, :D], vec[1:2, :D]
        qkv_b = vec[2:3, :]                                          # padded to 128
        proj_b = vec[3:4, :D]
        ln2_g, ln2_b = vec[4:5, :D], vec[5:6, :D]
        fc1_b = vec[6:7, :MLP]
        fc2_b = vec[7:8, :D]

        # --- attention branch: h += proj(MHSA(LN1(h))) -----------------------
        y = ln(h, ln1_g, ln1_b).astype(bf16)                         # (BN, D)
        qkv_w = wslab_ref[base:base + D, :]                          # (D,128), 3D cols used
        qkv = (jnp.dot(y, qkv_w, preferred_element_type=f32)
               + qkv_b).astype(bf16)                                 # (BN, 128); Q pre-scaled
        o_heads = []
        for hh in range(HEADS):
            q = qkv[:, hh * DH:(hh + 1) * DH]                        # (BN, DH)
            k = qkv[:, D + hh * DH:D + (hh + 1) * DH]
            v = qkv[:, 2 * D + hh * DH:2 * D + (hh + 1) * DH]
            s = jax.lax.dot_general(q, k, (((1,), (1,)), ((), ())),
                                    preferred_element_type=f32)      # (BN, BN)
            s = s + attn_bias                                        # keep images separate
            s = s - jnp.max(s, axis=-1, keepdims=True)
            p = jnp.exp(s)
            p = p * pl.reciprocal(jnp.sum(p, axis=-1, keepdims=True), approx=True)
            o_heads.append(jnp.dot(p.astype(bf16), v, preferred_element_type=f32))
        # merge heads along lanes, then ONE projection matmul (K = D)
        o_all = jnp.concatenate(o_heads, axis=-1).astype(bf16)       # (BN, D)
        proj_w = wslab_ref[base + D:base + 2 * D, :]                 # (D,128), D cols used
        h = h + jnp.dot(o_all, proj_w, preferred_element_type=f32)[:, :D] + proj_b

        # --- MLP branch: h += fc2(GELU(fc1(LN2(h)))) --------------------------
        y = ln(h, ln2_g, ln2_b).astype(bf16)
        fc1_w = wslab_ref[base + 2 * D:base + 3 * D, :]              # (D, MLP)
        m = gelu(jnp.dot(y, fc1_w, preferred_element_type=f32) + fc1_b).astype(bf16)
        fc2_w = wslab_ref[base + 3 * D:base + 3 * D + MLP, :]        # (MLP,128), D cols used
        h = h + jnp.dot(m, fc2_w, preferred_element_type=f32)[:, :D] + fc2_b

    # ---- final LN (row-wise, so cls-rows-only is exact), cls pooling, head ---
    fin = cslab_ref[FIN_R:FIN_R + 8, :]
    norm_g, norm_b, head_b = fin[0:1, :D], fin[1:2, :D], fin[2:3, :]
    cls_rows = jnp.concatenate(
        [h[bi * N + NP:bi * N + NP + 1, :] for bi in range(B)], axis=0)   # (B, D)
    cls_n = ln(cls_rows, norm_g, norm_b).astype(bf16)
    head_w = wslab_ref[HEAD_R:HEAD_R + D, :]                         # (D,128), NCLS cols used
    # lane-dense (B,128) store; cols >= NCLS are exactly zero (zero-padded w/b)
    out_ref[...] = jnp.dot(cls_n, head_w, preferred_element_type=f32) + head_b


# ------------------------------- parameters ----------------------------------
def init_params(key):
    keys = iter(jax.random.split(key, 64))

    def nrm(shape, std=0.02):
        return (std * jax.random.normal(next(keys), shape)).astype(jnp.float32)

    params = dict(
        patch_w=nrm((CPP, D)),                  # Conv2d(C, D, P, stride=P) flattened
        patch_b=jnp.zeros((D,), jnp.float32),
        cls_token=nrm((1, 1, D)),
        pos_embed=nrm((1, N, D)),
        norm_g=jnp.ones((D,), jnp.float32),
        norm_b=jnp.zeros((D,), jnp.float32),
        head_w=nrm((D, NCLS)),                  # self.model.head = nn.Linear(D, n_classes)
        head_b=jnp.zeros((NCLS,), jnp.float32),
        blocks=[],
    )
    for _ in range(DEPTH):
        params["blocks"].append(dict(
            ln1_g=jnp.ones((D,), jnp.float32), ln1_b=jnp.zeros((D,), jnp.float32),
            qkv_w=nrm((D, 3 * D)), qkv_b=jnp.zeros((3 * D,), jnp.float32),
            proj_w=nrm((D, D)), proj_b=jnp.zeros((D,), jnp.float32),
            ln2_g=jnp.ones((D,), jnp.float32), ln2_b=jnp.zeros((D,), jnp.float32),
            fc1_w=nrm((D, MLP)), fc1_b=jnp.zeros((MLP,), jnp.float32),
            fc2_w=nrm((MLP, D)), fc2_b=jnp.zeros((D,), jnp.float32),
        ))
    return params


def prepare_params(params):
    """One-time transform: fold attn scale into Q, pack everything into one
    bf16 weight slab + one f32 constants slab (lane-padded to 128)."""
    scale = float(DH) ** -0.5
    stack = lambda k: jnp.stack([blk[k] for blk in params["blocks"]], axis=0)

    qkv_w = stack("qkv_w")                                   # (DEPTH, D, 3D)
    qkv_b = stack("qkv_b")                                   # (DEPTH, 3D)
    qkv_w = qkv_w.at[:, :, :D].multiply(scale)               # same math as (q*scale)@k^T
    qkv_b = qkv_b.at[:, :D].multiply(scale)

    # ---- bf16 weight slab ----------------------------------------------------
    w = jnp.zeros((W_ROWS, 128), jnp.float32)
    w = w.at[PW_R:PW_R + CPP, :D].set(params["patch_w"])     # contraction zero-padded 48->128
    for l in range(DEPTH):
        base = LAYER_R + l * LROWS
        blk = params["blocks"][l]
        w = w.at[base:base + D, :3 * D].set(qkv_w[l])
        w = w.at[base + D:base + 2 * D, :D].set(blk["proj_w"])
        w = w.at[base + 2 * D:base + 3 * D, :MLP].set(blk["fc1_w"])
        w = w.at[base + 3 * D:base + 3 * D + MLP, :D].set(blk["fc2_w"])
    w = w.at[HEAD_R:HEAD_R + D, :NCLS].set(params["head_w"])
    wslab = w.astype(jnp.bfloat16)

    # ---- f32 constants slab ---------------------------------------------------
    c = jnp.zeros((C_ROWS, 128), jnp.float32)
    pos = params["pos_embed"][0]                             # (N, D)
    tmpl = jnp.concatenate(
        [params["patch_b"][None, :] + pos[1:],               # patch-token rows
         params["cls_token"][0, 0][None, :] + pos[:1]],      # cls row (placed last)
        axis=0)                                              # (N, D)
    c = c.at[TMPL_R:TMPL_R + BN, :D].set(jnp.tile(tmpl, (B, 1)))
    img = jnp.arange(BN) // N
    bias = jnp.where(img[:, None] == img[None, :], 0.0, -1e30)   # block-diag over batch
    c = c.at[MASK_R:MASK_R + BN, :BN].set(bias)
    for l in range(DEPTH):
        blk = params["blocks"][l]
        r = VEC_R + 8 * l
        c = c.at[r + 0, :D].set(blk["ln1_g"])
        c = c.at[r + 1, :D].set(blk["ln1_b"])
        c = c.at[r + 2, :3 * D].set(qkv_b[l])
        c = c.at[r + 3, :D].set(blk["proj_b"])
        c = c.at[r + 4, :D].set(blk["ln2_g"])
        c = c.at[r + 5, :D].set(blk["ln2_b"])
        c = c.at[r + 6, :MLP].set(blk["fc1_b"])
        c = c.at[r + 7, :D].set(blk["fc2_b"])
    c = c.at[FIN_R + 0, :D].set(params["norm_g"])
    c = c.at[FIN_R + 1, :D].set(params["norm_b"])
    c = c.at[FIN_R + 2, :NCLS].set(params["head_b"])
    return dict(wslab=wslab, cslab=c)


# -------------------------------- forward ------------------------------------
def vit_forward(x, pp):
    # x: (B, C, IMG, IMG) NCHW, like PyTorch.
    b = x.shape[0]
    hp = wp = IMG // P
    # patch_embed Conv2d(kernel=P, stride=P) == unfold (plain-JAX bookkeeping);
    # one zero row per image is appended as the cls-token slot, contraction dim
    # zero-padded to 128 lanes, then the batch is stacked along rows.
    patches = x.reshape(b, C, hp, P, wp, P).transpose(0, 2, 4, 1, 3, 5)
    patches = patches.reshape(b, NP, CPP)
    patches = jnp.concatenate([patches, jnp.zeros((b, 1, CPP), patches.dtype)], axis=1)
    patches = jnp.pad(patches, ((0, 0), (0, 0), (0, CPPP - CPP)))
    patches = patches.reshape(b * N, CPPP).astype(jnp.bfloat16)      # (BN, 128)

    out = pl.pallas_call(
        _vit_kernel,
        out_shape=jax.ShapeDtypeStruct((b, 128), jnp.float32),       # lane-dense store
        grid=(1,),                                                   # whole batch in one step
        in_specs=[pl.BlockSpec((b * N, CPPP), lambda i: (0, 0)),
                  pl.BlockSpec((W_ROWS, 128), lambda i: (0, 0)),
                  pl.BlockSpec((C_ROWS, 128), lambda i: (0, 0))],
        out_specs=pl.BlockSpec((b, 128), lambda i: (0, 0)),
        compiler_params=pltpu.CompilerParams(dimension_semantics=("arbitrary",)),
    )(patches, pp["wslab"], pp["cslab"])
    return out[:, :NCLS]


# --------------------------------- main ---------------------------------------
if __name__ == "__main__":
    x = jax.random.normal(jax.random.PRNGKey(0), (B, C, IMG, IMG), dtype=jnp.float32)
    params = init_params(jax.random.PRNGKey(1))
    pp = prepare_params(params)
    fwd = jax.jit(vit_forward)
    out = jax.block_until_ready(fwd(x, pp))
    assert out.shape == (B, NCLS) and out.dtype == jnp.float32
    assert bool(jnp.all(jnp.isfinite(out)))
    print("KERNEL_OK")
</pallas_src>

<mosaic_0001>
module attributes {stable_mosaic.version = 11 : i64} {
  func.func @_vit_kernel(%arg0: i32, %arg1: memref<34x128xbf16, #tpu.memory_space<vmem>>, %arg2: memref<608x128xbf16, #tpu.memory_space<vmem>>, %arg3: memref<104x128xf32, #tpu.memory_space<vmem>>, %arg4: memref<2x128xf32, #tpu.memory_space<vmem>>) attributes {dimension_semantics = [#tpu.dimension_semantics<arbitrary>], iteration_bounds = array<i64: 1>, scalar_prefetch = 0 : i64, scratch_operands = 0 : i64, tpu.core_type = #tpu.core_type<tc>, window_params = [{pipeline_mode = #tpu.pipeline_mode<synchronous>, transform_indices = @transform_0, window_bounds = array<i64: 34, 128>}, {pipeline_mode = #tpu.pipeline_mode<synchronous>, transform_indices = @transform_1, window_bounds = array<i64: 608, 128>}, {pipeline_mode = #tpu.pipeline_mode<synchronous>, transform_indices = @transform_2, window_bounds = array<i64: 104, 128>}, {pipeline_mode = #tpu.pipeline_mode<synchronous>, transform_indices = @transform_3, window_bounds = array<i64: 2, 128>}]} {
    %c0 = arith.constant 0 : index
    %c0_0 = arith.constant 0 : index
    %0 = vector.load %arg2[%c0, %c0_0] : memref<608x128xbf16, #tpu.memory_space<vmem>>, vector<128x128xbf16>
    %c0_1 = arith.constant 0 : index
    %c0_2 = arith.constant 0 : index
    %1 = vector.load %arg3[%c0_1, %c0_2] : memref<104x128xf32, #tpu.memory_space<vmem>>, vector<34x128xf32>
    %2 = vector.extract_strided_slice %1 {offsets = [0, 0], sizes = [34, 32], strides = [1, 1]} : vector<34x128xf32> to vector<34x32xf32>
    %c0_3 = arith.constant 0 : index
    %c0_4 = arith.constant 0 : index
    %3 = vector.load %arg1[%c0_3, %c0_4] : memref<34x128xbf16, #tpu.memory_space<vmem>>, vector<34x128xbf16>
    %cst = arith.constant dense<0.000000e+00> : vector<34x128xf32>
    %4 = tpu.matmul %3, %0, %cst {dimension_numbers = #tpu.dot_dimension_numbers<[1], [0], [0], [1], [0, 0, 1, 1], [], []>} : vector<34x128xbf16>, vector<128x128xbf16>, vector<34x128xf32> -> vector<34x128xf32>
    %5 = vector.extract_strided_slice %4 {offsets = [0, 0], sizes = [34, 32], strides = [1, 1]} : vector<34x128xf32> to vector<34x32xf32>
    %6 = arith.addf %5, %2 : vector<34x32xf32>
    %c40 = arith.constant 40 : index
    %c0_5 = arith.constant 0 : index
    %7 = vector.load %arg3[%c40, %c0_5] : memref<104x128xf32, #tpu.memory_space<vmem>>, vector<34x128xf32>
    %8 = vector.extract_strided_slice %7 {offsets = [0, 0], sizes = [34, 34], strides = [1, 1]} : vector<34x128xf32> to vector<34x34xf32>
    %c80 = arith.constant 80 : index
    %c0_6 = arith.constant 0 : index
    %9 = vector.load %arg3[%c80, %c0_6] : memref<104x128xf32, #tpu.memory_space<vmem>>, vector<8x128xf32>
    %10 = vector.extract_strided_slice %9 {offsets = [0, 0], sizes = [1, 32], strides = [1, 1]} : vector<8x128xf32> to vector<1x32xf32>
    %11 = vector.extract_strided_slice %9 {offsets = [1, 0], sizes = [1, 32], strides = [1, 1]} : vector<8x128xf32> to vector<1x32xf32>
    %12 = vector.extract_strided_slice %9 {offsets = [2, 0], sizes = [1, 128], strides = [1, 1]} : vector<8x128xf32> to vector<1x128xf32>
    %13 = vector.extract_strided_slice %9 {offsets = [3, 0], sizes = [1, 32], strides = [1, 1]} : vector<8x128xf32> to vector<1x32xf32>
    %14 = vector.extract_strided_slice %9 {offsets = [4, 0], sizes = [1, 32], strides = [1, 1]} : vector<8x128xf32> to vector<1x32xf32>
    %15 = vector.extract_strided_slice %9 {offsets = [5, 0], sizes = [1, 32], strides = [1, 1]} : vector<8x128xf32> to vector<1x32xf32>
    %16 = vector.extract_strided_slice %9 {offsets = [6, 0], sizes = [1, 128], strides = [1, 1]} : vector<8x128xf32> to vector<1x128xf32>
    %17 = vector.extract_strided_slice %9 {offsets = [7, 0], sizes = [1, 32], strides = [1, 1]} : vector<8x128xf32> to vector<1x32xf32>
    %cst_7 = arith.constant dense<0.000000e+00> : vector<34xf32>
    %18 = vector.multi_reduction <add>, %6, %cst_7 [1] : vector<34x32xf32> to vector<34xf32>
    %19 = vector.shape_cast %18 : vector<34xf32> to vector<34x1xf32>
    %cst_8 = arith.constant 3.200000e+01 : f32
    %20 = vector.broadcast %cst_8 : f32 to vector<34x1xf32>
    %21 = arith.divf %19, %20 : vector<34x1xf32>
    %22 = vector.broadcast %21 : vector<34x1xf32> to vector<34x32xf32>
    %23 = arith.subf %6, %22 : vector<34x32xf32>
    %24 = arith.mulf %23, %23 : vector<34x32xf32>
    %cst_9 = arith.constant dense<0.000000e+00> : vector<34xf32>
    %25 = vector.multi_reduction <add>, %24, %cst_9 [1] : vector<34x32xf32> to vector<34xf32>
    %26 = vector.shape_cast %25 : vector<34xf32> to vector<34x1xf32>
    %cst_10 = arith.constant 3.200000e+01 : f32
    %27 = vector.broadcast %cst_10 : f32 to vector<34x1xf32>
    %28 = arith.divf %26, %27 : vector<34x1xf32>
    %cst_11 = arith.constant 9.99999997E-7 : f32
    %29 = vector.broadcast %cst_11 : f32 to vector<34x1xf32>
    %30 = arith.addf %28, %29 : vector<34x1xf32>
    %31 = math.rsqrt %30 : vector<34x1xf32>
    %32 = vector.broadcast %31 : vector<34x1xf32> to vector<34x32xf32>
    %33 = arith.mulf %23, %32 : vector<34x32xf32>
    %34 = vector.broadcast %10 : vector<1x32xf32> to vector<34x32xf32>
    %35 = arith.mulf %33, %34 : vector<34x32xf32>
    %36 = vector.broadcast %11 : vector<1x32xf32> to vector<34x32xf32>
    %37 = arith.addf %35, %36 : vector<34x32xf32>
    %38 = arith.truncf %37 : vector<34x32xf32> to vector<34x32xbf16>
    %c128 = arith.constant 128 : index
    %c0_12 = arith.constant 0 : index
    %39 = vector.load %arg2[%c128, %c0_12] : memref<608x128xbf16, #tpu.memory_space<vmem>>, vector<32x128xbf16>
    %cst_13 = arith.constant dense<0.000000e+00> : vector<34x128xf32>
    %40 = tpu.matmul %38, %39, %cst_13 {dimension_numbers = #tpu.dot_dimension_numbers<[1], [0], [0], [1], [0, 0, 1, 1], [], []>} : vector<34x32xbf16>, vector<32x128xbf16>, vector<34x128xf32> -> vector<34x128xf32>
    %41 = vector.broadcast %12 : vector<1x128xf32> to vector<34x128xf32>
    %42 = arith.addf %40, %41 : vector<34x128xf32>
    %43 = arith.truncf %42 : vector<34x128xf32> to vector<34x128xbf16>
    %44 = vector.extract_strided_slice %43 {offsets = [0, 0], sizes = [34, 8], strides = [1, 1]} : vector<34x128xbf16> to vector<34x8xbf16>
    %45 = vector.extract_strided_slice %43 {offsets = [0, 32], sizes = [34, 8], strides = [1, 1]} : vector<34x128xbf16> to vector<34x8xbf16>
    %46 = vector.extract_strided_slice %43 {offsets = [0, 64], sizes = [34, 8], strides = [1, 1]} : vector<34x128xbf16> to vector<34x8xbf16>
    %cst_14 = arith.constant dense<0.000000e+00> : vector<34x34xf32>
    %47 = tpu.matmul %44, %45, %cst_14 {dimension_numbers = #tpu.dot_dimension_numbers<[1], [1], [0], [0], [0, 0, 1, 0], [], []>} : vector<34x8xbf16>, vector<34x8xbf16>, vector<34x34xf32> -> vector<34x34xf32>
    %48 = arith.addf %47, %8 : vector<34x34xf32>
    %cst_15 = arith.constant dense<0xFF800000> : vector<34xf32>
    %49 = vector.multi_reduction <maximumf>, %48, %cst_15 [1] : vector<34x34xf32> to vector<34xf32>
    %50 = vector.shape_cast %49 : vector<34xf32> to vector<34x1xf32>
    %51 = vector.broadcast %50 : vector<34x1xf32> to vector<34x34xf32>
    %52 = arith.subf %48, %51 : vector<34x34xf32>
    %53 = math.exp %52 : vector<34x34xf32>
    %cst_16 = arith.constant dense<0.000000e+00> : vector<34xf32>
    %54 = vector.multi_reduction <add>, %53, %cst_16 [1] : vector<34x34xf32> to vector<34xf32>
    %55 = vector.shape_cast %54 : vector<34xf32> to vector<34x1xf32>
    %56 = tpu.reciprocal %55 {approx = true} : vector<34x1xf32> -> vector<34x1xf32>
    %57 = vector.broadcast %56 : vector<34x1xf32> to vector<34x34xf32>
    %58 = arith.mulf %53, %57 : vector<34x34xf32>
    %59 = arith.truncf %58 : vector<34x34xf32> to vector<34x34xbf16>
    %cst_17 = arith.constant dense<0.000000e+00> : vector<34x8xf32>
    %60 = tpu.matmul %59, %46, %cst_17 {dimension_numbers = #tpu.dot_dimension_numbers<[1], [0], [0], [1], [0, 0, 1, 1], [], []>} : vector<34x34xbf16>, vector<34x8xbf16>, vector<34x8xf32> -> vector<34x8xf32>
    %61 = vector.extract_strided_slice %43 {offsets = [0, 8], sizes = [34, 8], strides = [1, 1]} : vector<34x128xbf16> to vector<34x8xbf16>
    %62 = vector.extract_strided_slice %43 {offsets = [0, 40], sizes = [34, 8], strides = [1, 1]} : vector<34x128xbf16> to vector<34x8xbf16>
    %63 = vector.extract_strided_slice %43 {offsets = [0, 72], sizes = [34, 8], strides = [1, 1]} : vector<34x128xbf16> to vector<34x8xbf16>
    %cst_18 = arith.constant dense<0.000000e+00> : vector<34x34xf32>
    %64 = tpu.matmul %61, %62, %cst_18 {dimension_numbers = #tpu.dot_dimension_numbers<[1], [1], [0], [0], [0, 0, 1, 0], [], []>} : vector<34x8xbf16>, vector<34x8xbf16>, vector<34x34xf32> -> vector<34x34xf32>
    %65 = arith.addf %64, %8 : vector<34x34xf32>
    %cst_19 = arith.constant dense<0xFF800000> : vector<34xf32>
    %66 = vector.multi_reduction <maximumf>, %65, %cst_19 [1] : vector<34x34xf32> to vector<34xf32>
    %67 = vector.shape_cast %66 : vector<34xf32> to vector<34x1xf32>
    %68 = vector.broadcast %67 : vector<34x1xf32> to vector<34x34xf32>
    %69 = arith.subf %65, %68 : vector<34x34xf32>
    %70 = math.exp %69 : vector<34x34xf32>
    %cst_20 = arith.constant dense<0.000000e+00> : vector<34xf32>
    %71 = vector.multi_reduction <add>, %70, %cst_20 [1] : vector<34x34xf32> to vector<34xf32>
    %72 = vector.shape_cast %71 : vector<34xf32> to vector<34x1xf32>
    %73 = tpu.reciprocal %72 {approx = true} : vector<34x1xf32> -> vector<34x1xf32>
    %74 = vector.broadcast %73 : vector<34x1xf32> to vector<34x34xf32>
    %75 = arith.mulf %70, %74 : vector<34x34xf32>
    %76 = arith.truncf %75 : vector<34x34xf32> to vector<34x34xbf16>
    %cst_21 = arith.constant dense<0.000000e+00> : vector<34x8xf32>
    %77 = tpu.matmul %76, %63, %cst_21 {dimension_numbers = #tpu.dot_dimension_numbers<[1], [0], [0], [1], [0, 0, 1, 1], [], []>} : vector<34x34xbf16>, vector<34x8xbf16>, vector<34x8xf32> -> vector<34x8xf32>
    %78 = vector.extract_strided_slice %43 {offsets = [0, 16], sizes = [34, 8], strides = [1, 1]} : vector<34x128xbf16> to vector<34x8xbf16>
    %79 = vector.extract_strided_slice %43 {offsets = [0, 48], sizes = [34, 8], strides = [1, 1]} : vector<34x128xbf16> to vector<34x8xbf16>
    %80 = vector.extract_strided_slice %43 {offsets = [0, 80], sizes = [34, 8], strides = [1, 1]} : vector<34x128xbf16> to vector<34x8xbf16>
    %cst_22 = arith.constant dense<0.000000e+00> : vector<34x34xf32>
    %81 = tpu.matmul %78, %79, %cst_22 {dimension_numbers = #tpu.dot_dimension_numbers<[1], [1], [0], [0], [0, 0, 1, 0], [], []>} : vector<34x8xbf16>, vector<34x8xbf16>, vector<34x34xf32> -> vector<34x34xf32>
    %82 = arith.addf %81, %8 : vector<34x34xf32>
    %cst_23 = arith.constant dense<0xFF800000> : vector<34xf32>
    %83 = vector.multi_reduction <maximumf>, %82, %cst_23 [1] : vector<34x34xf32> to vector<34xf32>
    %84 = vector.shape_cast %83 : vector<34xf32> to vector<34x1xf32>
    %85 = vector.broadcast %84 : vector<34x1xf32> to vector<34x34xf32>
    %86 = arith.subf %82, %85 : vector<34x34xf32>
    %87 = math.exp %86 : vector<34x34xf32>
    %cst_24 = arith.constant dense<0.000000e+00> : vector<34xf32>
    %88 = vector.multi_reduction <add>, %87, %cst_24 [1] : vector<34x34xf32> to vector<34xf32>
    %89 = vector.shape_cast %88 : vector<34xf32> to vector<34x1xf32>
    %90 = tpu.reciprocal %89 {approx = true} : vector<34x1xf32> -> vector<34x1xf32>
    %91 = vector.broadcast %90 : vector<34x1xf32> to vector<34x34xf32>
    %92 = arith.mulf %87, %91 : vector<34x34xf32>
    %93 = arith.truncf %92 : vector<34x34xf32> to vector<34x34xbf16>
    %cst_25 = arith.constant dense<0.000000e+00> : vector<34x8xf32>
    %94 = tpu.matmul %93, %80, %cst_25 {dimension_numbers = #tpu.dot_dimension_numbers<[1], [0], [0], [1], [0, 0, 1, 1], [], []>} : vector<34x34xbf16>, vector<34x8xbf16>, vector<34x8xf32> -> vector<34x8xf32>
    %95 = vector.extract_strided_slice %43 {offsets = [0, 24], sizes = [34, 8], strides = [1, 1]} : vector<34x128xbf16> to vector<34x8xbf16>
    %96 = vector.extract_strided_slice %43 {offsets = [0, 56], sizes = [34, 8], strides = [1, 1]} : vector<34x128xbf16> to vector<34x8xbf16>
    %97 = vector.extract_strided_slice %43 {offsets = [0, 88], sizes = [34, 8], strides = [1, 1]} : vector<34x128xbf16> to vector<34x8xbf16>
    %cst_26 = arith.constant dense<0.000000e+00> : vector<34x34xf32>
    %98 = tpu.matmul %95, %96, %cst_26 {dimension_numbers = #tpu.dot_dimension_numbers<[1], [1], [0], [0], [0, 0, 1, 0], [], []>} : vector<34x8xbf16>, vector<34x8xbf16>, vector<34x34xf32> -> vector<34x34xf32>
    %99 = arith.addf %98, %8 : vector<34x34xf32>
    %cst_27 = arith.constant dense<0xFF800000> : vector<34xf32>
    %100 = vector.multi_reduction <maximumf>, %99, %cst_27 [1] : vector<34x34xf32> to vector<34xf32>
    %101 = vector.shape_cast %100 : vector<34xf32> to vector<34x1xf32>
    %102 = vector.broadcast %101 : vector<34x1xf32> to vector<34x34xf32>
    %103 = arith.subf %99, %102 : vector<34x34xf32>
    %104 = math.exp %103 : vector<34x34xf32>
    %cst_28 = arith.constant dense<0.000000e+00> : vector<34xf32>
    %105 = vector.multi_reduction <add>, %104, %cst_28 [1] : vector<34x34xf32> to vector<34xf32>
    %106 = vector.shape_cast %105 : vector<34xf32> to vector<34x1xf32>
    %107 = tpu.reciprocal %106 {approx = true} : vector<34x1xf32> -> vector<34x1xf32>
    %108 = vector.broadcast %107 : vector<34x1xf32> to vector<34x34xf32>
    %109 = arith.mulf %104, %108 : vector<34x34xf32>
    %110 = arith.truncf %109 : vector<34x34xf32> to vector<34x34xbf16>
    %cst_29 = arith.constant dense<0.000000e+00> : vector<34x8xf32>
    %111 = tpu.matmul %110, %97, %cst_29 {dimension_numbers = #tpu.dot_dimension_numbers<[1], [0], [0], [1], [0, 0, 1, 1], [], []>} : vector<34x34xbf16>, vector<34x8xbf16>, vector<34x8xf32> -> vector<34x8xf32>
    %112 = tpu.concatenate %60, %77, %94, %111 in 1 : vector<34x8xf32>, vector<34x8xf32>, vector<34x8xf32>, vector<34x8xf32> -> vector<34x32xf32>
    %113 = arith.truncf %112 : vector<34x32xf32> to vector<34x32xbf16>
    %c160 = arith.constant 160 : index
    %c0_30 = arith.constant 0 : index
    %114 = vector.load %arg2[%c160, %c0_30] : memref<608x128xbf16, #tpu.memory_space<vmem>>, vector<32x128xbf16>
    %cst_31 = arith.constant dense<0.000000e+00> : vector<34x128xf32>
    %115 = tpu.matmul %113, %114, %cst_31 {dimension_numbers = #tpu.dot_dimension_numbers<[1], [0], [0], [1], [0, 0, 1, 1], [], []>} : vector<34x32xbf16>, vector<32x128xbf16>, vector<34x128xf32> -> vector<34x128xf32>
    %116 = vector.extract_strided_slice %115 {offsets = [0, 0], sizes = [34, 32], strides = [1, 1]} : vector<34x128xf32> to vector<34x32xf32>
    %117 = arith.addf %6, %116 : vector<34x32xf32>
    %118 = vector.broadcast %13 : vector<1x32xf32> to vector<34x32xf32>
    %119 = arith.addf %117, %118 : vector<34x32xf32>
    %cst_32 = arith.constant dense<0.000000e+00> : vector<34xf32>
    %120 = vector.multi_reduction <add>, %119, %cst_32 [1] : vector<34x32xf32> to vector<34xf32>
    %121 = vector.shape_cast %120 : vector<34xf32> to vector<34x1xf32>
    %cst_33 = arith.constant 3.200000e+01 : f32
    %122 = vector.broadcast %cst_33 : f32 to vector<34x1xf32>
    %123 = arith.divf %121, %122 : vector<34x1xf32>
    %124 = vector.broadcast %123 : vector<34x1xf32> to vector<34x32xf32>
    %125 = arith.subf %119, %124 : vector<34x32xf32>
    %126 = arith.mulf %125, %125 : vector<34x32xf32>
    %cst_34 = arith.constant dense<0.000000e+00> : vector<34xf32>
    %127 = vector.multi_reduction <add>, %126, %cst_34 [1] : vector<34x32xf32> to vector<34xf32>
    %128 = vector.shape_cast %127 : vector<34xf32> to vector<34x1xf32>
    %cst_35 = arith.constant 3.200000e+01 : f32
    %129 = vector.broadcast %cst_35 : f32 to vector<34x1xf32>
    %130 = arith.divf %128, %129 : vector<34x1xf32>
    %cst_36 = arith.constant 9.99999997E-7 : f32
    %131 = vector.broadcast %cst_36 : f32 to vector<34x1xf32>
    %132 = arith.addf %130, %131 : vector<34x1xf32>
    %133 = math.rsqrt %132 : vector<34x1xf32>
    %134 = vector.broadcast %133 : vector<34x1xf32> to vector<34x32xf32>
    %135 = arith.mulf %125, %134 : vector<34x32xf32>
    %136 = vector.broadcast %14 : vector<1x32xf32> to vector<34x32xf32>
    %137 = arith.mulf %135, %136 : vector<34x32xf32>
    %138 = vector.broadcast %15 : vector<1x32xf32> to vector<34x32xf32>
    %139 = arith.addf %137, %138 : vector<34x32xf32>
    %140 = arith.truncf %139 : vector<34x32xf32> to vector<34x32xbf16>
    %c192 = arith.constant 192 : index
    %c0_37 = arith.constant 0 : index
    %141 = vector.load %arg2[%c192, %c0_37] : memref<608x128xbf16, #tpu.memory_space<vmem>>, vector<32x128xbf16>
    %cst_38 = arith.constant dense<0.000000e+00> : vector<34x128xf32>
    %142 = tpu.matmul %140, %141, %cst_38 {dimension_numbers = #tpu.dot_dimension_numbers<[1], [0], [0], [1], [0, 0, 1, 1], [], []>} : vector<34x32xbf16>, vector<32x128xbf16>, vector<34x128xf32> -> vector<34x128xf32>
    %143 = vector.broadcast %16 : vector<1x128xf32> to vector<34x128xf32>
    %144 = arith.addf %142, %143 : vector<34x128xf32>
    %cst_39 = arith.constant 5.000000e-01 : f32
    %145 = vector.broadcast %cst_39 : f32 to vector<34x128xf32>
    %146 = arith.mulf %145, %144 : vector<34x128xf32>
    %cst_40 = arith.constant 0.707106769 : f32
    %147 = vector.broadcast %cst_40 : f32 to vector<34x128xf32>
    %148 = arith.mulf %144, %147 : vector<34x128xf32>
    %149 = math.erf %148 : vector<34x128xf32>
    %cst_41 = arith.constant 1.000000e+00 : f32
    %150 = vector.broadcast %cst_41 : f32 to vector<34x128xf32>
    %151 = arith.addf %150, %149 : vector<34x128xf32>
    %152 = arith.mulf %146, %151 : vector<34x128xf32>
    %153 = arith.truncf %152 : vector<34x128xf32> to vector<34x128xbf16>
    %c224 = arith.constant 224 : index
    %c0_42 = arith.constant 0 : index
    %154 = vector.load %arg2[%c224, %c0_42] : memref<608x128xbf16, #tpu.memory_space<vmem>>, vector<128x128xbf16>
    %cst_43 = arith.constant dense<0.000000e+00> : vector<34x128xf32>
    %155 = tpu.matmul %153, %154, %cst_43 {dimension_numbers = #tpu.dot_dimension_numbers<[1], [0], [0], [1], [0, 0, 1, 1], [], []>} : vector<34x128xbf16>, vector<128x128xbf16>, vector<34x128xf32> -> vector<34x128xf32>
    %156 = vector.extract_strided_slice %155 {offsets = [0, 0], sizes = [34, 32], strides = [1, 1]} : vector<34x128xf32> to vector<34x32xf32>
    %157 = arith.addf %119, %156 : vector<34x32xf32>
    %158 = vector.broadcast %17 : vector<1x32xf32> to vector<34x32xf32>
    %159 = arith.addf %157, %158 : vector<34x32xf32>
    %c88 = arith.constant 88 : index
    %c0_44 = arith.constant 0 : index
    %160 = vector.load %arg3[%c88, %c0_44] : memref<104x128xf32, #tpu.memory_space<vmem>>, vector<8x128xf32>
    %161 = vector.extract_strided_slice %160 {offsets = [0, 0], sizes = [1, 32], strides = [1, 1]} : vector<8x128xf32> to vector<1x32xf32>
    %162 = vector.extract_strided_slice %160 {offsets = [1, 0], sizes = [1, 32], strides = [1, 1]} : vector<8x128xf32> to vector<1x32xf32>
    %163 = vector.extract_strided_slice %160 {offsets = [2, 0], sizes = [1, 128], strides = [1, 1]} : vector<8x128xf32> to vector<1x128xf32>
    %164 = vector.extract_strided_slice %160 {offsets = [3, 0], sizes = [1, 32], strides = [1, 1]} : vector<8x128xf32> to vector<1x32xf32>
    %165 = vector.extract_strided_slice %160 {offsets = [4, 0], sizes = [1, 32], strides = [1, 1]} : vector<8x128xf32> to vector<1x32xf32>
    %166 = vector.extract_strided_slice %160 {offsets = [5, 0], sizes = [1, 32], strides = [1, 1]} : vector<8x128xf32> to vector<1x32xf32>
    %167 = vector.extract_strided_slice %160 {offsets = [6, 0], sizes = [1, 128], strides = [1, 1]} : vector<8x128xf32> to vector<1x128xf32>
    %168 = vector.extract_strided_slice %160 {offsets = [7, 0], sizes = [1, 32], strides = [1, 1]} : vector<8x128xf32> to vector<1x32xf32>
    %cst_45 = arith.constant dense<0.000000e+00> : vector<34xf32>
    %169 = vector.multi_reduction <add>, %159, %cst_45 [1] : vector<34x32xf32> to vector<34xf32>
    %170 = vector.shape_cast %169 : vector<34xf32> to vector<34x1xf32>
    %cst_46 = arith.constant 3.200000e+01 : f32
    %171 = vector.broadcast %cst_46 : f32 to vector<34x1xf32>
    %172 = arith.divf %170, %171 : vector<34x1xf32>
    %173 = vector.broadcast %172 : vector<34x1xf32> to vector<34x32xf32>
    %174 = arith.subf %159, %173 : vector<34x32xf32>
    %175 = arith.mulf %174, %174 : vector<34x32xf32>
    %cst_47 = arith.constant dense<0.000000e+00> : vector<34xf32>
    %176 = vector.multi_reduction <add>, %175, %cst_47 [1] : vector<34x32xf32> to vector<34xf32>
    %177 = vector.shape_cast %176 : vector<34xf32> to vector<34x1xf32>
    %cst_48 = arith.constant 3.200000e+01 : f32
    %178 = vector.broadcast %cst_48 : f32 to vector<34x1xf32>
    %179 = arith.divf %177, %178 : vector<34x1xf32>
    %cst_49 = arith.constant 9.99999997E-7 : f32
    %180 = vector.broadcast %cst_49 : f32 to vector<34x1xf32>
    %181 = arith.addf %179, %180 : vector<34x1xf32>
    %182 = math.rsqrt %181 : vector<34x1xf32>
    %183 = vector.broadcast %182 : vector<34x1xf32> to vector<34x32xf32>
    %184 = arith.mulf %174, %183 : vector<34x32xf32>
    %185 = vector.broadcast %161 : vector<1x32xf32> to vector<34x32xf32>
    %186 = arith.mulf %184, %185 : vector<34x32xf32>
    %187 = vector.broadcast %162 : vector<1x32xf32> to vector<34x32xf32>
    %188 = arith.addf %186, %187 : vector<34x32xf32>
    %189 = arith.truncf %188 : vector<34x32xf32> to vector<34x32xbf16>
    %c352 = arith.constant 352 : index
    %c0_50 = arith.constant 0 : index
    %190 = vector.load %arg2[%c352, %c0_50] : memref<608x128xbf16, #tpu.memory_space<vmem>>, vector<32x128xbf16>
    %cst_51 = arith.constant dense<0.000000e+00> : vector<34x128xf32>
    %191 = tpu.matmul %189, %190, %cst_51 {dimension_numbers = #tpu.dot_dimension_numbers<[1], [0], [0], [1], [0, 0, 1, 1], [], []>} : vector<34x32xbf16>, vector<32x128xbf16>, vector<34x128xf32> -> vector<34x128xf32>
    %192 = vector.broadcast %163 : vector<1x128xf32> to vector<34x128xf32>
    %193 = arith.addf %191, %192 : vector<34x128xf32>
    %194 = arith.truncf %193 : vector<34x128xf32> to vector<34x128xbf16>
    %195 = vector.extract_strided_slice %194 {offsets = [0, 0], sizes = [34, 8], strides = [1, 1]} : vector<34x128xbf16> to vector<34x8xbf16>
    %196 = vector.extract_strided_slice %194 {offsets = [0, 32], sizes = [34, 8], strides = [1, 1]} : vector<34x128xbf16> to vector<34x8xbf16>
    %197 = vector.extract_strided_slice %194 {offsets = [0, 64], sizes = [34, 8], strides = [1, 1]} : vector<34x128xbf16> to vector<34x8xbf16>
    %cst_52 = arith.constant dense<0.000000e+00> : vector<34x34xf32>
    %198 = tpu.matmul %195, %196, %cst_52 {dimension_numbers = #tpu.dot_dimension_numbers<[1], [1], [0], [0], [0, 0, 1, 0], [], []>} : vector<34x8xbf16>, vector<34x8xbf16>, vector<34x34xf32> -> vector<34x34xf32>
    %199 = arith.addf %198, %8 : vector<34x34xf32>
    %cst_53 = arith.constant dense<0xFF800000> : vector<34xf32>
    %200 = vector.multi_reduction <maximumf>, %199, %cst_53 [1] : vector<34x34xf32> to vector<34xf32>
    %201 = vector.shape_cast %200 : vector<34xf32> to vector<34x1xf32>
    %202 = vector.broadcast %201 : vector<34x1xf32> to vector<34x34xf32>
    %203 = arith.subf %199, %202 : vector<34x34xf32>
    %204 = math.exp %203 : vector<34x34xf32>
    %cst_54 = arith.constant dense<0.000000e+00> : vector<34xf32>
    %205 = vector.multi_reduction <add>, %204, %cst_54 [1] : vector<34x34xf32> to vector<34xf32>
    %206 = vector.shape_cast %205 : vector<34xf32> to vector<34x1xf32>
    %207 = tpu.reciprocal %206 {approx = true} : vector<34x1xf32> -> vector<34x1xf32>
    %208 = vector.broadcast %207 : vector<34x1xf32> to vector<34x34xf32>
    %209 = arith.mulf %204, %208 : vector<34x34xf32>
    %210 = arith.truncf %209 : vector<34x34xf32> to vector<34x34xbf16>
    %cst_55 = arith.constant dense<0.000000e+00> : vector<34x8xf32>
    %211 = tpu.matmul %210, %197, %cst_55 {dimension_numbers = #tpu.dot_dimension_numbers<[1], [0], [0], [1], [0, 0, 1, 1], [], []>} : vector<34x34xbf16>, vector<34x8xbf16>, vector<34x8xf32> -> vector<34x8xf32>
    %212 = vector.extract_strided_slice %194 {offsets = [0, 8], sizes = [34, 8], strides = [1, 1]} : vector<34x128xbf16> to vector<34x8xbf16>
    %213 = vector.extract_strided_slice %194 {offsets = [0, 40], sizes = [34, 8], strides = [1, 1]} : vector<34x128xbf16> to vector<34x8xbf16>
    %214 = vector.extract_strided_slice %194 {offsets = [0, 72], sizes = [34, 8], strides = [1, 1]} : vector<34x128xbf16> to vector<34x8xbf16>
    %cst_56 = arith.constant dense<0.000000e+00> : vector<34x34xf32>
    %215 = tpu.matmul %212, %213, %cst_56 {dimension_numbers = #tpu.dot_dimension_numbers<[1], [1], [0], [0], [0, 0, 1, 0], [], []>} : vector<34x8xbf16>, vector<34x8xbf16>, vector<34x34xf32> -> vector<34x34xf32>
    %216 = arith.addf %215, %8 : vector<34x34xf32>
    %cst_57 = arith.constant dense<0xFF800000> : vector<34xf32>
    %217 = vector.multi_reduction <maximumf>, %216, %cst_57 [1] : vector<34x34xf32> to vector<34xf32>
    %218 = vector.shape_cast %217 : vector<34xf32> to vector<34x1xf32>
    %219 = vector.broadcast %218 : vector<34x1xf32> to vector<34x34xf32>
    %220 = arith.subf %216, %219 : vector<34x34xf32>
    %221 = math.exp %220 : vector<34x34xf32>
    %cst_58 = arith.constant dense<0.000000e+00> : vector<34xf32>
    %222 = vector.multi_reduction <add>, %221, %cst_58 [1] : vector<34x34xf32> to vector<34xf32>
    %223 = vector.shape_cast %222 : vector<34xf32> to vector<34x1xf32>
    %224 = tpu.reciprocal %223 {approx = true} : vector<34x1xf32> -> vector<34x1xf32>
    %225 = vector.broadcast %224 : vector<34x1xf32> to vector<34x34xf32>
    %226 = arith.mulf %221, %225 : vector<34x34xf32>
    %227 = arith.truncf %226 : vector<34x34xf32> to vector<34x34xbf16>
    %cst_59 = arith.constant dense<0.000000e+00> : vector<34x8xf32>
    %228 = tpu.matmul %227, %214, %cst_59 {dimension_numbers = #tpu.dot_dimension_numbers<[1], [0], [0], [1], [0, 0, 1, 1], [], []>} : vector<34x34xbf16>, vector<34x8xbf16>, vector<34x8xf32> -> vector<34x8xf32>
    %229 = vector.extract_strided_slice %194 {offsets = [0, 16], sizes = [34, 8], strides = [1, 1]} : vector<34x128xbf16> to vector<34x8xbf16>
    %230 = vector.extract_strided_slice %194 {offsets = [0, 48], sizes = [34, 8], strides = [1, 1]} : vector<34x128xbf16> to vector<34x8xbf16>
    %231 = vector.extract_strided_slice %194 {offsets = [0, 80], sizes = [34, 8], strides = [1, 1]} : vector<34x128xbf16> to vector<34x8xbf16>
    %cst_60 = arith.constant dense<0.000000e+00> : vector<34x34xf32>
    %232 = tpu.matmul %229, %230, %cst_60 {dimension_numbers = #tpu.dot_dimension_numbers<[1], [1], [0], [0], [0, 0, 1, 0], [], []>} : vector<34x8xbf16>, vector<34x8xbf16>, vector<34x34xf32> -> vector<34x34xf32>
    %233 = arith.addf %232, %8 : vector<34x34xf32>
    %cst_61 = arith.constant dense<0xFF800000> : vector<34xf32>
    %234 = vector.multi_reduction <maximumf>, %233, %cst_61 [1] : vector<34x34xf32> to vector<34xf32>
    %235 = vector.shape_cast %234 : vector<34xf32> to vector<34x1xf32>
    %236 = vector.broadcast %235 : vector<34x1xf32> to vector<34x34xf32>
    %237 = arith.subf %233, %236 : vector<34x34xf32>
    %238 = math.exp %237 : vector<34x34xf32>
    %cst_62 = arith.constant dense<0.000000e+00> : vector<34xf32>
    %239 = vector.multi_reduction <add>, %238, %cst_62 [1] : vector<34x34xf32> to vector<34xf32>
    %240 = vector.shape_cast %239 : vector<34xf32> to vector<34x1xf32>
    %241 = tpu.reciprocal %240 {approx = true} : vector<34x1xf32> -> vector<34x1xf32>
    %242 = vector.broadcast %241 : vector<34x1xf32> to vector<34x34xf32>
    %243 = arith.mulf %238, %242 : vector<34x34xf32>
    %244 = arith.truncf %243 : vector<34x34xf32> to vector<34x34xbf16>
    %cst_63 = arith.constant dense<0.000000e+00> : vector<34x8xf32>
    %245 = tpu.matmul %244, %231, %cst_63 {dimension_numbers = #tpu.dot_dimension_numbers<[1], [0], [0], [1], [0, 0, 1, 1], [], []>} : vector<34x34xbf16>, vector<34x8xbf16>, vector<34x8xf32> -> vector<34x8xf32>
    %246 = vector.extract_strided_slice %194 {offsets = [0, 24], sizes = [34, 8], strides = [1, 1]} : vector<34x128xbf16> to vector<34x8xbf16>
    %247 = vector.extract_strided_slice %194 {offsets = [0, 56], sizes = [34, 8], strides = [1, 1]} : vector<34x128xbf16> to vector<34x8xbf16>
    %248 = vector.extract_strided_slice %194 {offsets = [0, 88], sizes = [34, 8], strides = [1, 1]} : vector<34x128xbf16> to vector<34x8xbf16>
    %cst_64 = arith.constant dense<0.000000e+00> : vector<34x34xf32>
    %249 = tpu.matmul %246, %247, %cst_64 {dimension_numbers = #tpu.dot_dimension_numbers<[1], [1], [0], [0], [0, 0, 1, 0], [], []>} : vector<34x8xbf16>, vector<34x8xbf16>, vector<34x34xf32> -> vector<34x34xf32>
    %250 = arith.addf %249, %8 : vector<34x34xf32>
    %cst_65 = arith.constant dense<0xFF800000> : vector<34xf32>
    %251 = vector.multi_reduction <maximumf>, %250, %cst_65 [1] : vector<34x34xf32> to vector<34xf32>
    %252 = vector.shape_cast %251 : vector<34xf32> to vector<34x1xf32>
    %253 = vector.broadcast %252 : vector<34x1xf32> to vector<34x34xf32>
    %254 = arith.subf %250, %253 : vector<34x34xf32>
    %255 = math.exp %254 : vector<34x34xf32>
    %cst_66 = arith.constant dense<0.000000e+00> : vector<34xf32>
    %256 = vector.multi_reduction <add>, %255, %cst_66 [1] : vector<34x34xf32> to vector<34xf32>
    %257 = vector.shape_cast %256 : vector<34xf32> to vector<34x1xf32>
    %258 = tpu.reciprocal %257 {approx = true} : vector<34x1xf32> -> vector<34x1xf32>
    %259 = vector.broadcast %258 : vector<34x1xf32> to vector<34x34xf32>
    %260 = arith.mulf %255, %259 : vector<34x34xf32>
    %261 = arith.truncf %260 : vector<34x34xf32> to vector<34x34xbf16>
    %cst_67 = arith.constant dense<0.000000e+00> : vector<34x8xf32>
    %262 = tpu.matmul %261, %248, %cst_67 {dimension_numbers = #tpu.dot_dimension_numbers<[1], [0], [0], [1], [0, 0, 1, 1], [], []>} : vector<34x34xbf16>, vector<34x8xbf16>, vector<34x8xf32> -> vector<34x8xf32>
    %263 = tpu.concatenate %211, %228, %245, %262 in 1 : vector<34x8xf32>, vector<34x8xf32>, vector<34x8xf32>, vector<34x8xf32> -> vector<34x32xf32>
    %264 = arith.truncf %263 : vector<34x32xf32> to vector<34x32xbf16>
    %c384 = arith.constant 384 : index
    %c0_68 = arith.constant 0 : index
    %265 = vector.load %arg2[%c384, %c0_68] : memref<608x128xbf16, #tpu.memory_space<vmem>>, vector<32x128xbf16>
    %cst_69 = arith.constant dense<0.000000e+00> : vector<34x128xf32>
    %266 = tpu.matmul %264, %265, %cst_69 {dimension_numbers = #tpu.dot_dimension_numbers<[1], [0], [0], [1], [0, 0, 1, 1], [], []>} : vector<34x32xbf16>, vector<32x128xbf16>, vector<34x128xf32> -> vector<34x128xf32>
    %267 = vector.extract_strided_slice %266 {offsets = [0, 0], sizes = [34, 32], strides = [1, 1]} : vector<34x128xf32> to vector<34x32xf32>
    %268 = arith.addf %159, %267 : vector<34x32xf32>
    %269 = vector.broadcast %164 : vector<1x32xf32> to vector<34x32xf32>
    %270 = arith.addf %268, %269 : vector<34x32xf32>
    %cst_70 = arith.constant dense<0.000000e+00> : vector<34xf32>
    %271 = vector.multi_reduction <add>, %270, %cst_70 [1] : vector<34x32xf32> to vector<34xf32>
    %272 = vector.shape_cast %271 : vector<34xf32> to vector<34x1xf32>
    %cst_71 = arith.constant 3.200000e+01 : f32
    %273 = vector.broadcast %cst_71 : f32 to vector<34x1xf32>
    %274 = arith.divf %272, %273 : vector<34x1xf32>
    %275 = vector.broadcast %274 : vector<34x1xf32> to vector<34x32xf32>
    %276 = arith.subf %270, %275 : vector<34x32xf32>
    %277 = arith.mulf %276, %276 : vector<34x32xf32>
    %cst_72 = arith.constant dense<0.000000e+00> : vector<34xf32>
    %278 = vector.multi_reduction <add>, %277, %cst_72 [1] : vector<34x32xf32> to vector<34xf32>
    %279 = vector.shape_cast %278 : vector<34xf32> to vector<34x1xf32>
    %cst_73 = arith.constant 3.200000e+01 : f32
    %280 = vector.broadcast %cst_73 : f32 to vector<34x1xf32>
    %281 = arith.divf %279, %280 : vector<34x1xf32>
    %cst_74 = arith.constant 9.99999997E-7 : f32
    %282 = vector.broadcast %cst_74 : f32 to vector<34x1xf32>
    %283 = arith.addf %281, %282 : vector<34x1xf32>
    %284 = math.rsqrt %283 : vector<34x1xf32>
    %285 = vector.broadcast %284 : vector<34x1xf32> to vector<34x32xf32>
    %286 = arith.mulf %276, %285 : vector<34x32xf32>
    %287 = vector.broadcast %165 : vector<1x32xf32> to vector<34x32xf32>
    %288 = arith.mulf %286, %287 : vector<34x32xf32>
    %289 = vector.broadcast %166 : vector<1x32xf32> to vector<34x32xf32>
    %290 = arith.addf %288, %289 : vector<34x32xf32>
    %291 = arith.truncf %290 : vector<34x32xf32> to vector<34x32xbf16>
    %c416 = arith.constant 416 : index
    %c0_75 = arith.constant 0 : index
    %292 = vector.load %arg2[%c416, %c0_75] : memref<608x128xbf16, #tpu.memory_space<vmem>>, vector<32x128xbf16>
    %cst_76 = arith.constant dense<0.000000e+00> : vector<34x128xf32>
    %293 = tpu.matmul %291, %292, %cst_76 {dimension_numbers = #tpu.dot_dimension_numbers<[1], [0], [0], [1], [0, 0, 1, 1], [], []>} : vector<34x32xbf16>, vector<32x128xbf16>, vector<34x128xf32> -> vector<34x128xf32>
    %294 = vector.broadcast %167 : vector<1x128xf32> to vector<34x128xf32>
    %295 = arith.addf %293, %294 : vector<34x128xf32>
    %cst_77 = arith.constant 5.000000e-01 : f32
    %296 = vector.broadcast %cst_77 : f32 to vector<34x128xf32>
    %297 = arith.mulf %296, %295 : vector<34x128xf32>
    %cst_78 = arith.constant 0.707106769 : f32
    %298 = vector.broadcast %cst_78 : f32 to vector<34x128xf32>
    %299 = arith.mulf %295, %298 : vector<34x128xf32>
    %300 = math.erf %299 : vector<34x128xf32>
    %cst_79 = arith.constant 1.000000e+00 : f32
    %301 = vector.broadcast %cst_79 : f32 to vector<34x128xf32>
    %302 = arith.addf %301, %300 : vector<34x128xf32>
    %303 = arith.mulf %297, %302 : vector<34x128xf32>
    %304 = arith.truncf %303 : vector<34x128xf32> to vector<34x128xbf16>
    %c448 = arith.constant 448 : index
    %c0_80 = arith.constant 0 : index
    %305 = vector.load %arg2[%c448, %c0_80] : memref<608x128xbf16, #tpu.memory_space<vmem>>, vector<128x128xbf16>
    %cst_81 = arith.constant dense<0.000000e+00> : vector<34x128xf32>
    %306 = tpu.matmul %304, %305, %cst_81 {dimension_numbers = #tpu.dot_dimension_numbers<[1], [0], [0], [1], [0, 0, 1, 1], [], []>} : vector<34x128xbf16>, vector<128x128xbf16>, vector<34x128xf32> -> vector<34x128xf32>
    %307 = vector.extract_strided_slice %306 {offsets = [0, 0], sizes = [34, 32], strides = [1, 1]} : vector<34x128xf32> to vector<34x32xf32>
    %308 = arith.addf %270, %307 : vector<34x32xf32>
    %309 = vector.broadcast %168 : vector<1x32xf32> to vector<34x32xf32>
    %310 = arith.addf %308, %309 : vector<34x32xf32>
    %c96 = arith.constant 96 : index
    %c0_82 = arith.constant 0 : index
    %311 = vector.load %arg3[%c96, %c0_82] : memref<104x128xf32, #tpu.memory_space<vmem>>, vector<8x128xf32>
    %312 = vector.extract_strided_slice %311 {offsets = [0, 0], sizes = [1, 32], strides = [1, 1]} : vector<8x128xf32> to vector<1x32xf32>
    %313 = vector.extract_strided_slice %311 {offsets = [1, 0], sizes = [1, 32], strides = [1, 1]} : vector<8x128xf32> to vector<1x32xf32>
    %314 = vector.extract_strided_slice %311 {offsets = [2, 0], sizes = [1, 128], strides = [1, 1]} : vector<8x128xf32> to vector<1x128xf32>
    %315 = vector.extract_strided_slice %310 {offsets = [16, 0], sizes = [1, 32], strides = [1, 1]} : vector<34x32xf32> to vector<1x32xf32>
    %316 = vector.extract_strided_slice %310 {offsets = [33, 0], sizes = [1, 32], strides = [1, 1]} : vector<34x32xf32> to vector<1x32xf32>
    %317 = tpu.concatenate %315, %316 in 0 : vector<1x32xf32>, vector<1x32xf32> -> vector<2x32xf32>
    %cst_83 = arith.constant dense<0.000000e+00> : vector<2xf32>
    %318 = vector.multi_reduction <add>, %317, %cst_83 [1] : vector<2x32xf32> to vector<2xf32>
    %319 = vector.shape_cast %318 : vector<2xf32> to vector<2x1xf32>
    %cst_84 = arith.constant 3.200000e+01 : f32
    %320 = vector.broadcast %cst_84 : f32 to vector<2x1xf32>
    %321 = arith.divf %319, %320 : vector<2x1xf32>
    %322 = vector.broadcast %321 : vector<2x1xf32> to vector<2x32xf32>
    %323 = arith.subf %317, %322 : vector<2x32xf32>
    %324 = arith.mulf %323, %323 : vector<2x32xf32>
    %cst_85 = arith.constant dense<0.000000e+00> : vector<2xf32>
    %325 = vector.multi_reduction <add>, %324, %cst_85 [1] : vector<2x32xf32> to vector<2xf32>
    %326 = vector.shape_cast %325 : vector<2xf32> to vector<2x1xf32>
    %cst_86 = arith.constant 3.200000e+01 : f32
    %327 = vector.broadcast %cst_86 : f32 to vector<2x1xf32>
    %328 = arith.divf %326, %327 : vector<2x1xf32>
    %cst_87 = arith.constant 9.99999997E-7 : f32
    %329 = vector.broadcast %cst_87 : f32 to vector<2x1xf32>
    %330 = arith.addf %328, %329 : vector<2x1xf32>
    %331 = math.rsqrt %330 : vector<2x1xf32>
    %332 = vector.broadcast %331 : vector<2x1xf32> to vector<2x32xf32>
    %333 = arith.mulf %323, %332 : vector<2x32xf32>
    %334 = vector.broadcast %312 : vector<1x32xf32> to vector<2x32xf32>
    %335 = arith.mulf %333, %334 : vector<2x32xf32>
    %336 = vector.broadcast %313 : vector<1x32xf32> to vector<2x32xf32>
    %337 = arith.addf %335, %336 : vector<2x32xf32>
    %338 = arith.truncf %337 : vector<2x32xf32> to vector<2x32xbf16>
    %c576 = arith.constant 576 : index
    %c0_88 = arith.constant 0 : index
    %339 = vector.load %arg2[%c576, %c0_88] : memref<608x128xbf16, #tpu.memory_space<vmem>>, vector<32x128xbf16>
    %cst_89 = arith.constant dense<0.000000e+00> : vector<2x128xf32>
    %340 = tpu.matmul %338, %339, %cst_89 {dimension_numbers = #tpu.dot_dimension_numbers<[1], [0], [0], [1], [0, 0, 1, 1], [], []>} : vector<2x32xbf16>, vector<32x128xbf16>, vector<2x128xf32> -> vector<2x128xf32>
    %341 = vector.broadcast %314 : vector<1x128xf32> to vector<2x128xf32>
    %342 = arith.addf %340, %341 : vector<2x128xf32>
    %c0_90 = arith.constant 0 : index
    %c0_91 = arith.constant 0 : index
    %343 = vector.load %arg4[%c0_90, %c0_91] : memref<2x128xf32, #tpu.memory_space<vmem>>, vector<2x128xf32>
    tpu.vector_store %arg4[%c0_90, %c0_91], %342 {strides = array<i32>} : memref<2x128xf32, #tpu.memory_space<vmem>>, vector<2x128xf32>,
    return
  }
  func.func @transform_0(%arg0: i32) -> (i32, i32) {
    %c0_i32 = arith.constant 0 : i32
    %c0_i32_0 = arith.constant 0 : i32
    %c0_i32_1 = arith.constant 0 : i32
    return %c0_i32, %c0_i32_0 : i32, i32
  }
  func.func @transform_1(%arg0: i32) -> (i32, i32) {
    %c0_i32 = arith.constant 0 : i32
    %c0_i32_0 = arith.constant 0 : i32
    %c0_i32_1 = arith.constant 0 : i32
    return %c0_i32, %c0_i32_0 : i32, i32
  }
  func.func @transform_2(%arg0: i32) -> (i32, i32) {
    %c0_i32 = arith.constant 0 : i32
    %c0_i32_0 = arith.constant 0 : i32
    %c0_i32_1 = arith.constant 0 : i32
    return %c0_i32, %c0_i32_0 : i32, i32
  }
  func.func @transform_3(%arg0: i32) -> (i32, i32) {
    %c0_i32 = arith.constant 0 : i32
    %c0_i32_0 = arith.constant 0 : i32
    %c0_i32_1 = arith.constant 0 : i32
    return %c0_i32, %c0_i32_0 : i32, i32
  }
}

</mosaic_0001>

<llo_original>
// kernel: vit_forward.1
$region0: #{vit_forward.1}
  #allocation0 [shape = 'u32[]', space=smem, size = 0x4, offset = 0x4, fixed_abs, tag = 'smem constant byte address 0x4 - core index']
  #allocation1 [shape = 'u32[72,128]{1,0:T(1,128)}', space=vmem, size = 0x9000, scoped, tag = 'internal scratch']
  %s0 = inlined_call_operand.vmem [shape: bf16[34,128], index: 0, kind: input, shape index: {}]
  %s1 = inlined_call_operand.vmem [shape: bf16[608,128], index: 1, kind: input, shape index: {}]
  %s2 = inlined_call_operand.vmem [shape: f32[104,128], index: 2, kind: input, shape index: {}]
  %s3 = inlined_call_operand.hbm [shape: f32[2,128], index: 3, kind: output, shape index: {}]
  %s4 = sld [smem:[#allocation0]]
  $region22: #{vit_forward.1} parent=0
    _
  %s6 = ssub.s32 1, %s4
  %s7 = scalar_select 0, %s6, %s4
  $region1: #{vit_forward.1} parent=0
    #allocation2 [shape = 'u8[1024]{0}', space=vmem, size = 0x400, scoped, tag = 'output window, operand 0, single buffered']
    #allocation3 [shape = 's32[1]{0}', space=sflag, size = 0x4, scoped, tag = 'scoped memory for vit_forward.1']
    %8 = vsyncpa [#allocation3], 0
    // Predicated region
    $region2: #{vit_forward.1} parent=1 // pred_check
      _
    $region3: #{vit_forward.1} parent=1 // pred_check_branch
      %10 = sbr.rel (0) target = $region5
    $region4: #{vit_forward.1} parent=1 // pred_region
      _
    $region5: #{vit_forward.1} parent=1 // pred_fallthru
      _
    // Predicated region
    $region6: #{vit_forward.1} parent=1 // pred_check
      _
    $region7: #{vit_forward.1} parent=1 // pred_check_branch
      %12 = sbr.rel (0) target = $region9
    $region8: #{vit_forward.1} parent=1 // pred_region
      _
    $region9: #{vit_forward.1} parent=1 // pred_fallthru
      _
    // Predicated region
    $region10: #{vit_forward.1} parent=1 // pred_check
      _
    $region11: #{vit_forward.1} parent=1 // pred_check_branch
      %14 = sbr.rel (0) target = $region13
    $region12: #{vit_forward.1} parent=1 // pred_region
      _
    $region13: #{vit_forward.1} parent=1 // pred_fallthru
      _
    %v16 = vld [vmem:[%s1] sm:$0xf]
    %v17 = vld [vmem:[%s1 + $0x4] sm:$0xf]
    %v18 = vld [vmem:[%s1 + $0x8] sm:$0xf]
    %v19 = vld [vmem:[%s1 + $0xc] sm:$0xf]
    %v20 = vld [vmem:[%s1 + $0x10] sm:$0xf]
    %v21 = vld [vmem:[%s1 + $0x14] sm:$0xf]
    %v22 = vld [vmem:[%s1 + $0x18] sm:$0xf]
    %v23 = vld [vmem:[%s1 + $0x1c] sm:$0xf]
    %v24 = vld [vmem:[%s1 + $0x20] sm:$0xf]
    %v25 = vld [vmem:[%s1 + $0x24] sm:$0xf]
    %v26 = vld [vmem:[%s1 + $0x28] sm:$0xf]
    %v27 = vld [vmem:[%s1 + $0x2c] sm:$0xf]
    %v28 = vld [vmem:[%s1 + $0x30] sm:$0xf]
    %v29 = vld [vmem:[%s1 + $0x34] sm:$0xf]
    %v30 = vld [vmem:[%s1 + $0x38] sm:$0xf]
    %v31 = vld [vmem:[%s1 + $0x3c] sm:$0xf]
    %v32 = vld [vmem:[%s2] sm:$0xff]
    %v33 = vld [vmem:[%s2 + $0x8] sm:$0xff]
    %v34 = vld [vmem:[%s2 + $0x10] sm:$0xff]
    %v35 = vld [vmem:[%s2 + $0x18] sm:$0xff]
    %v36 = vld [vmem:[%s2 + $0x20] sm:$0x3]
    %v37 = vld [vmem:[%s0] sm:$0xf]
    %v38 = vld [vmem:[%s0 + $0x4] sm:$0xf]
    %v39 = vld [vmem:[%s0 + $0x8] sm:$0xf]
    %v40 = vld [vmem:[%s0 + $0xc] sm:$0xf]
    %v41 = vld [vmem:[%s0 + $0x10] sm:$0x1]
    %v47 = vunpack.c.l.b16 %v37
    %v48 = vunpack.c.l.b16 %v38
    %v49 = vunpack.c.l.b16 %v39
    %v50 = vunpack.c.l.b16 %v40
    %v51 = vunpack.c.l.b16 %v41
    %v52 = vpack.c.b16 %v48, %v47
    %v53 = vpack.c.b16 %v50, %v49
    %v54 = vpack.c.b16 %v51, %v51
    %v74 = vunpack.c.l.b16 %v16
    %v75 = vunpack.c.l.b16 %v17
    %v76 = vunpack.c.l.b16 %v18
    %v77 = vunpack.c.l.b16 %v19
    %v78 = vunpack.c.l.b16 %v20
    %v79 = vunpack.c.l.b16 %v21
    %v80 = vunpack.c.l.b16 %v22
    %v81 = vunpack.c.l.b16 %v23
    %v82 = vunpack.c.l.b16 %v24
    %v83 = vunpack.c.l.b16 %v25
    %v84 = vunpack.c.l.b16 %v26
    %v85 = vunpack.c.l.b16 %v27
    %v86 = vunpack.c.l.b16 %v28
    %v87 = vunpack.c.l.b16 %v29
    %v88 = vunpack.c.l.b16 %v30
    %v89 = vunpack.c.l.b16 %v31
    %v90 = vpack.c.b16 %v75, %v74
    %v91 = vpack.c.b16 %v77, %v76
    %v92 = vpack.c.b16 %v79, %v78
    %v93 = vpack.c.b16 %v81, %v80
    %v94 = vpack.c.b16 %v83, %v82
    %v95 = vpack.c.b16 %v85, %v84
    %v96 = vpack.c.b16 %v87, %v86
    %v97 = vpack.c.b16 %v89, %v88
    %106 = vmatpush.bf16.msra.mxu0 %v97
    %107 = vmatpush.bf16.msra.mxu0 %v96
    %108 = vmatpush.bf16.msra.mxu0 %v95
    %109 = vmatpush.bf16.msra.mxu0 %v94
    %110 = vmatpush.bf16.msra.mxu0 %v93
    %111 = vmatpush.bf16.msra.mxu0 %v92
    %112 = vmatpush.bf16.msra.mxu0 %v91
    %113 = vmatpush.bf16.msra.mxu0 %v90
    %114 = vmatmul.bf16.gmra.mxu0 %v52
    %v115 = vpop.f32.mrf.mxu0
    %v116 = vadd.f32 0.0, %v115
    %v117 = vpop.f32.mrf.mxu0
    %v118 = vadd.f32 0.0, %v117
    %119 = vmatmul.bf16.gmra.mxu0 %v53
    %v120 = vpop.f32.mrf.mxu0
    %v121 = vadd.f32 0.0, %v120
    %v122 = vpop.f32.mrf.mxu0
    %v123 = vadd.f32 0.0, %v122
    %124 = vmatmul.bf16.gmra.mxu0 %v54
    %v125 = vpop.f32.mrf.mxu0
    %v126 = vadd.f32 0.0, %v125
    %v127 = vpop.f32.mrf.mxu0
    %128 = vdwg.mxu0
    %v129 = vadd.f32 %v116, %v32
    %v130 = vadd.f32 %v118, %v33
    %v131 = vadd.f32 %v121, %v34
    %v132 = vadd.f32 %v123, %v35
    %v133 = vadd.f32 %v126, %v36
    %v134 = vld [vmem:[%s2 + $0x28] sm:$0xff]
    %v135 = vld [vmem:[%s2 + $0x30] sm:$0xff]
    %v136 = vld [vmem:[%s2 + $0x38] sm:$0xff]
    %v137 = vld [vmem:[%s2 + $0x40] sm:$0xff]
    %v138 = vld [vmem:[%s2 + $0x48] sm:$0x3]
    %v139 = vld [vmem:[%s2 + $0x50] sm:$0xff]
    %vm140 = vcmask 261120
    %v141 = vsel %vm140, %v129, 0.0
    %142 = vadd.xlane.f32.xlu0 %v141
    %v143 = vpop.xlane.xlu0 %142
    %v144 = vsel %vm140, %v130, 0.0
    %145 = vadd.xlane.f32.xlu0 %v144
    %v146 = vpop.xlane.xlu0 %145
    %v147 = vsel %vm140, %v131, 0.0
    %148 = vadd.xlane.f32.xlu0 %v147
    %v149 = vpop.xlane.xlu0 %148
    %v150 = vsel %vm140, %v132, 0.0
    %151 = vadd.xlane.f32.xlu0 %v150
    %v152 = vpop.xlane.xlu0 %151
    %vm153 = vcmask 254976
    %v154 = vsel %vm153, %v133, 0.0
    %155 = vadd.xlane.f32.xlu0 %v154
    %v156 = vpop.xlane.xlu0 %155
    %v157 = vrcp.pop 32.0
    %v158 = vmul.f32 32.0, %v157
    %v159 = vsub.f32 1.0, %v158
    %v160 = vmul.f32 %v157, %v159
    %v161 = vadd.f32 %v157, %v160
    %vm162 = vweird.f32 %v157
    %v163 = vsel %vm162, %v157, %v161
    %v164 = vmul.f32 %v143, %v163
    %v165 = vmul.f32 %v146, %v163
    %v166 = vmul.f32 %v149, %v163
    %v167 = vmul.f32 %v152, %v163
    %v168 = vmul.f32 %v156, %v163
    %v169 = vsub.f32 %v129, %v164
    %v170 = vsub.f32 %v130, %v165
    %v171 = vsub.f32 %v131, %v166
    %v172 = vsub.f32 %v132, %v167
    %v173 = vsub.f32 %v133, %v168
    %v174 = vmul.f32 %v169, %v169
    %v175 = vmul.f32 %v170, %v170
    %v176 = vmul.f32 %v171, %v171
    %v177 = vmul.f32 %v172, %v172
    %v178 = vmul.f32 %v173, %v173
    %v179 = vsel %vm140, %v174, 0.0
    %180 = vadd.xlane.f32.xlu0 %v179
    %v181 = vpop.xlane.xlu0 %180
    %v182 = vsel %vm140, %v175, 0.0
    %183 = vadd.xlane.f32.xlu0 %v182
    %v184 = vpop.xlane.xlu0 %183
    %v185 = vsel %vm140, %v176, 0.0
    %186 = vadd.xlane.f32.xlu0 %v185
    %v187 = vpop.xlane.xlu0 %186
    %v188 = vsel %vm140, %v177, 0.0
    %189 = vadd.xlane.f32.xlu0 %v188
    %v190 = vpop.xlane.xlu0 %189
    %v191 = vsel %vm153, %v178, 0.0
    %192 = vadd.xlane.f32.xlu0 %v191
    %v193 = vpop.xlane.xlu0 %192
    %v194 = vmul.f32 %v181, %v163
    %v195 = vmul.f32 %v184, %v163
    %v196 = vmul.f32 %v187, %v163
    %v197 = vmul.f32 %v190, %v163
    %v198 = vmul.f32 %v193, %v163
    %v199 = vadd.f32 %v194, 1e-06
    %v200 = vadd.f32 %v195, 1e-06
    %v201 = vadd.f32 %v196, 1e-06
    %v202 = vadd.f32 %v197, 1e-06
    %v203 = vadd.f32 %v198, 1e-06
    %v204 = vrsqrt.pop %v199
    %v205 = vmul.f32 %v204, %v199
    %v206 = vmul.f32 %v205, %v204
    %v207 = vmul.f32 0.5, %v206
    %v208 = vsub.f32 1.5, %v207
    %v209 = vmul.f32 %v204, %v208
    %vm210 = vweird.f32 %v199
    %vm211 = vweird.f32 %v204
    %vm212 = vmor %vm210, %vm211
    %v213 = vsel %vm212, %v204, %v209
    %v214 = vrsqrt.pop %v200
    %v215 = vmul.f32 %v214, %v200
    %v216 = vmul.f32 %v215, %v214
    %v217 = vmul.f32 0.5, %v216
    %v218 = vsub.f32 1.5, %v217
    %v219 = vmul.f32 %v214, %v218
    %vm220 = vweird.f32 %v200
    %vm221 = vweird.f32 %v214
    %vm222 = vmor %vm220, %vm221
    %v223 = vsel %vm222, %v214, %v219
    %v224 = vrsqrt.pop %v201
    %v225 = vmul.f32 %v224, %v201
    %v226 = vmul.f32 %v225, %v224
    %v227 = vmul.f32 0.5, %v226
    %v228 = vsub.f32 1.5, %v227
    %v229 = vmul.f32 %v224, %v228
    %vm230 = vweird.f32 %v201
    %vm231 = vweird.f32 %v224
    %vm232 = vmor %vm230, %vm231
    %v233 = vsel %vm232, %v224, %v229
    %v234 = vrsqrt.pop %v202
    %v235 = vmul.f32 %v234, %v202
    %v236 = vmul.f32 %v235, %v234
    %v237 = vmul.f32 0.5, %v236
    %v238 = vsub.f32 1.5, %v237
    %v239 = vmul.f32 %v234, %v238
    %vm240 = vweird.f32 %v202
    %vm241 = vweird.f32 %v234
    %vm242 = vmor %vm240, %vm241
    %v243 = vsel %vm242, %v234, %v239
    %v244 = vrsqrt.pop %v203
    %v245 = vmul.f32 %v244, %v203
    %v246 = vmul.f32 %v245, %v244
    %v247 = vmul.f32 0.5, %v246
    %v248 = vsub.f32 1.5, %v247
    %v249 = vmul.f32 %v244, %v248
    %vm250 = vweird.f32 %v203
    %vm251 = vweird.f32 %v244
    %vm252 = vmor %vm250, %vm251
    %v253 = vsel %vm252, %v244, %v249
    %v254 = vmul.f32 %v169, %v213
    %v255 = vmul.f32 %v170, %v223
    %v256 = vmul.f32 %v171, %v233
    %v257 = vmul.f32 %v172, %v243
    %v258 = vmul.f32 %v173, %v253
    %v259 = vperm.slane %v139, 0
    %v260 = vmul.f32 %v254, %v259
    %v261 = vmul.f32 %v255, %v259
    %v262 = vmul.f32 %v256, %v259
    %v263 = vmul.f32 %v257, %v259
    %v264 = vmul.f32 %v258, %v259
    %v265 = vperm.slane %v139, 1
    %v266 = vadd.f32 %v260, %v265
    %v267 = vadd.f32 %v261, %v265
    %v268 = vadd.f32 %v262, %v265
    %v269 = vadd.f32 %v263, %v265
    %v270 = vadd.f32 %v264, %v265
    %v271 = vpack.c.bf16 %v267, %v266
    %v272 = vpack.c.bf16 %v269, %v268
    %v273 = vpack.c.bf16 %v270, %v270
    %v274 = vld [vmem:[%s1 + $0x40] sm:$0xf]
    %v275 = vld [vmem:[%s1 + $0x44] sm:$0xf]
    %v276 = vld [vmem:[%s1 + $0x48] sm:$0xf]
    %v277 = vld [vmem:[%s1 + $0x4c] sm:$0xf]
    %v278 = vperm.slane %v139, 2
    %v283 = vunpack.c.l.b16 %v274
    %v284 = vunpack.c.l.b16 %v275
    %v285 = vunpack.c.l.b16 %v276
    %v286 = vunpack.c.l.b16 %v277
    %v287 = vpack.c.b16 %v284, %v283
    %v288 = vpack.c.b16 %v286, %v285
    %v292 = vsel %vm140, %v271, 0
    %v295 = vsel %vm140, %v272, 0
    %v298 = vsel %vm140, %v273, 0
    %300 = vmatpush.bf16.msra.mxu0 0
    %301 = vmatpush.bf16.msra.mxu0 0
    %302 = vmatpush.bf16.msra.mxu0 0
    %303 = vmatpush.bf16.msra.mxu0 0
    %304 = vmatpush.bf16.msra.mxu0 0
    %305 = vmatpush.bf16.msra.mxu0 0
    %306 = vmatpush.bf16.msra.mxu0 %v288
    %307 = vmatpush.bf16.msra.mxu0 %v287
    %308 = vmatmul.bf16.gmra.mxu0 %v292
    %v309 = vpop.f32.mrf.mxu0
    %v310 = vadd.f32 %v278, %v309
    %v311 = vpop.f32.mrf.mxu0
    %v312 = vadd.f32 %v278, %v311
    %313 = vmatmul.bf16.gmra.mxu0 %v295
    %v314 = vpop.f32.mrf.mxu0
    %v315 = vadd.f32 %v278, %v314
    %v316 = vpop.f32.mrf.mxu0
    %v317 = vadd.f32 %v278, %v316
    %318 = vmatmul.bf16.gmra.mxu0 %v298
    %v319 = vpop.f32.mrf.mxu0
    %v320 = vadd.f32 %v278, %v319
    %v321 = vpop.f32.mrf.mxu0
    %322 = vdwg.mxu0
    %v323 = vpack.c.bf16 %v310, %v310
    %v324 = vpack.c.bf16 %v312, %v312
    %v325 = vpack.c.bf16 %v315, %v315
    %v326 = vpack.c.bf16 %v317, %v317
    %v327 = vpack.c.bf16 %v320, %v320
    %v333 = vunpack.c.l.b16 %v323
    %v334 = vunpack.c.l.b16 %v324
    %v335 = vunpack.c.l.b16 %v325
    %v336 = vunpack.c.l.b16 %v326
    %v337 = vunpack.c.l.b16 %v327
    %v338 = vpack.c.b16 %v334, %v333
    %v339 = vpack.c.b16 %v336, %v335
    %v340 = vpack.c.b16 %v337, %v337
    %341 = vrot.lane.b32.xlu0 %v338, 96
    %v342 = vpop.permute.xlu0 %341
    %343 = vrot.lane.b32.xlu0 %v339, 96
    %v344 = vpop.permute.xlu0 %343
    %345 = vrot.lane.b32.xlu0 %v340, 96
    %v346 = vpop.permute.xlu0 %345
    %vm347 = vcmask 64512
    %v349 = vsel %vm347, %v338, 0
    %v352 = vsel %vm347, %v339, 0
    %v355 = vsel %vm347, %v340, 0
    %v358 = vsel %vm347, %v342, 0
    %v361 = vsel %vm347, %v344, 0
    %v364 = vsel %vm347, %v346, 0
    %366 = vmatpush.bf16.xpose.msra.mxu0 0
    %367 = vmatpush.bf16.xpose.msra.mxu0 0
    %368 = vmatpush.bf16.xpose.msra.mxu0 0
    %369 = vmatpush.bf16.xpose.msra.mxu0 0
    %370 = vmatpush.bf16.xpose.msra.mxu0 0
    %371 = vmatpush.bf16.xpose.msra.mxu0 %v364
    %372 = vmatpush.bf16.xpose.msra.mxu0 %v361
    %373 = vmatpush.bf16.xpose.msra.mxu0 %v358
    %374 = vmatmul.bf16.gmra.mxu0 %v349
    %v375 = vpop.f32.mrf.mxu0
    %v376 = vadd.f32 %v134, %v375
    %v377 = vpop.f32.mrf.mxu0
    %v378 = vadd.f32 %v135, %v377
    %379 = vmatmul.bf16.gmra.mxu0 %v352
    %v380 = vpop.f32.mrf.mxu0
    %v381 = vadd.f32 %v136, %v380
    %v382 = vpop.f32.mrf.mxu0
    %v383 = vadd.f32 %v137, %v382
    %384 = vmatmul.bf16.gmra.mxu0 %v355
    %v385 = vpop.f32.mrf.mxu0
    %v386 = vadd.f32 %v138, %v385
    %v387 = vpop.f32.mrf.mxu0
    %388 = vdwg.mxu0
    %vm389 = vcmask 277504
    %v390 = vsel %vm389, %v376, -inf
    %391 = vmax.xlane.f32.xlu0 %v390
    %v392 = vpop.xlane.xlu0 %391
    %v393 = vsel %vm389, %v378, -inf
    %394 = vmax.xlane.f32.xlu0 %v393
    %v395 = vpop.xlane.xlu0 %394
    %v396 = vsel %vm389, %v381, -inf
    %397 = vmax.xlane.f32.xlu0 %v396
    %v398 = vpop.xlane.xlu0 %397
    %v399 = vsel %vm389, %v383, -inf
    %400 = vmax.xlane.f32.xlu0 %v399
    %v401 = vpop.xlane.xlu0 %400
    %vm402 = vcmask 271360
    %v403 = vsel %vm402, %v386, -inf
    %404 = vmax.xlane.f32.xlu0 %v403
    %v405 = vpop.xlane.xlu0 %404
    %v406 = vsub.f32 %v376, %v392
    %v407 = vsub.f32 %v378, %v395
    %v408 = vsub.f32 %v381, %v398
    %v409 = vsub.f32 %v383, %v401
    %v410 = vsub.f32 %v386, %v405
    %v411 = vmul.f32 %v406, 1.442695
    %v412 = vpow.pop %v411
    %v413 = vmul.f32 %v407, 1.442695
    %v414 = vpow.pop %v413
    %v415 = vmul.f32 %v408, 1.442695
    %v416 = vpow.pop %v415
    %v417 = vmul.f32 %v409, 1.442695
    %v418 = vpow.pop %v417
    %v419 = vmul.f32 %v410, 1.442695
    %v420 = vpow.pop %v419
    %v421 = vsel %vm389, %v412, 0.0
    %422 = vadd.xlane.f32.xlu0 %v421
    %v423 = vpop.xlane.xlu0 %422
    %v424 = vsel %vm389, %v414, 0.0
    %425 = vadd.xlane.f32.xlu0 %v424
    %v426 = vpop.xlane.xlu0 %425
    %v427 = vsel %vm389, %v416, 0.0
    %428 = vadd.xlane.f32.xlu0 %v427
    %v429 = vpop.xlane.xlu0 %428
    %v430 = vsel %vm389, %v418, 0.0
    %431 = vadd.xlane.f32.xlu0 %v430
    %v432 = vpop.xlane.xlu0 %431
    %v433 = vsel %vm402, %v420, 0.0
    %434 = vadd.xlane.f32.xlu0 %v433
    %v435 = vpop.xlane.xlu0 %434
    %v436 = vrcp.pop %v423
    %v437 = vrcp.pop %v426
    %v438 = vrcp.pop %v429
    %v439 = vrcp.pop %v432
    %v440 = vrcp.pop %v435
    %v441 = vmul.f32 %v412, %v436
    %v442 = vmul.f32 %v414, %v437
    %v443 = vmul.f32 %v416, %v438
    %v444 = vmul.f32 %v418, %v439
    %v445 = vmul.f32 %v420, %v440
    %v446 = vpack.c.bf16 %v442, %v441
    %v447 = vpack.c.bf16 %v444, %v443
    %v448 = vpack.c.bf16 %v445, %v445
    %449 = vrot.lane.b32.xlu0 %v338, 64
    %v450 = vpop.permute.xlu0 %449
    %451 = vrot.lane.b32.xlu0 %v339, 64
    %v452 = vpop.permute.xlu0 %451
    %453 = vrot.lane.b32.xlu0 %v340, 64
    %v454 = vpop.permute.xlu0 %453
    %v458 = vsel %vm389, %v446, 0
    %v461 = vsel %vm389, %v447, 0
    %v464 = vsel %vm389, %v448, 0
    %vm466 = vcmask 1040384
    %v468 = vsel %vm466, %v454, 0
    %470 = vmatpush.bf16.msra.mxu0 0
    %471 = vmatpush.bf16.msra.mxu0 0
    %472 = vmatpush.bf16.msra.mxu0 0
    %473 = vmatpush.bf16.msra.mxu0 0
    %474 = vmatpush.bf16.msra.mxu0 0
    %475 = vmatpush.bf16.msra.mxu0 %v468
    %476 = vmatpush.bf16.msra.mxu0 %v452
    %477 = vmatpush.bf16.msra.mxu0 %v450
    %478 = vmatmul.bf16.gmra.mxu0 %v458
    %v479 = vpop.f32.mrf.mxu0
    %v480 = vadd.f32 0.0, %v479
    %v481 = vpop.f32.mrf.mxu0
    %v482 = vadd.f32 0.0, %v481
    %483 = vmatmul.bf16.gmra.mxu0 %v461
    %v484 = vpop.f32.mrf.mxu0
    %v485 = vadd.f32 0.0, %v484
    %v486 = vpop.f32.mrf.mxu0
    %v487 = vadd.f32 0.0, %v486
    %488 = vmatmul.bf16.gmra.mxu0 %v464
    %v489 = vpop.f32.mrf.mxu0
    %v490 = vadd.f32 0.0, %v489
    %v491 = vpop.f32.mrf.mxu0
    %492 = vdwg.mxu0
    %493 = vrot.lane.b32.xlu0 %v338, 120
    %v494 = vpop.permute.xlu0 %493
    %495 = vrot.lane.b32.xlu0 %v339, 120
    %v496 = vpop.permute.xlu0 %495
    %497 = vrot.lane.b32.xlu0 %v340, 120
    %v498 = vpop.permute.xlu0 %497
    %499 = vrot.lane.b32.xlu0 %v338, 88
    %v500 = vpop.permute.xlu0 %499
    %501 = vrot.lane.b32.xlu0 %v339, 88
    %v502 = vpop.permute.xlu0 %501
    %503 = vrot.lane.b32.xlu0 %v340, 88
    %v504 = vpop.permute.xlu0 %503
    %v506 = vsel %vm347, %v494, 0
    %v509 = vsel %vm347, %v496, 0
    %v512 = vsel %vm347, %v498, 0
    %v515 = vsel %vm347, %v500, 0
    %v518 = vsel %vm347, %v502, 0
    %v521 = vsel %vm347, %v504, 0
    %523 = vmatpush.bf16.xpose.msra.mxu0 0
    %524 = vmatpush.bf16.xpose.msra.mxu0 0
    %525 = vmatpush.bf16.xpose.msra.mxu0 0
    %526 = vmatpush.bf16.xpose.msra.mxu0 0
    %527 = vmatpush.bf16.xpose.msra.mxu0 0
    %528 = vmatpush.bf16.xpose.msra.mxu0 %v521
    %529 = vmatpush.bf16.xpose.msra.mxu0 %v518
    %530 = vmatpush.bf16.xpose.msra.mxu0 %v515
    %531 = vmatmul.bf16.gmra.mxu0 %v506
    %v532 = vpop.f32.mrf.mxu0
    %v533 = vadd.f32 %v134, %v532
    %v534 = vpop.f32.mrf.mxu0
    %v535 = vadd.f32 %v135, %v534
    %536 = vmatmul.bf16.gmra.mxu0 %v509
    %v537 = vpop.f32.mrf.mxu0
    %v538 = vadd.f32 %v136, %v537
    %v539 = vpop.f32.mrf.mxu0
    %v540 = vadd.f32 %v137, %v539
    %541 = vmatmul.bf16.gmra.mxu0 %v512
    %v542 = vpop.f32.mrf.mxu0
    %v543 = vadd.f32 %v138, %v542
    %v544 = vpop.f32.mrf.mxu0
    %545 = vdwg.mxu0
    %v546 = vsel %vm389, %v533, -inf
    %547 = vmax.xlane.f32.xlu0 %v546
    %v548 = vpop.xlane.xlu0 %547
    %v549 = vsel %vm389, %v535, -inf
    %550 = vmax.xlane.f32.xlu0 %v549
    %v551 = vpop.xlane.xlu0 %550
    %v552 = vsel %vm389, %v538, -inf
    %553 = vmax.xlane.f32.xlu0 %v552
    %v554 = vpop.xlane.xlu0 %553
    %v555 = vsel %vm389, %v540, -inf
    %556 = vmax.xlane.f32.xlu0 %v555
    %v557 = vpop.xlane.xlu0 %556
    %v558 = vsel %vm402, %v543, -inf
    %559 = vmax.xlane.f32.xlu0 %v558
    %v560 = vpop.xlane.xlu0 %559
    %v561 = vsub.f32 %v533, %v548
    %v562 = vsub.f32 %v535, %v551
    %v563 = vsub.f32 %v538, %v554
    %v564 = vsub.f32 %v540, %v557
    %v565 = vsub.f32 %v543, %v560
    %v566 = vmul.f32 %v561, 1.442695
    %v567 = vpow.pop %v566
    %v568 = vmul.f32 %v562, 1.442695
    %v569 = vpow.pop %v568
    %v570 = vmul.f32 %v563, 1.442695
    %v571 = vpow.pop %v570
    %v572 = vmul.f32 %v564, 1.442695
    %v573 = vpow.pop %v572
    %v574 = vmul.f32 %v565, 1.442695
    %v575 = vpow.pop %v574
    %v576 = vsel %vm389, %v567, 0.0
    %577 = vadd.xlane.f32.xlu0 %v576
    %v578 = vpop.xlane.xlu0 %577
    %v579 = vsel %vm389, %v569, 0.0
    %580 = vadd.xlane.f32.xlu0 %v579
    %v581 = vpop.xlane.xlu0 %580
    %v582 = vsel %vm389, %v571, 0.0
    %583 = vadd.xlane.f32.xlu0 %v582
    %v584 = vpop.xlane.xlu0 %583
    %v585 = vsel %vm389, %v573, 0.0
    %586 = vadd.xlane.f32.xlu0 %v585
    %v587 = vpop.xlane.xlu0 %586
    %v588 = vsel %vm402, %v575, 0.0
    %589 = vadd.xlane.f32.xlu0 %v588
    %v590 = vpop.xlane.xlu0 %589
    %v591 = vrcp.pop %v578
    %v592 = vrcp.pop %v581
    %v593 = vrcp.pop %v584
    %v594 = vrcp.pop %v587
    %v595 = vrcp.pop %v590
    %v596 = vmul.f32 %v567, %v591
    %v597 = vmul.f32 %v569, %v592
    %v598 = vmul.f32 %v571, %v593
    %v599 = vmul.f32 %v573, %v594
    %v600 = vmul.f32 %v575, %v595
    %v601 = vpack.c.bf16 %v597, %v596
    %v602 = vpack.c.bf16 %v599, %v598
    %v603 = vpack.c.bf16 %v600, %v600
    %604 = vrot.lane.b32.xlu0 %v338, 56
    %v605 = vpop.permute.xlu0 %604
    %606 = vrot.lane.b32.xlu0 %v339, 56
    %v607 = vpop.permute.xlu0 %606
    %608 = vrot.lane.b32.xlu0 %v340, 56
    %v609 = vpop.permute.xlu0 %608
    %v613 = vsel %vm389, %v601, 0
    %v616 = vsel %vm389, %v602, 0
    %v619 = vsel %vm389, %v603, 0
    %v622 = vsel %vm466, %v609, 0
    %624 = vmatpush.bf16.msra.mxu0 0
    %625 = vmatpush.bf16.msra.mxu0 0
    %626 = vmatpush.bf16.msra.mxu0 0
    %627 = vmatpush.bf16.msra.mxu0 0
    %628 = vmatpush.bf16.msra.mxu0 0
    %629 = vmatpush.bf16.msra.mxu0 %v622
    %630 = vmatpush.bf16.msra.mxu0 %v607
    %631 = vmatpush.bf16.msra.mxu0 %v605
    %632 = vmatmul.bf16.gmra.mxu0 %v613
    %v633 = vpop.f32.mrf.mxu0
    %v634 = vadd.f32 0.0, %v633
    %v635 = vpop.f32.mrf.mxu0
    %v636 = vadd.f32 0.0, %v635
    %637 = vmatmul.bf16.gmra.mxu0 %v616
    %v638 = vpop.f32.mrf.mxu0
    %v639 = vadd.f32 0.0, %v638
    %v640 = vpop.f32.mrf.mxu0
    %v641 = vadd.f32 0.0, %v640
    %642 = vmatmul.bf16.gmra.mxu0 %v619
    %v643 = vpop.f32.mrf.mxu0
    %v644 = vadd.f32 0.0, %v643
    %v645 = vpop.f32.mrf.mxu0
    %646 = vdwg.mxu0
    %647 = vrot.lane.b32.xlu0 %v338, 112
    %v648 = vpop.permute.xlu0 %647
    %649 = vrot.lane.b32.xlu0 %v339, 112
    %v650 = vpop.permute.xlu0 %649
    %651 = vrot.lane.b32.xlu0 %v340, 112
    %v652 = vpop.permute.xlu0 %651
    %653 = vrot.lane.b32.xlu0 %v338, 80
    %v654 = vpop.permute.xlu0 %653
    %655 = vrot.lane.b32.xlu0 %v339, 80
    %v656 = vpop.permute.xlu0 %655
    %657 = vrot.lane.b32.xlu0 %v340, 80
    %v658 = vpop.permute.xlu0 %657
    %v660 = vsel %vm347, %v648, 0
    %v663 = vsel %vm347, %v650, 0
    %v666 = vsel %vm347, %v652, 0
    %v669 = vsel %vm347, %v654, 0
    %v672 = vsel %vm347, %v656, 0
    %v675 = vsel %vm347, %v658, 0
    %677 = vmatpush.bf16.xpose.msra.mxu0 0
    %678 = vmatpush.bf16.xpose.msra.mxu0 0
    %679 = vmatpush.bf16.xpose.msra.mxu0 0
    %680 = vmatpush.bf16.xpose.msra.mxu0 0
    %681 = vmatpush.bf16.xpose.msra.mxu0 0
    %682 = vmatpush.bf16.xpose.msra.mxu0 %v675
    %683 = vmatpush.bf16.xpose.msra.mxu0 %v672
    %684 = vmatpush.bf16.xpose.msra.mxu0 %v669
    %685 = vmatmul.bf16.gmra.mxu0 %v660
    %v686 = vpop.f32.mrf.mxu0
    %v687 = vadd.f32 %v134, %v686
    %v688 = vpop.f32.mrf.mxu0
    %v689 = vadd.f32 %v135, %v688
    %690 = vmatmul.bf16.gmra.mxu0 %v663
    %v691 = vpop.f32.mrf.mxu0
    %v692 = vadd.f32 %v136, %v691
    %v693 = vpop.f32.mrf.mxu0
    %v694 = vadd.f32 %v137, %v693
    %695 = vmatmul.bf16.gmra.mxu0 %v666
    %v696 = vpop.f32.mrf.mxu0
    %v697 = vadd.f32 %v138, %v696
    %v698 = vpop.f32.mrf.mxu0
    %699 = vdwg.mxu0
    %v700 = vsel %vm389, %v687, -inf
    %701 = vmax.xlane.f32.xlu0 %v700
    %v702 = vpop.xlane.xlu0 %701
    %v703 = vsel %vm389, %v689, -inf
    %704 = vmax.xlane.f32.xlu0 %v703
    %v705 = vpop.xlane.xlu0 %704
    %v706 = vsel %vm389, %v692, -inf
    %707 = vmax.xlane.f32.xlu0 %v706
    %v708 = vpop.xlane.xlu0 %707
    %v709 = vsel %vm389, %v694, -inf
    %710 = vmax.xlane.f32.xlu0 %v709
    %v711 = vpop.xlane.xlu0 %710
    %v712 = vsel %vm402, %v697, -inf
    %713 = vmax.xlane.f32.xlu0 %v712
    %v714 = vpop.xlane.xlu0 %713
    %v715 = vsub.f32 %v687, %v702
    %v716 = vsub.f32 %v689, %v705
    %v717 = vsub.f32 %v692, %v708
    %v718 = vsub.f32 %v694, %v711
    %v719 = vsub.f32 %v697, %v714
    %v720 = vmul.f32 %v715, 1.442695
    %v721 = vpow.pop %v720
    %v722 = vmul.f32 %v716, 1.442695
    %v723 = vpow.pop %v722
    %v724 = vmul.f32 %v717, 1.442695
    %v725 = vpow.pop %v724
    %v726 = vmul.f32 %v718, 1.442695
    %v727 = vpow.pop %v726
    %v728 = vmul.f32 %v719, 1.442695
    %v729 = vpow.pop %v728
    %v730 = vsel %vm389, %v721, 0.0
    %731 = vadd.xlane.f32.xlu0 %v730
    %v732 = vpop.xlane.xlu0 %731
    %v733 = vsel %vm389, %v723, 0.0
    %734 = vadd.xlane.f32.xlu0 %v733
    %v735 = vpop.xlane.xlu0 %734
    %v736 = vsel %vm389, %v725, 0.0
    %737 = vadd.xlane.f32.xlu0 %v736
    %v738 = vpop.xlane.xlu0 %737
    %v739 = vsel %vm389, %v727, 0.0
    %740 = vadd.xlane.f32.xlu0 %v739
    %v741 = vpop.xlane.xlu0 %740
    %v742 = vsel %vm402, %v729, 0.0
    %743 = vadd.xlane.f32.xlu0 %v742
    %v744 = vpop.xlane.xlu0 %743
    %v745 = vrcp.pop %v732
    %v746 = vrcp.pop %v735
    %v747 = vrcp.pop %v738
    %v748 = vrcp.pop %v741
    %v749 = vrcp.pop %v744
    %v750 = vmul.f32 %v721, %v745
    %v751 = vmul.f32 %v723, %v746
    %v752 = vmul.f32 %v725, %v747
    %v753 = vmul.f32 %v727, %v748
    %v754 = vmul.f32 %v729, %v749
    %v755 = vpack.c.bf16 %v751, %v750
    %v756 = vpack.c.bf16 %v753, %v752
    %v757 = vpack.c.bf16 %v754, %v754
    %758 = vrot.lane.b32.xlu0 %v338, 48
    %v759 = vpop.permute.xlu0 %758
    %760 = vrot.lane.b32.xlu0 %v339, 48
    %v761 = vpop.permute.xlu0 %760
    %762 = vrot.lane.b32.xlu0 %v340, 48
    %v763 = vpop.permute.xlu0 %762
    %v767 = vsel %vm389, %v755, 0
    %v770 = vsel %vm389, %v756, 0
    %v773 = vsel %vm389, %v757, 0
    %v776 = vsel %vm466, %v763, 0
    %778 = vmatpush.bf16.msra.mxu0 0
    %779 = vmatpush.bf16.msra.mxu0 0
    %780 = vmatpush.bf16.msra.mxu0 0
    %781 = vmatpush.bf16.msra.mxu0 0
    %782 = vmatpush.bf16.msra.mxu0 0
    %783 = vmatpush.bf16.msra.mxu0 %v776
    %784 = vmatpush.bf16.msra.mxu0 %v761
    %785 = vmatpush.bf16.msra.mxu0 %v759
    %786 = vmatmul.bf16.gmra.mxu0 %v767
    %v787 = vpop.f32.mrf.mxu0
    %v788 = vadd.f32 0.0, %v787
    %v789 = vpop.f32.mrf.mxu0
    %v790 = vadd.f32 0.0, %v789
    %791 = vmatmul.bf16.gmra.mxu0 %v770
    %v792 = vpop.f32.mrf.mxu0
    %v793 = vadd.f32 0.0, %v792
    %v794 = vpop.f32.mrf.mxu0
    %v795 = vadd.f32 0.0, %v794
    %796 = vmatmul.bf16.gmra.mxu0 %v773
    %v797 = vpop.f32.mrf.mxu0
    %v798 = vadd.f32 0.0, %v797
    %v799 = vpop.f32.mrf.mxu0
    %800 = vdwg.mxu0
    %801 = vrot.lane.b32.xlu0 %v338, 104
    %v802 = vpop.permute.xlu0 %801
    %803 = vrot.lane.b32.xlu0 %v339, 104
    %v804 = vpop.permute.xlu0 %803
    %805 = vrot.lane.b32.xlu0 %v340, 104
    %v806 = vpop.permute.xlu0 %805
    %807 = vrot.lane.b32.xlu0 %v338, 72
    %v808 = vpop.permute.xlu0 %807
    %809 = vrot.lane.b32.xlu0 %v339, 72
    %v810 = vpop.permute.xlu0 %809
    %811 = vrot.lane.b32.xlu0 %v340, 72
    %v812 = vpop.permute.xlu0 %811
    %v814 = vsel %vm347, %v802, 0
    %v817 = vsel %vm347, %v804, 0
    %v820 = vsel %vm347, %v806, 0
    %v823 = vsel %vm347, %v808, 0
    %v826 = vsel %vm347, %v810, 0
    %v829 = vsel %vm347, %v812, 0
    %831 = vmatpush.bf16.xpose.msra.mxu0 0
    %832 = vmatpush.bf16.xpose.msra.mxu0 0
    %833 = vmatpush.bf16.xpose.msra.mxu0 0
    %834 = vmatpush.bf16.xpose.msra.mxu0 0
    %835 = vmatpush.bf16.xpose.msra.mxu0 0
    %836 = vmatpush.bf16.xpose.msra.mxu0 %v829
    %837 = vmatpush.bf16.xpose.msra.mxu0 %v826
    %838 = vmatpush.bf16.xpose.msra.mxu0 %v823
    %839 = vmatmul.bf16.gmra.mxu0 %v814
    %v840 = vpop.f32.mrf.mxu0
    %v841 = vadd.f32 %v134, %v840
    %v842 = vpop.f32.mrf.mxu0
    %v843 = vadd.f32 %v135, %v842
    %844 = vmatmul.bf16.gmra.mxu0 %v817
    %v845 = vpop.f32.mrf.mxu0
    %v846 = vadd.f32 %v136, %v845
    %v847 = vpop.f32.mrf.mxu0
    %v848 = vadd.f32 %v137, %v847
    %849 = vmatmul.bf16.gmra.mxu0 %v820
    %v850 = vpop.f32.mrf.mxu0
    %v851 = vadd.f32 %v138, %v850
    %v852 = vpop.f32.mrf.mxu0
    %853 = vdwg.mxu0
    %v854 = vsel %vm389, %v841, -inf
    %855 = vmax.xlane.f32.xlu0 %v854
    %v856 = vpop.xlane.xlu0 %855
    %v857 = vsel %vm389, %v843, -inf
    %858 = vmax.xlane.f32.xlu0 %v857
    %v859 = vpop.xlane.xlu0 %858
    %v860 = vsel %vm389, %v846, -inf
    %861 = vmax.xlane.f32.xlu0 %v860
    %v862 = vpop.xlane.xlu0 %861
    %v863 = vsel %vm389, %v848, -inf
    %864 = vmax.xlane.f32.xlu0 %v863
    %v865 = vpop.xlane.xlu0 %864
    %v866 = vsel %vm402, %v851, -inf
    %867 = vmax.xlane.f32.xlu0 %v866
    %v868 = vpop.xlane.xlu0 %867
    %v869 = vsub.f32 %v841, %v856
    %v870 = vsub.f32 %v843, %v859
    %v871 = vsub.f32 %v846, %v862
    %v872 = vsub.f32 %v848, %v865
    %v873 = vsub.f32 %v851, %v868
    %v874 = vmul.f32 %v869, 1.442695
    %v875 = vpow.pop %v874
    %v876 = vmul.f32 %v870, 1.442695
    %v877 = vpow.pop %v876
    %v878 = vmul.f32 %v871, 1.442695
    %v879 = vpow.pop %v878
    %v880 = vmul.f32 %v872, 1.442695
    %v881 = vpow.pop %v880
    %v882 = vmul.f32 %v873, 1.442695
    %v883 = vpow.pop %v882
    %v884 = vsel %vm389, %v875, 0.0
    %885 = vadd.xlane.f32.xlu0 %v884
    %v886 = vpop.xlane.xlu0 %885
    %v887 = vsel %vm389, %v877, 0.0
    %888 = vadd.xlane.f32.xlu0 %v887
    %v889 = vpop.xlane.xlu0 %888
    %v890 = vsel %vm389, %v879, 0.0
    %891 = vadd.xlane.f32.xlu0 %v890
    %v892 = vpop.xlane.xlu0 %891
    %v893 = vsel %vm389, %v881, 0.0
    %894 = vadd.xlane.f32.xlu0 %v893
    %v895 = vpop.xlane.xlu0 %894
    %v896 = vsel %vm402, %v883, 0.0
    %897 = vadd.xlane.f32.xlu0 %v896
    %v898 = vpop.xlane.xlu0 %897
    %v899 = vrcp.pop %v886
    %v900 = vrcp.pop %v889
    %v901 = vrcp.pop %v892
    %v902 = vrcp.pop %v895
    %v903 = vrcp.pop %v898
    %v904 = vmul.f32 %v875, %v899
    %v905 = vmul.f32 %v877, %v900
    %v906 = vmul.f32 %v879, %v901
    %v907 = vmul.f32 %v881, %v902
    %v908 = vmul.f32 %v883, %v903
    %v909 = vpack.c.bf16 %v905, %v904
    %v910 = vpack.c.bf16 %v907, %v906
    %v911 = vpack.c.bf16 %v908, %v908
    %912 = vrot.lane.b32.xlu0 %v338, 40
    %v913 = vpop.permute.xlu0 %912
    %914 = vrot.lane.b32.xlu0 %v339, 40
    %v915 = vpop.permute.xlu0 %914
    %916 = vrot.lane.b32.xlu0 %v340, 40
    %v917 = vpop.permute.xlu0 %916
    %v921 = vsel %vm389, %v909, 0
    %v924 = vsel %vm389, %v910, 0
    %v927 = vsel %vm389, %v911, 0
    %v930 = vsel %vm466, %v917, 0
    %932 = vmatpush.bf16.msra.mxu0 0
    %933 = vmatpush.bf16.msra.mxu0 0
    %934 = vmatpush.bf16.msra.mxu0 0
    %935 = vmatpush.bf16.msra.mxu0 0
    %936 = vmatpush.bf16.msra.mxu0 0
    %937 = vmatpush.bf16.msra.mxu0 %v930
    %938 = vmatpush.bf16.msra.mxu0 %v915
    %939 = vmatpush.bf16.msra.mxu0 %v913
    %940 = vmatmul.bf16.gmra.mxu0 %v921
    %v941 = vpop.f32.mrf.mxu0
    %v942 = vadd.f32 0.0, %v941
    %v943 = vpop.f32.mrf.mxu0
    %v944 = vadd.f32 0.0, %v943
    %945 = vmatmul.bf16.gmra.mxu0 %v924
    %v946 = vpop.f32.mrf.mxu0
    %v947 = vadd.f32 0.0, %v946
    %v948 = vpop.f32.mrf.mxu0
    %v949 = vadd.f32 0.0, %v948
    %950 = vmatmul.bf16.gmra.mxu0 %v927
    %v951 = vpop.f32.mrf.mxu0
    %v952 = vadd.f32 0.0, %v951
    %v953 = vpop.f32.mrf.mxu0
    %954 = vdwg.mxu0
    %960 = vrot.lane.b32.xlu0 %v634, 8
    %v961 = vpop.permute.xlu0 %960
    %962 = vrot.lane.b32.xlu0 %v636, 8
    %v963 = vpop.permute.xlu0 %962
    %964 = vrot.lane.b32.xlu0 %v639, 8
    %v965 = vpop.permute.xlu0 %964
    %966 = vrot.lane.b32.xlu0 %v641, 8
    %v967 = vpop.permute.xlu0 %966
    %968 = vrot.lane.b32.xlu0 %v644, 8
    %v969 = vpop.permute.xlu0 %968
    %980 = vrot.lane.b32.xlu0 %v788, 16
    %v981 = vpop.permute.xlu0 %980
    %982 = vrot.lane.b32.xlu0 %v790, 16
    %v983 = vpop.permute.xlu0 %982
    %984 = vrot.lane.b32.xlu0 %v793, 16
    %v985 = vpop.permute.xlu0 %984
    %986 = vrot.lane.b32.xlu0 %v795, 16
    %v987 = vpop.permute.xlu0 %986
    %988 = vrot.lane.b32.xlu0 %v798, 16
    %v989 = vpop.permute.xlu0 %988
    %1000 = vrot.lane.b32.xlu0 %v942, 24
    %v1001 = vpop.permute.xlu0 %1000
    %1002 = vrot.lane.b32.xlu0 %v944, 24
    %v1003 = vpop.permute.xlu0 %1002
    %1004 = vrot.lane.b32.xlu0 %v947, 24
    %v1005 = vpop.permute.xlu0 %1004
    %1006 = vrot.lane.b32.xlu0 %v949, 24
    %v1007 = vpop.permute.xlu0 %1006
    %1008 = vrot.lane.b32.xlu0 %v952, 24
    %v1009 = vpop.permute.xlu0 %1008
    %v1015 = vsel %vm347, %v480, %v961
    %v1016 = vsel %vm347, %v482, %v963
    %v1017 = vsel %vm347, %v485, %v965
    %v1018 = vsel %vm347, %v487, %v967
    %v1019 = vsel %vm347, %v490, %v969
    %vm1020 = vcmask 130048
    %v1021 = vsel %vm1020, %v1015, %v981
    %v1022 = vsel %vm1020, %v1016, %v983
    %v1023 = vsel %vm1020, %v1017, %v985
    %v1024 = vsel %vm1020, %v1018, %v987
    %v1025 = vsel %vm1020, %v1019, %v989
    %vm1026 = vcmask 195584
    %v1027 = vsel %vm1026, %v1021, %v1001
    %v1028 = vsel %vm1026, %v1022, %v1003
    %v1029 = vsel %vm1026, %v1023, %v1005
    %v1030 = vsel %vm1026, %v1024, %v1007
    %v1031 = vsel %vm1026, %v1025, %v1009
    %v1032 = vpack.c.bf16 %v1028, %v1027
    %v1033 = vpack.c.bf16 %v1030, %v1029
    %v1034 = vpack.c.bf16 %v1031, %v1031
    %v1035 = vld [vmem:[%s1 + $0x50] sm:$0xf]
    %v1036 = vld [vmem:[%s1 + $0x54] sm:$0xf]
    %v1037 = vld [vmem:[%s1 + $0x58] sm:$0xf]
    %v1038 = vld [vmem:[%s1 + $0x5c] sm:$0xf]
    %v1043 = vunpack.c.l.b16 %v1035
    %v1044 = vunpack.c.l.b16 %v1036
    %v1045 = vunpack.c.l.b16 %v1037
    %v1046 = vunpack.c.l.b16 %v1038
    %v1047 = vpack.c.b16 %v1044, %v1043
    %v1048 = vpack.c.b16 %v1046, %v1045
    %v1052 = vsel %vm140, %v1032, 0
    %v1055 = vsel %vm140, %v1033, 0
    %v1058 = vsel %vm140, %v1034, 0
    %1060 = vmatpush.bf16.msra.mxu0 0
    %1061 = vmatpush.bf16.msra.mxu0 0
    %1062 = vmatpush.bf16.msra.mxu0 0
    %1063 = vmatpush.bf16.msra.mxu0 0
    %1064 = vmatpush.bf16.msra.mxu0 0
    %1065 = vmatpush.bf16.msra.mxu0 0
    %1066 = vmatpush.bf16.msra.mxu0 %v1048
    %1067 = vmatpush.bf16.msra.mxu0 %v1047
    %1068 = vmatmul.bf16.gmra.mxu0 %v1052
    %v1069 = vpop.f32.mrf.mxu0
    %v1070 = vadd.f32 0.0, %v1069
    %v1071 = vpop.f32.mrf.mxu0
    %v1072 = vadd.f32 0.0, %v1071
    %1073 = vmatmul.bf16.gmra.mxu0 %v1055
    %v1074 = vpop.f32.mrf.mxu0
    %v1075 = vadd.f32 0.0, %v1074
    %v1076 = vpop.f32.mrf.mxu0
    %v1077 = vadd.f32 0.0, %v1076
    %1078 = vmatmul.bf16.gmra.mxu0 %v1058
    %v1079 = vpop.f32.mrf.mxu0
    %v1080 = vadd.f32 0.0, %v1079
    %v1081 = vpop.f32.mrf.mxu0
    %1082 = vdwg.mxu0
    %v1083 = vadd.f32 %v129, %v1070
    %v1084 = vadd.f32 %v130, %v1072
    %v1085 = vadd.f32 %v131, %v1075
    %v1086 = vadd.f32 %v132, %v1077
    %v1087 = vadd.f32 %v133, %v1080
    %v1088 = vperm.slane %v139, 3
    %v1089 = vadd.f32 %v1083, %v1088
    %v1090 = vadd.f32 %v1084, %v1088
    %v1091 = vadd.f32 %v1085, %v1088
    %v1092 = vadd.f32 %v1086, %v1088
    %v1093 = vadd.f32 %v1087, %v1088
    %v1094 = vsel %vm140, %v1089, 0.0
    %1095 = vadd.xlane.f32.xlu0 %v1094
    %v1096 = vpop.xlane.xlu0 %1095
    %v1097 = vsel %vm140, %v1090, 0.0
    %1098 = vadd.xlane.f32.xlu0 %v1097
    %v1099 = vpop.xlane.xlu0 %1098
    %v1100 = vsel %vm140, %v1091, 0.0
    %1101 = vadd.xlane.f32.xlu0 %v1100
    %v1102 = vpop.xlane.xlu0 %1101
    %v1103 = vsel %vm140, %v1092, 0.0
    %1104 = vadd.xlane.f32.xlu0 %v1103
    %v1105 = vpop.xlane.xlu0 %1104
    %v1106 = vsel %vm153, %v1093, 0.0
    %1107 = vadd.xlane.f32.xlu0 %v1106
    %v1108 = vpop.xlane.xlu0 %1107
    %v1109 = vmul.f32 %v1096, %v163
    %v1110 = vmul.f32 %v1099, %v163
    %v1111 = vmul.f32 %v1102, %v163
    %v1112 = vmul.f32 %v1105, %v163
    %v1113 = vmul.f32 %v1108, %v163
    %v1114 = vsub.f32 %v1089, %v1109
    %v1115 = vsub.f32 %v1090, %v1110
    %v1116 = vsub.f32 %v1091, %v1111
    %v1117 = vsub.f32 %v1092, %v1112
    %v1118 = vsub.f32 %v1093, %v1113
    %v1119 = vmul.f32 %v1114, %v1114
    %v1120 = vmul.f32 %v1115, %v1115
    %v1121 = vmul.f32 %v1116, %v1116
    %v1122 = vmul.f32 %v1117, %v1117
    %v1123 = vmul.f32 %v1118, %v1118
    %v1124 = vsel %vm140, %v1119, 0.0
    %1125 = vadd.xlane.f32.xlu0 %v1124
    %v1126 = vpop.xlane.xlu0 %1125
    %v1127 = vsel %vm140, %v1120, 0.0
    %1128 = vadd.xlane.f32.xlu0 %v1127
    %v1129 = vpop.xlane.xlu0 %1128
    %v1130 = vsel %vm140, %v1121, 0.0
    %1131 = vadd.xlane.f32.xlu0 %v1130
    %v1132 = vpop.xlane.xlu0 %1131
    %v1133 = vsel %vm140, %v1122, 0.0
    %1134 = vadd.xlane.f32.xlu0 %v1133
    %v1135 = vpop.xlane.xlu0 %1134
    %v1136 = vsel %vm153, %v1123, 0.0
    %1137 = vadd.xlane.f32.xlu0 %v1136
    %v1138 = vpop.xlane.xlu0 %1137
    %v1139 = vmul.f32 %v1126, %v163
    %v1140 = vmul.f32 %v1129, %v163
    %v1141 = vmul.f32 %v1132, %v163
    %v1142 = vmul.f32 %v1135, %v163
    %v1143 = vmul.f32 %v1138, %v163
    %v1144 = vadd.f32 %v1139, 1e-06
    %v1145 = vadd.f32 %v1140, 1e-06
    %v1146 = vadd.f32 %v1141, 1e-06
    %v1147 = vadd.f32 %v1142, 1e-06
    %v1148 = vadd.f32 %v1143, 1e-06
    %v1149 = vrsqrt.pop %v1144
    %v1150 = vmul.f32 %v1149, %v1144
    %v1151 = vmul.f32 %v1150, %v1149
    %v1152 = vmul.f32 0.5, %v1151
    %v1153 = vsub.f32 1.5, %v1152
    %v1154 = vmul.f32 %v1149, %v1153
    %vm1155 = vweird.f32 %v1144
    %vm1156 = vweird.f32 %v1149
    %vm1157 = vmor %vm1155, %vm1156
    %v1158 = vsel %vm1157, %v1149, %v1154
    %v1159 = vrsqrt.pop %v1145
    %v1160 = vmul.f32 %v1159, %v1145
    %v1161 = vmul.f32 %v1160, %v1159
    %v1162 = vmul.f32 0.5, %v1161
    %v1163 = vsub.f32 1.5, %v1162
    %v1164 = vmul.f32 %v1159, %v1163
    %vm1165 = vweird.f32 %v1145
    %vm1166 = vweird.f32 %v1159
    %vm1167 = vmor %vm1165, %vm1166
    %v1168 = vsel %vm1167, %v1159, %v1164
    %v1169 = vrsqrt.pop %v1146
    %v1170 = vmul.f32 %v1169, %v1146
    %v1171 = vmul.f32 %v1170, %v1169
    %v1172 = vmul.f32 0.5, %v1171
    %v1173 = vsub.f32 1.5, %v1172
    %v1174 = vmul.f32 %v1169, %v1173
    %vm1175 = vweird.f32 %v1146
    %vm1176 = vweird.f32 %v1169
    %vm1177 = vmor %vm1175, %vm1176
    %v1178 = vsel %vm1177, %v1169, %v1174
    %v1179 = vrsqrt.pop %v1147
    %v1180 = vmul.f32 %v1179, %v1147
    %v1181 = vmul.f32 %v1180, %v1179
    %v1182 = vmul.f32 0.5, %v1181
    %v1183 = vsub.f32 1.5, %v1182
    %v1184 = vmul.f32 %v1179, %v1183
    %vm1185 = vweird.f32 %v1147
    %vm1186 = vweird.f32 %v1179
    %vm1187 = vmor %vm1185, %vm1186
    %v1188 = vsel %vm1187, %v1179, %v1184
    %v1189 = vrsqrt.pop %v1148
    %v1190 = vmul.f32 %v1189, %v1148
    %v1191 = vmul.f32 %v1190, %v1189
    %v1192 = vmul.f32 0.5, %v1191
    %v1193 = vsub.f32 1.5, %v1192
    %v1194 = vmul.f32 %v1189, %v1193
    %vm1195 = vweird.f32 %v1148
    %vm1196 = vweird.f32 %v1189
    %vm1197 = vmor %vm1195, %vm1196
    %v1198 = vsel %vm1197, %v1189, %v1194
    %v1199 = vmul.f32 %v1114, %v1158
    %v1200 = vmul.f32 %v1115, %v1168
    %v1201 = vmul.f32 %v1116, %v1178
    %v1202 = vmul.f32 %v1117, %v1188
    %v1203 = vmul.f32 %v1118, %v1198
    %v1204 = vperm.slane %v139, 4
    %v1205 = vmul.f32 %v1199, %v1204
    %v1206 = vmul.f32 %v1200, %v1204
    %v1207 = vmul.f32 %v1201, %v1204
    %v1208 = vmul.f32 %v1202, %v1204
    %v1209 = vmul.f32 %v1203, %v1204
    %v1210 = vperm.slane %v139, 5
    %v1211 = vadd.f32 %v1205, %v1210
    %v1212 = vadd.f32 %v1206, %v1210
    %v1213 = vadd.f32 %v1207, %v1210
    %v1214 = vadd.f32 %v1208, %v1210
    %v1215 = vadd.f32 %v1209, %v1210
    %v1216 = vpack.c.bf16 %v1212, %v1211
    %v1217 = vpack.c.bf16 %v1214, %v1213
    %v1218 = vpack.c.bf16 %v1215, %v1215
    %v1219 = vld [vmem:[%s1 + $0x60] sm:$0xf]
    %v1220 = vld [vmem:[%s1 + $0x64] sm:$0xf]
    %v1221 = vld [vmem:[%s1 + $0x68] sm:$0xf]
    %v1222 = vld [vmem:[%s1 + $0x6c] sm:$0xf]
    %v1223 = vperm.slane %v139, 6
    %v1228 = vunpack.c.l.b16 %v1219
    %v1229 = vunpack.c.l.b16 %v1220
    %v1230 = vunpack.c.l.b16 %v1221
    %v1231 = vunpack.c.l.b16 %v1222
    %v1232 = vpack.c.b16 %v1229, %v1228
    %v1233 = vpack.c.b16 %v1231, %v1230
    %v1237 = vsel %vm140, %v1216, 0
    %v1240 = vsel %vm140, %v1217, 0
    %v1243 = vsel %vm140, %v1218, 0
    %1245 = vmatpush.bf16.msra.mxu0 0
    %1246 = vmatpush.bf16.msra.mxu0 0
    %1247 = vmatpush.bf16.msra.mxu0 0
    %1248 = vmatpush.bf16.msra.mxu0 0
    %1249 = vmatpush.bf16.msra.mxu0 0
    %1250 = vmatpush.bf16.msra.mxu0 0
    %1251 = vmatpush.bf16.msra.mxu0 %v1233
    %1252 = vmatpush.bf16.msra.mxu0 %v1232
    %1253 = vmatmul.bf16.gmra.mxu0 %v1237
    %v1254 = vpop.f32.mrf.mxu0
    %v1255 = vadd.f32 %v1223, %v1254
    %v1256 = vpop.f32.mrf.mxu0
    %v1257 = vadd.f32 %v1223, %v1256
    %1258 = vmatmul.bf16.gmra.mxu0 %v1240
    %v1259 = vpop.f32.mrf.mxu0
    %v1260 = vadd.f32 %v1223, %v1259
    %v1261 = vpop.f32.mrf.mxu0
    %v1262 = vadd.f32 %v1223, %v1261
    %1263 = vmatmul.bf16.gmra.mxu0 %v1243
    %v1264 = vpop.f32.mrf.mxu0
    %v1265 = vadd.f32 %v1223, %v1264
    %v1266 = vpop.f32.mrf.mxu0
    %1267 = vdwg.mxu0
    %v1268 = vmul.f32 %v1255, 0.5
    %v1269 = vmul.f32 %v1257, 0.5
    %v1270 = vmul.f32 %v1260, 0.5
    %v1271 = vmul.f32 %v1262, 0.5
    %v1272 = vmul.f32 %v1265, 0.5
    %v1273 = vmul.f32 %v1255, 0.70710677
    %v1274 = vmul.f32 %v1257, 0.70710677
    %v1275 = vmul.f32 %v1260, 0.70710677
    %v1276 = vmul.f32 %v1262, 0.70710677
    %v1277 = vmul.f32 %v1265, 0.70710677
    %v1278 = vmul.f32 %v1273, %v1273
    %v1279 = vmin.f32 16.0, %v1278
    %v1280 = vmul.f32 %v1279, 2.1237322e-06
    %v1281 = vadd.f32 %v1280, 0.00028619796
    %v1282 = vmul.f32 %v1279, %v1281
    %v1283 = vadd.f32 %v1282, 0.0036580483
    %v1284 = vmul.f32 %v1279, %v1283
    %v1285 = vadd.f32 %v1284, 0.05243302
    %v1286 = vmul.f32 %v1279, %v1285
    %v1287 = vadd.f32 %v1286, 0.18741608
    %v1288 = vmul.f32 %v1279, %v1287
    %v1289 = vadd.f32 %v1288, 1.1283791
    %v1290 = vmul.f32 %v1273, %v1289
    %v1291 = vmul.f32 %v1279, 3.8918573e-05
    %v1292 = vadd.f32 %v1291, 0.001143296
    %v1293 = vmul.f32 %v1279, %v1292
    %v1294 = vadd.f32 %v1293, 0.014752088
    %v1295 = vmul.f32 %v1279, %v1294
    %v1296 = vadd.f32 %v1295, 0.112945676
    %v1297 = vmul.f32 %v1279, %v1296
    %v1298 = vadd.f32 %v1297, 0.4994258
    %v1299 = vmul.f32 %v1279, %v1298
    %v1300 = vadd.f32 %v1299, 1.0
    %v1301 = vrcp.pop %v1300
    %v1302 = vmul.f32 %v1300, %v1301
    %v1303 = vsub.f32 1.0, %v1302
    %v1304 = vmul.f32 %v1301, %v1303
    %v1305 = vadd.f32 %v1301, %v1304
    %vm1306 = vweird.f32 %v1300
    %vm1307 = vweird.f32 %v1301
    %vm1308 = vmor %vm1306, %vm1307
    %v1309 = vsel %vm1308, %v1301, %v1305
    %v1310 = vand.u32 2147483647, %v1300
    %vm1311 = vcmp.eq.f32.partialorder %v1310, 8.507059e+37
    %v1312 = vand.u32 %v1300, 2147483648
    %v1313 = vor.u32 1.1754944e-38, %v1312
    %v1314 = vsel %vm1311, %v1313, %v1309
    %v1315 = vmul.f32 %v1290, %v1314
    %v1316 = vmin.f32 %v1315, 1.0
    %v1317 = vmax.f32 %v1316, -1.0
    %v1318 = vmul.f32 %v1274, %v1274
    %v1319 = vmin.f32 16.0, %v1318
    %v1320 = vmul.f32 %v1319, 2.1237322e-06
    %v1321 = vadd.f32 %v1320, 0.00028619796
    %v1322 = vmul.f32 %v1319, %v1321
    %v1323 = vadd.f32 %v1322, 0.0036580483
    %v1324 = vmul.f32 %v1319, %v1323
    %v1325 = vadd.f32 %v1324, 0.05243302
    %v1326 = vmul.f32 %v1319, %v1325
    %v1327 = vadd.f32 %v1326, 0.18741608
    %v1328 = vmul.f32 %v1319, %v1327
    %v1329 = vadd.f32 %v1328, 1.1283791
    %v1330 = vmul.f32 %v1274, %v1329
    %v1331 = vmul.f32 %v1319, 3.8918573e-05
    %v1332 = vadd.f32 %v1331, 0.001143296
    %v1333 = vmul.f32 %v1319, %v1332
    %v1334 = vadd.f32 %v1333, 0.014752088
    %v1335 = vmul.f32 %v1319, %v1334
    %v1336 = vadd.f32 %v1335, 0.112945676
    %v1337 = vmul.f32 %v1319, %v1336
    %v1338 = vadd.f32 %v1337, 0.4994258
    %v1339 = vmul.f32 %v1319, %v1338
    %v1340 = vadd.f32 %v1339, 1.0
    %v1341 = vrcp.pop %v1340
    %v1342 = vmul.f32 %v1340, %v1341
    %v1343 = vsub.f32 1.0, %v1342
    %v1344 = vmul.f32 %v1341, %v1343
    %v1345 = vadd.f32 %v1341, %v1344
    %vm1346 = vweird.f32 %v1340
    %vm1347 = vweird.f32 %v1341
    %vm1348 = vmor %vm1346, %vm1347
    %v1349 = vsel %vm1348, %v1341, %v1345
    %v1350 = vand.u32 2147483647, %v1340
    %vm1351 = vcmp.eq.f32.partialorder %v1350, 8.507059e+37
    %v1352 = vand.u32 %v1340, 2147483648
    %v1353 = vor.u32 1.1754944e-38, %v1352
    %v1354 = vsel %vm1351, %v1353, %v1349
    %v1355 = vmul.f32 %v1330, %v1354
    %v1356 = vmin.f32 %v1355, 1.0
    %v1357 = vmax.f32 %v1356, -1.0
    %v1358 = vmul.f32 %v1275, %v1275
    %v1359 = vmin.f32 16.0, %v1358
    %v1360 = vmul.f32 %v1359, 2.1237322e-06
    %v1361 = vadd.f32 %v1360, 0.00028619796
    %v1362 = vmul.f32 %v1359, %v1361
    %v1363 = vadd.f32 %v1362, 0.0036580483
    %v1364 = vmul.f32 %v1359, %v1363
    %v1365 = vadd.f32 %v1364, 0.05243302
    %v1366 = vmul.f32 %v1359, %v1365
    %v1367 = vadd.f32 %v1366, 0.18741608
    %v1368 = vmul.f32 %v1359, %v1367
    %v1369 = vadd.f32 %v1368, 1.1283791
    %v1370 = vmul.f32 %v1275, %v1369
    %v1371 = vmul.f32 %v1359, 3.8918573e-05
    %v1372 = vadd.f32 %v1371, 0.001143296
    %v1373 = vmul.f32 %v1359, %v1372
    %v1374 = vadd.f32 %v1373, 0.014752088
    %v1375 = vmul.f32 %v1359, %v1374
    %v1376 = vadd.f32 %v1375, 0.112945676
    %v1377 = vmul.f32 %v1359, %v1376
    %v1378 = vadd.f32 %v1377, 0.4994258
    %v1379 = vmul.f32 %v1359, %v1378
    %v1380 = vadd.f32 %v1379, 1.0
    %v1381 = vrcp.pop %v1380
    %v1382 = vmul.f32 %v1380, %v1381
    %v1383 = vsub.f32 1.0, %v1382
    %v1384 = vmul.f32 %v1381, %v1383
    %v1385 = vadd.f32 %v1381, %v1384
    %vm1386 = vweird.f32 %v1380
    %vm1387 = vweird.f32 %v1381
    %vm1388 = vmor %vm1386, %vm1387
    %v1389 = vsel %vm1388, %v1381, %v1385
    %v1390 = vand.u32 2147483647, %v1380
    %vm1391 = vcmp.eq.f32.partialorder %v1390, 8.507059e+37
    %v1392 = vand.u32 %v1380, 2147483648
    %v1393 = vor.u32 1.1754944e-38, %v1392
    %v1394 = vsel %vm1391, %v1393, %v1389
    %v1395 = vmul.f32 %v1370, %v1394
    %v1396 = vmin.f32 %v1395, 1.0
    %v1397 = vmax.f32 %v1396, -1.0
    %v1398 = vmul.f32 %v1276, %v1276
    %v1399 = vmin.f32 16.0, %v1398
    %v1400 = vmul.f32 %v1399, 2.1237322e-06
    %v1401 = vadd.f32 %v1400, 0.00028619796
    %v1402 = vmul.f32 %v1399, %v1401
    %v1403 = vadd.f32 %v1402, 0.0036580483
    %v1404 = vmul.f32 %v1399, %v1403
    %v1405 = vadd.f32 %v1404, 0.05243302
    %v1406 = vmul.f32 %v1399, %v1405
    %v1407 = vadd.f32 %v1406, 0.18741608
    %v1408 = vmul.f32 %v1399, %v1407
    %v1409 = vadd.f32 %v1408, 1.1283791
    %v1410 = vmul.f32 %v1276, %v1409
    %v1411 = vmul.f32 %v1399, 3.8918573e-05
    %v1412 = vadd.f32 %v1411, 0.001143296
    %v1413 = vmul.f32 %v1399, %v1412
    %v1414 = vadd.f32 %v1413, 0.014752088
    %v1415 = vmul.f32 %v1399, %v1414
    %v1416 = vadd.f32 %v1415, 0.112945676
    %v1417 = vmul.f32 %v1399, %v1416
    %v1418 = vadd.f32 %v1417, 0.4994258
    %v1419 = vmul.f32 %v1399, %v1418
    %v1420 = vadd.f32 %v1419, 1.0
    %v1421 = vrcp.pop %v1420
    %v1422 = vmul.f32 %v1420, %v1421
    %v1423 = vsub.f32 1.0, %v1422
    %v1424 = vmul.f32 %v1421, %v1423
    %v1425 = vadd.f32 %v1421, %v1424
    %vm1426 = vweird.f32 %v1420
    %vm1427 = vweird.f32 %v1421
    %vm1428 = vmor %vm1426, %vm1427
    %v1429 = vsel %vm1428, %v1421, %v1425
    %v1430 = vand.u32 2147483647, %v1420
    %vm1431 = vcmp.eq.f32.partialorder %v1430, 8.507059e+37
    %v1432 = vand.u32 %v1420, 2147483648
    %v1433 = vor.u32 1.1754944e-38, %v1432
    %v1434 = vsel %vm1431, %v1433, %v1429
    %v1435 = vmul.f32 %v1410, %v1434
    %v1436 = vmin.f32 %v1435, 1.0
    %v1437 = vmax.f32 %v1436, -1.0
    %v1438 = vmul.f32 %v1277, %v1277
    %v1439 = vmin.f32 16.0, %v1438
    %v1440 = vmul.f32 %v1439, 2.1237322e-06
    %v1441 = vadd.f32 %v1440, 0.00028619796
    %v1442 = vmul.f32 %v1439, %v1441
    %v1443 = vadd.f32 %v1442, 0.0036580483
    %v1444 = vmul.f32 %v1439, %v1443
    %v1445 = vadd.f32 %v1444, 0.05243302
    %v1446 = vmul.f32 %v1439, %v1445
    %v1447 = vadd.f32 %v1446, 0.18741608
    %v1448 = vmul.f32 %v1439, %v1447
    %v1449 = vadd.f32 %v1448, 1.1283791
    %v1450 = vmul.f32 %v1277, %v1449
    %v1451 = vmul.f32 %v1439, 3.8918573e-05
    %v1452 = vadd.f32 %v1451, 0.001143296
    %v1453 = vmul.f32 %v1439, %v1452
    %v1454 = vadd.f32 %v1453, 0.014752088
    %v1455 = vmul.f32 %v1439, %v1454
    %v1456 = vadd.f32 %v1455, 0.112945676
    %v1457 = vmul.f32 %v1439, %v1456
    %v1458 = vadd.f32 %v1457, 0.4994258
    %v1459 = vmul.f32 %v1439, %v1458
    %v1460 = vadd.f32 %v1459, 1.0
    %v1461 = vrcp.pop %v1460
    %v1462 = vmul.f32 %v1460, %v1461
    %v1463 = vsub.f32 1.0, %v1462
    %v1464 = vmul.f32 %v1461, %v1463
    %v1465 = vadd.f32 %v1461, %v1464
    %vm1466 = vweird.f32 %v1460
    %vm1467 = vweird.f32 %v1461
    %vm1468 = vmor %vm1466, %vm1467
    %v1469 = vsel %vm1468, %v1461, %v1465
    %v1470 = vand.u32 2147483647, %v1460
    %vm1471 = vcmp.eq.f32.partialorder %v1470, 8.507059e+37
    %v1472 = vand.u32 %v1460, 2147483648
    %v1473 = vor.u32 1.1754944e-38, %v1472
    %v1474 = vsel %vm1471, %v1473, %v1469
    %v1475 = vmul.f32 %v1450, %v1474
    %v1476 = vmin.f32 %v1475, 1.0
    %v1477 = vmax.f32 %v1476, -1.0
    %v1478 = vadd.f32 %v1317, 1.0
    %v1479 = vadd.f32 %v1357, 1.0
    %v1480 = vadd.f32 %v1397, 1.0
    %v1481 = vadd.f32 %v1437, 1.0
    %v1482 = vadd.f32 %v1477, 1.0
    %v1483 = vmul.f32 %v1268, %v1478
    %v1484 = vmul.f32 %v1269, %v1479
    %v1485 = vmul.f32 %v1270, %v1480
    %v1486 = vmul.f32 %v1271, %v1481
    %v1487 = vmul.f32 %v1272, %v1482
    %v1488 = vpack.c.bf16 %v1484, %v1483
    %v1489 = vpack.c.bf16 %v1486, %v1485
    %v1490 = vpack.c.bf16 %v1487, %v1487
    %v1491 = vld [vmem:[%s1 + $0x70] sm:$0xf]
    %v1492 = vld [vmem:[%s1 + $0x74] sm:$0xf]
    %v1493 = vld [vmem:[%s1 + $0x78] sm:$0xf]
    %v1494 = vld [vmem:[%s1 + $0x7c] sm:$0xf]
    %v1495 = vld [vmem:[%s1 + $0x80] sm:$0xf]
    %v1496 = vld [vmem:[%s1 + $0x84] sm:$0xf]
    %v1497 = vld [vmem:[%s1 + $0x88] sm:$0xf]
    %v1498 = vld [vmem:[%s1 + $0x8c] sm:$0xf]
    %v1499 = vld [vmem:[%s1 + $0x90] sm:$0xf]
    %v1500 = vld [vmem:[%s1 + $0x94] sm:$0xf]
    %v1501 = vld [vmem:[%s1 + $0x98] sm:$0xf]
    %v1502 = vld [vmem:[%s1 + $0x9c] sm:$0xf]
    %v1503 = vld [vmem:[%s1 + $0xa0] sm:$0xf]
    %v1504 = vld [vmem:[%s1 + $0xa4] sm:$0xf]
    %v1505 = vld [vmem:[%s1 + $0xa8] sm:$0xf]
    %v1506 = vld [vmem:[%s1 + $0xac] sm:$0xf]
    %v1523 = vunpack.c.l.b16 %v1491
    %v1524 = vunpack.c.l.b16 %v1492
    %v1525 = vunpack.c.l.b16 %v1493
    %v1526 = vunpack.c.l.b16 %v1494
    %v1527 = vunpack.c.l.b16 %v1495
    %v1528 = vunpack.c.l.b16 %v1496
    %v1529 = vunpack.c.l.b16 %v1497
    %v1530 = vunpack.c.l.b16 %v1498
    %v1531 = vunpack.c.l.b16 %v1499
    %v1532 = vunpack.c.l.b16 %v1500
    %v1533 = vunpack.c.l.b16 %v1501
    %v1534 = vunpack.c.l.b16 %v1502
    %v1535 = vunpack.c.l.b16 %v1503
    %v1536 = vunpack.c.l.b16 %v1504
    %v1537 = vunpack.c.l.b16 %v1505
    %v1538 = vunpack.c.l.b16 %v1506
    %v1539 = vpack.c.b16 %v1524, %v1523
    %v1540 = vpack.c.b16 %v1526, %v1525
    %v1541 = vpack.c.b16 %v1528, %v1527
    %v1542 = vpack.c.b16 %v1530, %v1529
    %v1543 = vpack.c.b16 %v1532, %v1531
    %v1544 = vpack.c.b16 %v1534, %v1533
    %v1545 = vpack.c.b16 %v1536, %v1535
    %v1546 = vpack.c.b16 %v1538, %v1537
    %1555 = vmatpush.bf16.msra.mxu0 %v1546
    %1556 = vmatpush.bf16.msra.mxu0 %v1545
    %1557 = vmatpush.bf16.msra.mxu0 %v1544
    %1558 = vmatpush.bf16.msra.mxu0 %v1543
    %1559 = vmatpush.bf16.msra.mxu0 %v1542
    %1560 = vmatpush.bf16.msra.mxu0 %v1541
    %1561 = vmatpush.bf16.msra.mxu0 %v1540
    %1562 = vmatpush.bf16.msra.mxu0 %v1539
    %1563 = vmatmul.bf16.gmra.mxu0 %v1488
    %v1564 = vpop.f32.mrf.mxu0
    %v1565 = vadd.f32 0.0, %v1564
    %v1566 = vpop.f32.mrf.mxu0
    %v1567 = vadd.f32 0.0, %v1566
    %1568 = vmatmul.bf16.gmra.mxu0 %v1489
    %v1569 = vpop.f32.mrf.mxu0
    %v1570 = vadd.f32 0.0, %v1569
    %v1571 = vpop.f32.mrf.mxu0
    %v1572 = vadd.f32 0.0, %v1571
    %1573 = vmatmul.bf16.gmra.mxu0 %v1490
    %v1574 = vpop.f32.mrf.mxu0
    %v1575 = vadd.f32 0.0, %v1574
    %v1576 = vpop.f32.mrf.mxu0
    %1577 = vdwg.mxu0
    %v1578 = vadd.f32 %v1089, %v1565
    %v1579 = vadd.f32 %v1090, %v1567
    %v1580 = vadd.f32 %v1091, %v1570
    %v1581 = vadd.f32 %v1092, %v1572
    %v1582 = vadd.f32 %v1093, %v1575
    %v1583 = vperm.slane %v139, 7
    %v1584 = vadd.f32 %v1578, %v1583
    %v1585 = vadd.f32 %v1579, %v1583
    %v1586 = vadd.f32 %v1580, %v1583
    %v1587 = vadd.f32 %v1581, %v1583
    %v1588 = vadd.f32 %v1582, %v1583
    %v1589 = vld [vmem:[%s2 + $0x58] sm:$0xff]
    %v1590 = vsel %vm140, %v1584, 0.0
    %1591 = vadd.xlane.f32.xlu0 %v1590
    %v1592 = vpop.xlane.xlu0 %1591
    %v1593 = vsel %vm140, %v1585, 0.0
    %1594 = vadd.xlane.f32.xlu0 %v1593
    %v1595 = vpop.xlane.xlu0 %1594
    %v1596 = vsel %vm140, %v1586, 0.0
    %1597 = vadd.xlane.f32.xlu0 %v1596
    %v1598 = vpop.xlane.xlu0 %1597
    %v1599 = vsel %vm140, %v1587, 0.0
    %1600 = vadd.xlane.f32.xlu0 %v1599
    %v1601 = vpop.xlane.xlu0 %1600
    %v1602 = vsel %vm153, %v1588, 0.0
    %1603 = vadd.xlane.f32.xlu0 %v1602
    %v1604 = vpop.xlane.xlu0 %1603
    %v1605 = vmul.f32 %v1592, %v163
    %v1606 = vmul.f32 %v1595, %v163
    %v1607 = vmul.f32 %v1598, %v163
    %v1608 = vmul.f32 %v1601, %v163
    %v1609 = vmul.f32 %v1604, %v163
    %v1610 = vsub.f32 %v1584, %v1605
    %v1611 = vsub.f32 %v1585, %v1606
    %v1612 = vsub.f32 %v1586, %v1607
    %v1613 = vsub.f32 %v1587, %v1608
    %v1614 = vsub.f32 %v1588, %v1609
    %v1615 = vmul.f32 %v1610, %v1610
    %v1616 = vmul.f32 %v1611, %v1611
    %v1617 = vmul.f32 %v1612, %v1612
    %v1618 = vmul.f32 %v1613, %v1613
    %v1619 = vmul.f32 %v1614, %v1614
    %v1620 = vsel %vm140, %v1615, 0.0
    %1621 = vadd.xlane.f32.xlu0 %v1620
    %v1622 = vpop.xlane.xlu0 %1621
    %v1623 = vsel %vm140, %v1616, 0.0
    %1624 = vadd.xlane.f32.xlu0 %v1623
    %v1625 = vpop.xlane.xlu0 %1624
    %v1626 = vsel %vm140, %v1617, 0.0
    %1627 = vadd.xlane.f32.xlu0 %v1626
    %v1628 = vpop.xlane.xlu0 %1627
    %v1629 = vsel %vm140, %v1618, 0.0
    %1630 = vadd.xlane.f32.xlu0 %v1629
    %v1631 = vpop.xlane.xlu0 %1630
    %v1632 = vsel %vm153, %v1619, 0.0
    %1633 = vadd.xlane.f32.xlu0 %v1632
    %v1634 = vpop.xlane.xlu0 %1633
    %v1635 = vmul.f32 %v1622, %v163
    %v1636 = vmul.f32 %v1625, %v163
    %v1637 = vmul.f32 %v1628, %v163
    %v1638 = vmul.f32 %v1631, %v163
    %v1639 = vmul.f32 %v1634, %v163
    %v1640 = vadd.f32 %v1635, 1e-06
    %v1641 = vadd.f32 %v1636, 1e-06
    %v1642 = vadd.f32 %v1637, 1e-06
    %v1643 = vadd.f32 %v1638, 1e-06
    %v1644 = vadd.f32 %v1639, 1e-06
    %v1645 = vrsqrt.pop %v1640
    %v1646 = vmul.f32 %v1645, %v1640
    %v1647 = vmul.f32 %v1646, %v1645
    %v1648 = vmul.f32 0.5, %v1647
    %v1649 = vsub.f32 1.5, %v1648
    %v1650 = vmul.f32 %v1645, %v1649
    %vm1651 = vweird.f32 %v1640
    %vm1652 = vweird.f32 %v1645
    %vm1653 = vmor %vm1651, %vm1652
    %v1654 = vsel %vm1653, %v1645, %v1650
    %v1655 = vrsqrt.pop %v1641
    %v1656 = vmul.f32 %v1655, %v1641
    %v1657 = vmul.f32 %v1656, %v1655
    %v1658 = vmul.f32 0.5, %v1657
    %v1659 = vsub.f32 1.5, %v1658
    %v1660 = vmul.f32 %v1655, %v1659
    %vm1661 = vweird.f32 %v1641
    %vm1662 = vweird.f32 %v1655
    %vm1663 = vmor %vm1661, %vm1662
    %v1664 = vsel %vm1663, %v1655, %v1660
    %v1665 = vrsqrt.pop %v1642
    %v1666 = vmul.f32 %v1665, %v1642
    %v1667 = vmul.f32 %v1666, %v1665
    %v1668 = vmul.f32 0.5, %v1667
    %v1669 = vsub.f32 1.5, %v1668
    %v1670 = vmul.f32 %v1665, %v1669
    %vm1671 = vweird.f32 %v1642
    %vm1672 = vweird.f32 %v1665
    %vm1673 = vmor %vm1671, %vm1672
    %v1674 = vsel %vm1673, %v1665, %v1670
    %v1675 = vrsqrt.pop %v1643
    %v1676 = vmul.f32 %v1675, %v1643
    %v1677 = vmul.f32 %v1676, %v1675
    %v1678 = vmul.f32 0.5, %v1677
    %v1679 = vsub.f32 1.5, %v1678
    %v1680 = vmul.f32 %v1675, %v1679
    %vm1681 = vweird.f32 %v1643
    %vm1682 = vweird.f32 %v1675
    %vm1683 = vmor %vm1681, %vm1682
    %v1684 = vsel %vm1683, %v1675, %v1680
    %v1685 = vrsqrt.pop %v1644
    %v1686 = vmul.f32 %v1685, %v1644
    %v1687 = vmul.f32 %v1686, %v1685
    %v1688 = vmul.f32 0.5, %v1687
    %v1689 = vsub.f32 1.5, %v1688
    %v1690 = vmul.f32 %v1685, %v1689
    %vm1691 = vweird.f32 %v1644
    %vm1692 = vweird.f32 %v1685
    %vm1693 = vmor %vm1691, %vm1692
    %v1694 = vsel %vm1693, %v1685, %v1690
    %v1695 = vmul.f32 %v1610, %v1654
    %v1696 = vmul.f32 %v1611, %v1664
    %v1697 = vmul.f32 %v1612, %v1674
    %v1698 = vmul.f32 %v1613, %v1684
    %v1699 = vmul.f32 %v1614, %v1694
    %v1700 = vperm.slane %v1589, 0
    %v1701 = vmul.f32 %v1695, %v1700
    %v1702 = vmul.f32 %v1696, %v1700
    %v1703 = vmul.f32 %v1697, %v1700
    %v1704 = vmul.f32 %v1698, %v1700
    %v1705 = vmul.f32 %v1699, %v1700
    %v1706 = vperm.slane %v1589, 1
    %v1707 = vadd.f32 %v1701, %v1706
    %v1708 = vadd.f32 %v1702, %v1706
    %v1709 = vadd.f32 %v1703, %v1706
    %v1710 = vadd.f32 %v1704, %v1706
    %v1711 = vadd.f32 %v1705, %v1706
    %v1712 = vpack.c.bf16 %v1708, %v1707
    %v1713 = vpack.c.bf16 %v1710, %v1709
    %v1714 = vpack.c.bf16 %v1711, %v1711
    %v1715 = vld [vmem:[%s1 + $0xb0] sm:$0xf]
    %v1716 = vld [vmem:[%s1 + $0xb4] sm:$0xf]
    %v1717 = vld [vmem:[%s1 + $0xb8] sm:$0xf]
    %v1718 = vld [vmem:[%s1 + $0xbc] sm:$0xf]
    %v1719 = vperm.slane %v1589, 2
    %v1724 = vunpack.c.l.b16 %v1715
    %v1725 = vunpack.c.l.b16 %v1716
    %v1726 = vunpack.c.l.b16 %v1717
    %v1727 = vunpack.c.l.b16 %v1718
    %v1728 = vpack.c.b16 %v1725, %v1724
    %v1729 = vpack.c.b16 %v1727, %v1726
    %v1733 = vsel %vm140, %v1712, 0
    %v1736 = vsel %vm140, %v1713, 0
    %v1739 = vsel %vm140, %v1714, 0
    %1741 = vmatpush.bf16.msra.mxu0 0
    %1742 = vmatpush.bf16.msra.mxu0 0
    %1743 = vmatpush.bf16.msra.mxu0 0
    %1744 = vmatpush.bf16.msra.mxu0 0
    %1745 = vmatpush.bf16.msra.mxu0 0
    %1746 = vmatpush.bf16.msra.mxu0 0
    %1747 = vmatpush.bf16.msra.mxu0 %v1729
    %1748 = vmatpush.bf16.msra.mxu0 %v1728
    %1749 = vmatmul.bf16.gmra.mxu0 %v1733
    %v1750 = vpop.f32.mrf.mxu0
    %v1751 = vadd.f32 %v1719, %v1750
    %v1752 = vpop.f32.mrf.mxu0
    %v1753 = vadd.f32 %v1719, %v1752
    %1754 = vmatmul.bf16.gmra.mxu0 %v1736
    %v1755 = vpop.f32.mrf.mxu0
    %v1756 = vadd.f32 %v1719, %v1755
    %v1757 = vpop.f32.mrf.mxu0
    %v1758 = vadd.f32 %v1719, %v1757
    %1759 = vmatmul.bf16.gmra.mxu0 %v1739
    %v1760 = vpop.f32.mrf.mxu0
    %v1761 = vadd.f32 %v1719, %v1760
    %v1762 = vpop.f32.mrf.mxu0
    %1763 = vdwg.mxu0
    %v1764 = vpack.c.bf16 %v1751, %v1751
    %v1765 = vpack.c.bf16 %v1753, %v1753
    %v1766 = vpack.c.bf16 %v1756, %v1756
    %v1767 = vpack.c.bf16 %v1758, %v1758
    %v1768 = vpack.c.bf16 %v1761, %v1761
    %v1774 = vunpack.c.l.b16 %v1764
    %v1775 = vunpack.c.l.b16 %v1765
    %v1776 = vunpack.c.l.b16 %v1766
    %v1777 = vunpack.c.l.b16 %v1767
    %v1778 = vunpack.c.l.b16 %v1768
    %v1779 = vpack.c.b16 %v1775, %v1774
    %v1780 = vpack.c.b16 %v1777, %v1776
    %v1781 = vpack.c.b16 %v1778, %v1778
    %1782 = vrot.lane.b32.xlu0 %v1779, 96
    %v1783 = vpop.permute.xlu0 %1782
    %1784 = vrot.lane.b32.xlu0 %v1780, 96
    %v1785 = vpop.permute.xlu0 %1784
    %1786 = vrot.lane.b32.xlu0 %v1781, 96
    %v1787 = vpop.permute.xlu0 %1786
    %v1789 = vsel %vm347, %v1779, 0
    %v1792 = vsel %vm347, %v1780, 0
    %v1795 = vsel %vm347, %v1781, 0
    %v1798 = vsel %vm347, %v1783, 0
    %v1801 = vsel %vm347, %v1785, 0
    %v1804 = vsel %vm347, %v1787, 0
    %1806 = vmatpush.bf16.xpose.msra.mxu0 0
    %1807 = vmatpush.bf16.xpose.msra.mxu0 0
    %1808 = vmatpush.bf16.xpose.msra.mxu0 0
    %1809 = vmatpush.bf16.xpose.msra.mxu0 0
    %1810 = vmatpush.bf16.xpose.msra.mxu0 0
    %1811 = vmatpush.bf16.xpose.msra.mxu0 %v1804
    %1812 = vmatpush.bf16.xpose.msra.mxu0 %v1801
    %1813 = vmatpush.bf16.xpose.msra.mxu0 %v1798
    %1814 = vmatmul.bf16.gmra.mxu0 %v1789
    %v1815 = vpop.f32.mrf.mxu0
    %v1816 = vadd.f32 %v134, %v1815
    %v1817 = vpop.f32.mrf.mxu0
    %v1818 = vadd.f32 %v135, %v1817
    %1819 = vmatmul.bf16.gmra.mxu0 %v1792
    %v1820 = vpop.f32.mrf.mxu0
    %v1821 = vadd.f32 %v136, %v1820
    %v1822 = vpop.f32.mrf.mxu0
    %v1823 = vadd.f32 %v137, %v1822
    %1824 = vmatmul.bf16.gmra.mxu0 %v1795
    %v1825 = vpop.f32.mrf.mxu0
    %v1826 = vadd.f32 %v138, %v1825
    %v1827 = vpop.f32.mrf.mxu0
    %1828 = vdwg.mxu0
    %v1829 = vsel %vm389, %v1816, -inf
    %1830 = vmax.xlane.f32.xlu0 %v1829
    %v1831 = vpop.xlane.xlu0 %1830
    %v1832 = vsel %vm389, %v1818, -inf
    %1833 = vmax.xlane.f32.xlu0 %v1832
    %v1834 = vpop.xlane.xlu0 %1833
    %v1835 = vsel %vm389, %v1821, -inf
    %1836 = vmax.xlane.f32.xlu0 %v1835
    %v1837 = vpop.xlane.xlu0 %1836
    %v1838 = vsel %vm389, %v1823, -inf
    %1839 = vmax.xlane.f32.xlu0 %v1838
    %v1840 = vpop.xlane.xlu0 %1839
    %v1841 = vsel %vm402, %v1826, -inf
    %1842 = vmax.xlane.f32.xlu0 %v1841
    %v1843 = vpop.xlane.xlu0 %1842
    %v1844 = vsub.f32 %v1816, %v1831
    %v1845 = vsub.f32 %v1818, %v1834
    %v1846 = vsub.f32 %v1821, %v1837
    %v1847 = vsub.f32 %v1823, %v1840
    %v1848 = vsub.f32 %v1826, %v1843
    %v1849 = vmul.f32 %v1844, 1.442695
    %v1850 = vpow.pop %v1849
    %v1851 = vmul.f32 %v1845, 1.442695
    %v1852 = vpow.pop %v1851
    %v1853 = vmul.f32 %v1846, 1.442695
    %v1854 = vpow.pop %v1853
    %v1855 = vmul.f32 %v1847, 1.442695
    %v1856 = vpow.pop %v1855
    %v1857 = vmul.f32 %v1848, 1.442695
    %v1858 = vpow.pop %v1857
    %v1859 = vsel %vm389, %v1850, 0.0
    %1860 = vadd.xlane.f32.xlu0 %v1859
    %v1861 = vpop.xlane.xlu0 %1860
    %v1862 = vsel %vm389, %v1852, 0.0
    %1863 = vadd.xlane.f32.xlu0 %v1862
    %v1864 = vpop.xlane.xlu0 %1863
    %v1865 = vsel %vm389, %v1854, 0.0
    %1866 = vadd.xlane.f32.xlu0 %v1865
    %v1867 = vpop.xlane.xlu0 %1866
    %v1868 = vsel %vm389, %v1856, 0.0
    %1869 = vadd.xlane.f32.xlu0 %v1868
    %v1870 = vpop.xlane.xlu0 %1869
    %v1871 = vsel %vm402, %v1858, 0.0
    %1872 = vadd.xlane.f32.xlu0 %v1871
    %v1873 = vpop.xlane.xlu0 %1872
    %v1874 = vrcp.pop %v1861
    %v1875 = vrcp.pop %v1864
    %v1876 = vrcp.pop %v1867
    %v1877 = vrcp.pop %v1870
    %v1878 = vrcp.pop %v1873
    %v1879 = vmul.f32 %v1850, %v1874
    %v1880 = vmul.f32 %v1852, %v1875
    %v1881 = vmul.f32 %v1854, %v1876
    %v1882 = vmul.f32 %v1856, %v1877
    %v1883 = vmul.f32 %v1858, %v1878
    %v1884 = vpack.c.bf16 %v1880, %v1879
    %v1885 = vpack.c.bf16 %v1882, %v1881
    %v1886 = vpack.c.bf16 %v1883, %v1883
    %1887 = vrot.lane.b32.xlu0 %v1779, 64
    %v1888 = vpop.permute.xlu0 %1887
    %1889 = vrot.lane.b32.xlu0 %v1780, 64
    %v1890 = vpop.permute.xlu0 %1889
    %1891 = vrot.lane.b32.xlu0 %v1781, 64
    %v1892 = vpop.permute.xlu0 %1891
    %v1896 = vsel %vm389, %v1884, 0
    %v1899 = vsel %vm389, %v1885, 0
    %v1902 = vsel %vm389, %v1886, 0
    %v1905 = vsel %vm466, %v1892, 0
    %1907 = vmatpush.bf16.msra.mxu0 0
    %1908 = vmatpush.bf16.msra.mxu0 0
    %1909 = vmatpush.bf16.msra.mxu0 0
    %1910 = vmatpush.bf16.msra.mxu0 0
    %1911 = vmatpush.bf16.msra.mxu0 0
    %1912 = vmatpush.bf16.msra.mxu0 %v1905
    %1913 = vmatpush.bf16.msra.mxu0 %v1890
    %1914 = vmatpush.bf16.msra.mxu0 %v1888
    %1915 = vmatmul.bf16.gmra.mxu0 %v1896
    %v1916 = vpop.f32.mrf.mxu0
    %v1917 = vadd.f32 0.0, %v1916
    %v1918 = vpop.f32.mrf.mxu0
    %v1919 = vadd.f32 0.0, %v1918
    %1920 = vmatmul.bf16.gmra.mxu0 %v1899
    %v1921 = vpop.f32.mrf.mxu0
    %v1922 = vadd.f32 0.0, %v1921
    %v1923 = vpop.f32.mrf.mxu0
    %v1924 = vadd.f32 0.0, %v1923
    %1925 = vmatmul.bf16.gmra.mxu0 %v1902
    %v1926 = vpop.f32.mrf.mxu0
    %v1927 = vadd.f32 0.0, %v1926
    %v1928 = vpop.f32.mrf.mxu0
    %1929 = vdwg.mxu0
    %1930 = vrot.lane.b32.xlu0 %v1779, 120
    %v1931 = vpop.permute.xlu0 %1930
    %1932 = vrot.lane.b32.xlu0 %v1780, 120
    %v1933 = vpop.permute.xlu0 %1932
    %1934 = vrot.lane.b32.xlu0 %v1781, 120
    %v1935 = vpop.permute.xlu0 %1934
    %1936 = vrot.lane.b32.xlu0 %v1779, 88
    %v1937 = vpop.permute.xlu0 %1936
    %1938 = vrot.lane.b32.xlu0 %v1780, 88
    %v1939 = vpop.permute.xlu0 %1938
    %1940 = vrot.lane.b32.xlu0 %v1781, 88
    %v1941 = vpop.permute.xlu0 %1940
    %v1943 = vsel %vm347, %v1931, 0
    %v1946 = vsel %vm347, %v1933, 0
    %v1949 = vsel %vm347, %v1935, 0
    %v1952 = vsel %vm347, %v1937, 0
    %v1955 = vsel %vm347, %v1939, 0
    %v1958 = vsel %vm347, %v1941, 0
    %1960 = vmatpush.bf16.xpose.msra.mxu0 0
    %1961 = vmatpush.bf16.xpose.msra.mxu0 0
    %1962 = vmatpush.bf16.xpose.msra.mxu0 0
    %1963 = vmatpush.bf16.xpose.msra.mxu0 0
    %1964 = vmatpush.bf16.xpose.msra.mxu0 0
    %1965 = vmatpush.bf16.xpose.msra.mxu0 %v1958
    %1966 = vmatpush.bf16.xpose.msra.mxu0 %v1955
    %1967 = vmatpush.bf16.xpose.msra.mxu0 %v1952
    %1968 = vmatmul.bf16.gmra.mxu0 %v1943
    %v1969 = vpop.f32.mrf.mxu0
    %v1970 = vadd.f32 %v134, %v1969
    %v1971 = vpop.f32.mrf.mxu0
    %v1972 = vadd.f32 %v135, %v1971
    %1973 = vmatmul.bf16.gmra.mxu0 %v1946
    %v1974 = vpop.f32.mrf.mxu0
    %v1975 = vadd.f32 %v136, %v1974
    %v1976 = vpop.f32.mrf.mxu0
    %v1977 = vadd.f32 %v137, %v1976
    %1978 = vmatmul.bf16.gmra.mxu0 %v1949
    %v1979 = vpop.f32.mrf.mxu0
    %v1980 = vadd.f32 %v138, %v1979
    %v1981 = vpop.f32.mrf.mxu0
    %1982 = vdwg.mxu0
    %v1983 = vsel %vm389, %v1970, -inf
    %1984 = vmax.xlane.f32.xlu0 %v1983
    %v1985 = vpop.xlane.xlu0 %1984
    %v1986 = vsel %vm389, %v1972, -inf
    %1987 = vmax.xlane.f32.xlu0 %v1986
    %v1988 = vpop.xlane.xlu0 %1987
    %v1989 = vsel %vm389, %v1975, -inf
    %1990 = vmax.xlane.f32.xlu0 %v1989
    %v1991 = vpop.xlane.xlu0 %1990
    %v1992 = vsel %vm389, %v1977, -inf
    %1993 = vmax.xlane.f32.xlu0 %v1992
    %v1994 = vpop.xlane.xlu0 %1993
    %v1995 = vsel %vm402, %v1980, -inf
    %1996 = vmax.xlane.f32.xlu0 %v1995
    %v1997 = vpop.xlane.xlu0 %1996
    %v1998 = vsub.f32 %v1970, %v1985
    %v1999 = vsub.f32 %v1972, %v1988
    %v2000 = vsub.f32 %v1975, %v1991
    %v2001 = vsub.f32 %v1977, %v1994
    %v2002 = vsub.f32 %v1980, %v1997
    %v2003 = vmul.f32 %v1998, 1.442695
    %v2004 = vpow.pop %v2003
    %v2005 = vmul.f32 %v1999, 1.442695
    %v2006 = vpow.pop %v2005
    %v2007 = vmul.f32 %v2000, 1.442695
    %v2008 = vpow.pop %v2007
    %v2009 = vmul.f32 %v2001, 1.442695
    %v2010 = vpow.pop %v2009
    %v2011 = vmul.f32 %v2002, 1.442695
    %v2012 = vpow.pop %v2011
    %v2013 = vsel %vm389, %v2004, 0.0
    %2014 = vadd.xlane.f32.xlu0 %v2013
    %v2015 = vpop.xlane.xlu0 %2014
    %v2016 = vsel %vm389, %v2006, 0.0
    %2017 = vadd.xlane.f32.xlu0 %v2016
    %v2018 = vpop.xlane.xlu0 %2017
    %v2019 = vsel %vm389, %v2008, 0.0
    %2020 = vadd.xlane.f32.xlu0 %v2019
    %v2021 = vpop.xlane.xlu0 %2020
    %v2022 = vsel %vm389, %v2010, 0.0
    %2023 = vadd.xlane.f32.xlu0 %v2022
    %v2024 = vpop.xlane.xlu0 %2023
    %v2025 = vsel %vm402, %v2012, 0.0
    %2026 = vadd.xlane.f32.xlu0 %v2025
    %v2027 = vpop.xlane.xlu0 %2026
    %v2028 = vrcp.pop %v2015
    %v2029 = vrcp.pop %v2018
    %v2030 = vrcp.pop %v2021
    %v2031 = vrcp.pop %v2024
    %v2032 = vrcp.pop %v2027
    %v2033 = vmul.f32 %v2004, %v2028
    %v2034 = vmul.f32 %v2006, %v2029
    %v2035 = vmul.f32 %v2008, %v2030
    %v2036 = vmul.f32 %v2010, %v2031
    %v2037 = vmul.f32 %v2012, %v2032
    %v2038 = vpack.c.bf16 %v2034, %v2033
    %v2039 = vpack.c.bf16 %v2036, %v2035
    %v2040 = vpack.c.bf16 %v2037, %v2037
    %2041 = vrot.lane.b32.xlu0 %v1779, 56
    %v2042 = vpop.permute.xlu0 %2041
    %2043 = vrot.lane.b32.xlu0 %v1780, 56
    %v2044 = vpop.permute.xlu0 %2043
    %2045 = vrot.lane.b32.xlu0 %v1781, 56
    %v2046 = vpop.permute.xlu0 %2045
    %v2050 = vsel %vm389, %v2038, 0
    %v2053 = vsel %vm389, %v2039, 0
    %v2056 = vsel %vm389, %v2040, 0
    %v2059 = vsel %vm466, %v2046, 0
    %2061 = vmatpush.bf16.msra.mxu0 0
    %2062 = vmatpush.bf16.msra.mxu0 0
    %2063 = vmatpush.bf16.msra.mxu0 0
    %2064 = vmatpush.bf16.msra.mxu0 0
    %2065 = vmatpush.bf16.msra.mxu0 0
    %2066 = vmatpush.bf16.msra.mxu0 %v2059
    %2067 = vmatpush.bf16.msra.mxu0 %v2044
    %2068 = vmatpush.bf16.msra.mxu0 %v2042
    %2069 = vmatmul.bf16.gmra.mxu0 %v2050
    %v2070 = vpop.f32.mrf.mxu0
    %v2071 = vadd.f32 0.0, %v2070
    %v2072 = vpop.f32.mrf.mxu0
    %v2073 = vadd.f32 0.0, %v2072
    %2074 = vmatmul.bf16.gmra.mxu0 %v2053
    %v2075 = vpop.f32.mrf.mxu0
    %v2076 = vadd.f32 0.0, %v2075
    %v2077 = vpop.f32.mrf.mxu0
    %v2078 = vadd.f32 0.0, %v2077
    %2079 = vmatmul.bf16.gmra.mxu0 %v2056
    %v2080 = vpop.f32.mrf.mxu0
    %v2081 = vadd.f32 0.0, %v2080
    %v2082 = vpop.f32.mrf.mxu0
    %2083 = vdwg.mxu0
    %2084 = vrot.lane.b32.xlu0 %v1779, 112
    %v2085 = vpop.permute.xlu0 %2084
    %2086 = vrot.lane.b32.xlu0 %v1780, 112
    %v2087 = vpop.permute.xlu0 %2086
    %2088 = vrot.lane.b32.xlu0 %v1781, 112
    %v2089 = vpop.permute.xlu0 %2088
    %2090 = vrot.lane.b32.xlu0 %v1779, 80
    %v2091 = vpop.permute.xlu0 %2090
    %2092 = vrot.lane.b32.xlu0 %v1780, 80
    %v2093 = vpop.permute.xlu0 %2092
    %2094 = vrot.lane.b32.xlu0 %v1781, 80
    %v2095 = vpop.permute.xlu0 %2094
    %v2097 = vsel %vm347, %v2085, 0
    %v2100 = vsel %vm347, %v2087, 0
    %v2103 = vsel %vm347, %v2089, 0
    %v2106 = vsel %vm347, %v2091, 0
    %v2109 = vsel %vm347, %v2093, 0
    %v2112 = vsel %vm347, %v2095, 0
    %2114 = vmatpush.bf16.xpose.msra.mxu0 0
    %2115 = vmatpush.bf16.xpose.msra.mxu0 0
    %2116 = vmatpush.bf16.xpose.msra.mxu0 0
    %2117 = vmatpush.bf16.xpose.msra.mxu0 0
    %2118 = vmatpush.bf16.xpose.msra.mxu0 0
    %2119 = vmatpush.bf16.xpose.msra.mxu0 %v2112
    %2120 = vmatpush.bf16.xpose.msra.mxu0 %v2109
    %2121 = vmatpush.bf16.xpose.msra.mxu0 %v2106
    %2122 = vmatmul.bf16.gmra.mxu0 %v2097
    %v2123 = vpop.f32.mrf.mxu0
    %v2124 = vadd.f32 %v134, %v2123
    %v2125 = vpop.f32.mrf.mxu0
    %v2126 = vadd.f32 %v135, %v2125
    %2127 = vmatmul.bf16.gmra.mxu0 %v2100
    %v2128 = vpop.f32.mrf.mxu0
    %v2129 = vadd.f32 %v136, %v2128
    %v2130 = vpop.f32.mrf.mxu0
    %v2131 = vadd.f32 %v137, %v2130
    %2132 = vmatmul.bf16.gmra.mxu0 %v2103
    %v2133 = vpop.f32.mrf.mxu0
    %v2134 = vadd.f32 %v138, %v2133
    %v2135 = vpop.f32.mrf.mxu0
    %2136 = vdwg.mxu0
    %v2137 = vsel %vm389, %v2124, -inf
    %2138 = vmax.xlane.f32.xlu0 %v2137
    %v2139 = vpop.xlane.xlu0 %2138
    %v2140 = vsel %vm389, %v2126, -inf
    %2141 = vmax.xlane.f32.xlu0 %v2140
    %v2142 = vpop.xlane.xlu0 %2141
    %v2143 = vsel %vm389, %v2129, -inf
    %2144 = vmax.xlane.f32.xlu0 %v2143
    %v2145 = vpop.xlane.xlu0 %2144
    %v2146 = vsel %vm389, %v2131, -inf
    %2147 = vmax.xlane.f32.xlu0 %v2146
    %v2148 = vpop.xlane.xlu0 %2147
    %v2149 = vsel %vm402, %v2134, -inf
    %2150 = vmax.xlane.f32.xlu0 %v2149
    %v2151 = vpop.xlane.xlu0 %2150
    %v2152 = vsub.f32 %v2124, %v2139
    %v2153 = vsub.f32 %v2126, %v2142
    %v2154 = vsub.f32 %v2129, %v2145
    %v2155 = vsub.f32 %v2131, %v2148
    %v2156 = vsub.f32 %v2134, %v2151
    %v2157 = vmul.f32 %v2152, 1.442695
    %v2158 = vpow.pop %v2157
    %v2159 = vmul.f32 %v2153, 1.442695
    %v2160 = vpow.pop %v2159
    %v2161 = vmul.f32 %v2154, 1.442695
    %v2162 = vpow.pop %v2161
    %v2163 = vmul.f32 %v2155, 1.442695
    %v2164 = vpow.pop %v2163
    %v2165 = vmul.f32 %v2156, 1.442695
    %v2166 = vpow.pop %v2165
    %v2167 = vsel %vm389, %v2158, 0.0
    %2168 = vadd.xlane.f32.xlu0 %v2167
    %v2169 = vpop.xlane.xlu0 %2168
    %v2170 = vsel %vm389, %v2160, 0.0
    %2171 = vadd.xlane.f32.xlu0 %v2170
    %v2172 = vpop.xlane.xlu0 %2171
    %v2173 = vsel %vm389, %v2162, 0.0
    %2174 = vadd.xlane.f32.xlu0 %v2173
    %v2175 = vpop.xlane.xlu0 %2174
    %v2176 = vsel %vm389, %v2164, 0.0
    %2177 = vadd.xlane.f32.xlu0 %v2176
    %v2178 = vpop.xlane.xlu0 %2177
    %v2179 = vsel %vm402, %v2166, 0.0
    %2180 = vadd.xlane.f32.xlu0 %v2179
    %v2181 = vpop.xlane.xlu0 %2180
    %v2182 = vrcp.pop %v2169
    %v2183 = vrcp.pop %v2172
    %v2184 = vrcp.pop %v2175
    %v2185 = vrcp.pop %v2178
    %v2186 = vrcp.pop %v2181
    %v2187 = vmul.f32 %v2158, %v2182
    %v2188 = vmul.f32 %v2160, %v2183
    %v2189 = vmul.f32 %v2162, %v2184
    %v2190 = vmul.f32 %v2164, %v2185
    %v2191 = vmul.f32 %v2166, %v2186
    %v2192 = vpack.c.bf16 %v2188, %v2187
    %v2193 = vpack.c.bf16 %v2190, %v2189
    %v2194 = vpack.c.bf16 %v2191, %v2191
    %2195 = vrot.lane.b32.xlu0 %v1779, 48
    %v2196 = vpop.permute.xlu0 %2195
    %2197 = vrot.lane.b32.xlu0 %v1780, 48
    %v2198 = vpop.permute.xlu0 %2197
    %2199 = vrot.lane.b32.xlu0 %v1781, 48
    %v2200 = vpop.permute.xlu0 %2199
    %v2204 = vsel %vm389, %v2192, 0
    %v2207 = vsel %vm389, %v2193, 0
    %v2210 = vsel %vm389, %v2194, 0
    %v2213 = vsel %vm466, %v2200, 0
    %2215 = vmatpush.bf16.msra.mxu0 0
    %2216 = vmatpush.bf16.msra.mxu0 0
    %2217 = vmatpush.bf16.msra.mxu0 0
    %2218 = vmatpush.bf16.msra.mxu0 0
    %2219 = vmatpush.bf16.msra.mxu0 0
    %2220 = vmatpush.bf16.msra.mxu0 %v2213
    %2221 = vmatpush.bf16.msra.mxu0 %v2198
    %2222 = vmatpush.bf16.msra.mxu0 %v2196
    %2223 = vmatmul.bf16.gmra.mxu0 %v2204
    %v2224 = vpop.f32.mrf.mxu0
    %v2225 = vadd.f32 0.0, %v2224
    %v2226 = vpop.f32.mrf.mxu0
    %v2227 = vadd.f32 0.0, %v2226
    %2228 = vmatmul.bf16.gmra.mxu0 %v2207
    %v2229 = vpop.f32.mrf.mxu0
    %v2230 = vadd.f32 0.0, %v2229
    %v2231 = vpop.f32.mrf.mxu0
    %v2232 = vadd.f32 0.0, %v2231
    %2233 = vmatmul.bf16.gmra.mxu0 %v2210
    %v2234 = vpop.f32.mrf.mxu0
    %v2235 = vadd.f32 0.0, %v2234
    %v2236 = vpop.f32.mrf.mxu0
    %2237 = vdwg.mxu0
    %2238 = vrot.lane.b32.xlu0 %v1779, 104
    %v2239 = vpop.permute.xlu0 %2238
    %2240 = vrot.lane.b32.xlu0 %v1780, 104
    %v2241 = vpop.permute.xlu0 %2240
    %2242 = vrot.lane.b32.xlu0 %v1781, 104
    %v2243 = vpop.permute.xlu0 %2242
    %2244 = vrot.lane.b32.xlu0 %v1779, 72
    %v2245 = vpop.permute.xlu0 %2244
    %2246 = vrot.lane.b32.xlu0 %v1780, 72
    %v2247 = vpop.permute.xlu0 %2246
    %2248 = vrot.lane.b32.xlu0 %v1781, 72
    %v2249 = vpop.permute.xlu0 %2248
    %v2251 = vsel %vm347, %v2239, 0
    %v2254 = vsel %vm347, %v2241, 0
    %v2257 = vsel %vm347, %v2243, 0
    %v2260 = vsel %vm347, %v2245, 0
    %v2263 = vsel %vm347, %v2247, 0
    %v2266 = vsel %vm347, %v2249, 0
    %2268 = vmatpush.bf16.xpose.msra.mxu0 0
    %2269 = vmatpush.bf16.xpose.msra.mxu0 0
    %2270 = vmatpush.bf16.xpose.msra.mxu0 0
    %2271 = vmatpush.bf16.xpose.msra.mxu0 0
    %2272 = vmatpush.bf16.xpose.msra.mxu0 0
    %2273 = vmatpush.bf16.xpose.msra.mxu0 %v2266
    %2274 = vmatpush.bf16.xpose.msra.mxu0 %v2263
    %2275 = vmatpush.bf16.xpose.msra.mxu0 %v2260
    %2276 = vmatmul.bf16.gmra.mxu0 %v2251
    %v2277 = vpop.f32.mrf.mxu0
    %v2278 = vadd.f32 %v134, %v2277
    %v2279 = vpop.f32.mrf.mxu0
    %v2280 = vadd.f32 %v135, %v2279
    %2281 = vmatmul.bf16.gmra.mxu0 %v2254
    %v2282 = vpop.f32.mrf.mxu0
    %v2283 = vadd.f32 %v136, %v2282
    %v2284 = vpop.f32.mrf.mxu0
    %v2285 = vadd.f32 %v137, %v2284
    %2286 = vmatmul.bf16.gmra.mxu0 %v2257
    %v2287 = vpop.f32.mrf.mxu0
    %v2288 = vadd.f32 %v138, %v2287
    %v2289 = vpop.f32.mrf.mxu0
    %2290 = vdwg.mxu0
    %v2291 = vsel %vm389, %v2278, -inf
    %2292 = vmax.xlane.f32.xlu0 %v2291
    %v2293 = vpop.xlane.xlu0 %2292
    %v2294 = vsel %vm389, %v2280, -inf
    %2295 = vmax.xlane.f32.xlu0 %v2294
    %v2296 = vpop.xlane.xlu0 %2295
    %v2297 = vsel %vm389, %v2283, -inf
    %2298 = vmax.xlane.f32.xlu0 %v2297
    %v2299 = vpop.xlane.xlu0 %2298
    %v2300 = vsel %vm389, %v2285, -inf
    %2301 = vmax.xlane.f32.xlu0 %v2300
    %v2302 = vpop.xlane.xlu0 %2301
    %v2303 = vsel %vm402, %v2288, -inf
    %2304 = vmax.xlane.f32.xlu0 %v2303
    %v2305 = vpop.xlane.xlu0 %2304
    %v2306 = vsub.f32 %v2278, %v2293
    %v2307 = vsub.f32 %v2280, %v2296
    %v2308 = vsub.f32 %v2283, %v2299
    %v2309 = vsub.f32 %v2285, %v2302
    %v2310 = vsub.f32 %v2288, %v2305
    %v2311 = vmul.f32 %v2306, 1.442695
    %v2312 = vpow.pop %v2311
    %v2313 = vmul.f32 %v2307, 1.442695
    %v2314 = vpow.pop %v2313
    %v2315 = vmul.f32 %v2308, 1.442695
    %v2316 = vpow.pop %v2315
    %v2317 = vmul.f32 %v2309, 1.442695
    %v2318 = vpow.pop %v2317
    %v2319 = vmul.f32 %v2310, 1.442695
    %v2320 = vpow.pop %v2319
    %v2321 = vsel %vm389, %v2312, 0.0
    %2322 = vadd.xlane.f32.xlu0 %v2321
    %v2323 = vpop.xlane.xlu0 %2322
    %v2324 = vsel %vm389, %v2314, 0.0
    %2325 = vadd.xlane.f32.xlu0 %v2324
    %v2326 = vpop.xlane.xlu0 %2325
    %v2327 = vsel %vm389, %v2316, 0.0
    %2328 = vadd.xlane.f32.xlu0 %v2327
    %v2329 = vpop.xlane.xlu0 %2328
    %v2330 = vsel %vm389, %v2318, 0.0
    %2331 = vadd.xlane.f32.xlu0 %v2330
    %v2332 = vpop.xlane.xlu0 %2331
    %v2333 = vsel %vm402, %v2320, 0.0
    %2334 = vadd.xlane.f32.xlu0 %v2333
    %v2335 = vpop.xlane.xlu0 %2334
    %v2336 = vrcp.pop %v2323
    %v2337 = vrcp.pop %v2326
    %v2338 = vrcp.pop %v2329
    %v2339 = vrcp.pop %v2332
    %v2340 = vrcp.pop %v2335
    %v2341 = vmul.f32 %v2312, %v2336
    %v2342 = vmul.f32 %v2314, %v2337
    %v2343 = vmul.f32 %v2316, %v2338
    %v2344 = vmul.f32 %v2318, %v2339
    %v2345 = vmul.f32 %v2320, %v2340
    %v2346 = vpack.c.bf16 %v2342, %v2341
    %v2347 = vpack.c.bf16 %v2344, %v2343
    %v2348 = vpack.c.bf16 %v2345, %v2345
    %2349 = vrot.lane.b32.xlu0 %v1779, 40
    %v2350 = vpop.permute.xlu0 %2349
    %2351 = vrot.lane.b32.xlu0 %v1780, 40
    %v2352 = vpop.permute.xlu0 %2351
    %2353 = vrot.lane.b32.xlu0 %v1781, 40
    %v2354 = vpop.permute.xlu0 %2353
    %v2358 = vsel %vm389, %v2346, 0
    %v2361 = vsel %vm389, %v2347, 0
    %v2364 = vsel %vm389, %v2348, 0
    %v2367 = vsel %vm466, %v2354, 0
    %2369 = vmatpush.bf16.msra.mxu0 0
    %2370 = vmatpush.bf16.msra.mxu0 0
    %2371 = vmatpush.bf16.msra.mxu0 0
    %2372 = vmatpush.bf16.msra.mxu0 0
    %2373 = vmatpush.bf16.msra.mxu0 0
    %2374 = vmatpush.bf16.msra.mxu0 %v2367
    %2375 = vmatpush.bf16.msra.mxu0 %v2352
    %2376 = vmatpush.bf16.msra.mxu0 %v2350
    %2377 = vmatmul.bf16.gmra.mxu0 %v2358
    %v2378 = vpop.f32.mrf.mxu0
    %v2379 = vadd.f32 0.0, %v2378
    %v2380 = vpop.f32.mrf.mxu0
    %v2381 = vadd.f32 0.0, %v2380
    %2382 = vmatmul.bf16.gmra.mxu0 %v2361
    %v2383 = vpop.f32.mrf.mxu0
    %v2384 = vadd.f32 0.0, %v2383
    %v2385 = vpop.f32.mrf.mxu0
    %v2386 = vadd.f32 0.0, %v2385
    %2387 = vmatmul.bf16.gmra.mxu0 %v2364
    %v2388 = vpop.f32.mrf.mxu0
    %v2389 = vadd.f32 0.0, %v2388
    %v2390 = vpop.f32.mrf.mxu0
    %2391 = vdwg.mxu0
    %2397 = vrot.lane.b32.xlu0 %v2071, 8
    %v2398 = vpop.permute.xlu0 %2397
    %2399 = vrot.lane.b32.xlu0 %v2073, 8
    %v2400 = vpop.permute.xlu0 %2399
    %2401 = vrot.lane.b32.xlu0 %v2076, 8
    %v2402 = vpop.permute.xlu0 %2401
    %2403 = vrot.lane.b32.xlu0 %v2078, 8
    %v2404 = vpop.permute.xlu0 %2403
    %2405 = vrot.lane.b32.xlu0 %v2081, 8
    %v2406 = vpop.permute.xlu0 %2405
    %2417 = vrot.lane.b32.xlu0 %v2225, 16
    %v2418 = vpop.permute.xlu0 %2417
    %2419 = vrot.lane.b32.xlu0 %v2227, 16
    %v2420 = vpop.permute.xlu0 %2419
    %2421 = vrot.lane.b32.xlu0 %v2230, 16
    %v2422 = vpop.permute.xlu0 %2421
    %2423 = vrot.lane.b32.xlu0 %v2232, 16
    %v2424 = vpop.permute.xlu0 %2423
    %2425 = vrot.lane.b32.xlu0 %v2235, 16
    %v2426 = vpop.permute.xlu0 %2425
    %2437 = vrot.lane.b32.xlu0 %v2379, 24
    %v2438 = vpop.permute.xlu0 %2437
    %2439 = vrot.lane.b32.xlu0 %v2381, 24
    %v2440 = vpop.permute.xlu0 %2439
    %2441 = vrot.lane.b32.xlu0 %v2384, 24
    %v2442 = vpop.permute.xlu0 %2441
    %2443 = vrot.lane.b32.xlu0 %v2386, 24
    %v2444 = vpop.permute.xlu0 %2443
    %2445 = vrot.lane.b32.xlu0 %v2389, 24
    %v2446 = vpop.permute.xlu0 %2445
    %v2452 = vsel %vm347, %v1917, %v2398
    %v2453 = vsel %vm347, %v1919, %v2400
    %v2454 = vsel %vm347, %v1922, %v2402
    %v2455 = vsel %vm347, %v1924, %v2404
    %v2456 = vsel %vm347, %v1927, %v2406
    %v2457 = vsel %vm1020, %v2452, %v2418
    %v2458 = vsel %vm1020, %v2453, %v2420
    %v2459 = vsel %vm1020, %v2454, %v2422
    %v2460 = vsel %vm1020, %v2455, %v2424
    %v2461 = vsel %vm1020, %v2456, %v2426
    %v2462 = vsel %vm1026, %v2457, %v2438
    %v2463 = vsel %vm1026, %v2458, %v2440
    %v2464 = vsel %vm1026, %v2459, %v2442
    %v2465 = vsel %vm1026, %v2460, %v2444
    %v2466 = vsel %vm1026, %v2461, %v2446
    %v2467 = vpack.c.bf16 %v2463, %v2462
    %v2468 = vpack.c.bf16 %v2465, %v2464
    %v2469 = vpack.c.bf16 %v2466, %v2466
    %v2470 = vld [vmem:[%s1 + $0xc0] sm:$0xf]
    %v2471 = vld [vmem:[%s1 + $0xc4] sm:$0xf]
    %v2472 = vld [vmem:[%s1 + $0xc8] sm:$0xf]
    %v2473 = vld [vmem:[%s1 + $0xcc] sm:$0xf]
    %v2478 = vunpack.c.l.b16 %v2470
    %v2479 = vunpack.c.l.b16 %v2471
    %v2480 = vunpack.c.l.b16 %v2472
    %v2481 = vunpack.c.l.b16 %v2473
    %v2482 = vpack.c.b16 %v2479, %v2478
    %v2483 = vpack.c.b16 %v2481, %v2480
    %v2487 = vsel %vm140, %v2467, 0
    %v2490 = vsel %vm140, %v2468, 0
    %v2493 = vsel %vm140, %v2469, 0
    %2495 = vmatpush.bf16.msra.mxu0 0
    %2496 = vmatpush.bf16.msra.mxu0 0
    %2497 = vmatpush.bf16.msra.mxu0 0
    %2498 = vmatpush.bf16.msra.mxu0 0
    %2499 = vmatpush.bf16.msra.mxu0 0
    %2500 = vmatpush.bf16.msra.mxu0 0
    %2501 = vmatpush.bf16.msra.mxu0 %v2483
    %2502 = vmatpush.bf16.msra.mxu0 %v2482
    %2503 = vmatmul.bf16.gmra.mxu0 %v2487
    %v2504 = vpop.f32.mrf.mxu0
    %v2505 = vadd.f32 0.0, %v2504
    %v2506 = vpop.f32.mrf.mxu0
    %v2507 = vadd.f32 0.0, %v2506
    %2508 = vmatmul.bf16.gmra.mxu0 %v2490
    %v2509 = vpop.f32.mrf.mxu0
    %v2510 = vadd.f32 0.0, %v2509
    %v2511 = vpop.f32.mrf.mxu0
    %v2512 = vadd.f32 0.0, %v2511
    %2513 = vmatmul.bf16.gmra.mxu0 %v2493
    %v2514 = vpop.f32.mrf.mxu0
    %v2515 = vadd.f32 0.0, %v2514
    %v2516 = vpop.f32.mrf.mxu0
    %2517 = vdwg.mxu0
    %v2518 = vadd.f32 %v1584, %v2505
    %v2519 = vadd.f32 %v1585, %v2507
    %v2520 = vadd.f32 %v1586, %v2510
    %v2521 = vadd.f32 %v1587, %v2512
    %v2522 = vadd.f32 %v1588, %v2515
    %v2523 = vperm.slane %v1589, 3
    %v2524 = vadd.f32 %v2518, %v2523
    %v2525 = vadd.f32 %v2519, %v2523
    %v2526 = vadd.f32 %v2520, %v2523
    %v2527 = vadd.f32 %v2521, %v2523
    %v2528 = vadd.f32 %v2522, %v2523
    %v2529 = vsel %vm140, %v2524, 0.0
    %2530 = vadd.xlane.f32.xlu0 %v2529
    %v2531 = vpop.xlane.xlu0 %2530
    %v2532 = vsel %vm140, %v2525, 0.0
    %2533 = vadd.xlane.f32.xlu0 %v2532
    %v2534 = vpop.xlane.xlu0 %2533
    %v2535 = vsel %vm140, %v2526, 0.0
    %2536 = vadd.xlane.f32.xlu0 %v2535
    %v2537 = vpop.xlane.xlu0 %2536
    %v2538 = vsel %vm140, %v2527, 0.0
    %2539 = vadd.xlane.f32.xlu0 %v2538
    %v2540 = vpop.xlane.xlu0 %2539
    %v2541 = vsel %vm153, %v2528, 0.0
    %2542 = vadd.xlane.f32.xlu0 %v2541
    %v2543 = vpop.xlane.xlu0 %2542
    %v2544 = vmul.f32 %v2531, %v163
    %v2545 = vmul.f32 %v2534, %v163
    %v2546 = vmul.f32 %v2537, %v163
    %v2547 = vmul.f32 %v2540, %v163
    %v2548 = vmul.f32 %v2543, %v163
    %v2549 = vsub.f32 %v2524, %v2544
    %v2550 = vsub.f32 %v2525, %v2545
    %v2551 = vsub.f32 %v2526, %v2546
    %v2552 = vsub.f32 %v2527, %v2547
    %v2553 = vsub.f32 %v2528, %v2548
    %v2554 = vmul.f32 %v2549, %v2549
    %v2555 = vmul.f32 %v2550, %v2550
    %v2556 = vmul.f32 %v2551, %v2551
    %v2557 = vmul.f32 %v2552, %v2552
    %v2558 = vmul.f32 %v2553, %v2553
    %v2559 = vsel %vm140, %v2554, 0.0
    %2560 = vadd.xlane.f32.xlu0 %v2559
    %v2561 = vpop.xlane.xlu0 %2560
    %v2562 = vsel %vm140, %v2555, 0.0
    %2563 = vadd.xlane.f32.xlu0 %v2562
    %v2564 = vpop.xlane.xlu0 %2563
    %v2565 = vsel %vm140, %v2556, 0.0
    %2566 = vadd.xlane.f32.xlu0 %v2565
    %v2567 = vpop.xlane.xlu0 %2566
    %v2568 = vsel %vm140, %v2557, 0.0
    %2569 = vadd.xlane.f32.xlu0 %v2568
    %v2570 = vpop.xlane.xlu0 %2569
    %v2571 = vsel %vm153, %v2558, 0.0
    %2572 = vadd.xlane.f32.xlu0 %v2571
    %v2573 = vpop.xlane.xlu0 %2572
    %v2574 = vmul.f32 %v2561, %v163
    %v2575 = vmul.f32 %v2564, %v163
    %v2576 = vmul.f32 %v2567, %v163
    %v2577 = vmul.f32 %v2570, %v163
    %v2578 = vmul.f32 %v2573, %v163
    %v2579 = vadd.f32 %v2574, 1e-06
    %v2580 = vadd.f32 %v2575, 1e-06
    %v2581 = vadd.f32 %v2576, 1e-06
    %v2582 = vadd.f32 %v2577, 1e-06
    %v2583 = vadd.f32 %v2578, 1e-06
    %v2584 = vrsqrt.pop %v2579
    %v2585 = vmul.f32 %v2584, %v2579
    %v2586 = vmul.f32 %v2585, %v2584
    %v2587 = vmul.f32 0.5, %v2586
    %v2588 = vsub.f32 1.5, %v2587
    %v2589 = vmul.f32 %v2584, %v2588
    %vm2590 = vweird.f32 %v2579
    %vm2591 = vweird.f32 %v2584
    %vm2592 = vmor %vm2590, %vm2591
    %v2593 = vsel %vm2592, %v2584, %v2589
    %v2594 = vrsqrt.pop %v2580
    %v2595 = vmul.f32 %v2594, %v2580
    %v2596 = vmul.f32 %v2595, %v2594
    %v2597 = vmul.f32 0.5, %v2596
    %v2598 = vsub.f32 1.5, %v2597
    %v2599 = vmul.f32 %v2594, %v2598
    %vm2600 = vweird.f32 %v2580
    %vm2601 = vweird.f32 %v2594
    %vm2602 = vmor %vm2600, %vm2601
    %v2603 = vsel %vm2602, %v2594, %v2599
    %v2604 = vrsqrt.pop %v2581
    %v2605 = vmul.f32 %v2604, %v2581
    %v2606 = vmul.f32 %v2605, %v2604
    %v2607 = vmul.f32 0.5, %v2606
    %v2608 = vsub.f32 1.5, %v2607
    %v2609 = vmul.f32 %v2604, %v2608
    %vm2610 = vweird.f32 %v2581
    %vm2611 = vweird.f32 %v2604
    %vm2612 = vmor %vm2610, %vm2611
    %v2613 = vsel %vm2612, %v2604, %v2609
    %v2614 = vrsqrt.pop %v2582
    %v2615 = vmul.f32 %v2614, %v2582
    %v2616 = vmul.f32 %v2615, %v2614
    %v2617 = vmul.f32 0.5, %v2616
    %v2618 = vsub.f32 1.5, %v2617
    %v2619 = vmul.f32 %v2614, %v2618
    %vm2620 = vweird.f32 %v2582
    %vm2621 = vweird.f32 %v2614
    %vm2622 = vmor %vm2620, %vm2621
    %v2623 = vsel %vm2622, %v2614, %v2619
    %v2624 = vrsqrt.pop %v2583
    %v2625 = vmul.f32 %v2624, %v2583
    %v2626 = vmul.f32 %v2625, %v2624
    %v2627 = vmul.f32 0.5, %v2626
    %v2628 = vsub.f32 1.5, %v2627
    %v2629 = vmul.f32 %v2624, %v2628
    %vm2630 = vweird.f32 %v2583
    %vm2631 = vweird.f32 %v2624
    %vm2632 = vmor %vm2630, %vm2631
    %v2633 = vsel %vm2632, %v2624, %v2629
    %v2634 = vmul.f32 %v2549, %v2593
    %v2635 = vmul.f32 %v2550, %v2603
    %v2636 = vmul.f32 %v2551, %v2613
    %v2637 = vmul.f32 %v2552, %v2623
    %v2638 = vmul.f32 %v2553, %v2633
    %v2639 = vperm.slane %v1589, 4
    %v2640 = vmul.f32 %v2634, %v2639
    %v2641 = vmul.f32 %v2635, %v2639
    %v2642 = vmul.f32 %v2636, %v2639
    %v2643 = vmul.f32 %v2637, %v2639
    %v2644 = vmul.f32 %v2638, %v2639
    %v2645 = vperm.slane %v1589, 5
    %v2646 = vadd.f32 %v2640, %v2645
    %v2647 = vadd.f32 %v2641, %v2645
    %v2648 = vadd.f32 %v2642, %v2645
    %v2649 = vadd.f32 %v2643, %v2645
    %v2650 = vadd.f32 %v2644, %v2645
    %v2651 = vpack.c.bf16 %v2647, %v2646
    %v2652 = vpack.c.bf16 %v2649, %v2648
    %v2653 = vpack.c.bf16 %v2650, %v2650
    %v2654 = vld [vmem:[%s1 + $0xd0] sm:$0xf]
    %v2655 = vld [vmem:[%s1 + $0xd4] sm:$0xf]
    %v2656 = vld [vmem:[%s1 + $0xd8] sm:$0xf]
    %v2657 = vld [vmem:[%s1 + $0xdc] sm:$0xf]
    %v2658 = vperm.slane %v1589, 6
    %v2663 = vunpack.c.l.b16 %v2654
    %v2664 = vunpack.c.l.b16 %v2655
    %v2665 = vunpack.c.l.b16 %v2656
    %v2666 = vunpack.c.l.b16 %v2657
    %v2667 = vpack.c.b16 %v2664, %v2663
    %v2668 = vpack.c.b16 %v2666, %v2665
    %v2672 = vsel %vm140, %v2651, 0
    %v2675 = vsel %vm140, %v2652, 0
    %v2678 = vsel %vm140, %v2653, 0
    %2680 = vmatpush.bf16.msra.mxu0 0
    %2681 = vmatpush.bf16.msra.mxu0 0
    %2682 = vmatpush.bf16.msra.mxu0 0
    %2683 = vmatpush.bf16.msra.mxu0 0
    %2684 = vmatpush.bf16.msra.mxu0 0
    %2685 = vmatpush.bf16.msra.mxu0 0
    %2686 = vmatpush.bf16.msra.mxu0 %v2668
    %2687 = vmatpush.bf16.msra.mxu0 %v2667
    %2688 = vmatmul.bf16.gmra.mxu0 %v2672
    %v2689 = vpop.f32.mrf.mxu0
    %v2690 = vadd.f32 %v2658, %v2689
    %v2691 = vpop.f32.mrf.mxu0
    %v2692 = vadd.f32 %v2658, %v2691
    %2693 = vmatmul.bf16.gmra.mxu0 %v2675
    %v2694 = vpop.f32.mrf.mxu0
    %v2695 = vadd.f32 %v2658, %v2694
    %v2696 = vpop.f32.mrf.mxu0
    %v2697 = vadd.f32 %v2658, %v2696
    %2698 = vmatmul.bf16.gmra.mxu0 %v2678
    %v2699 = vpop.f32.mrf.mxu0
    %v2700 = vadd.f32 %v2658, %v2699
    %v2701 = vpop.f32.mrf.mxu0
    %2702 = vdwg.mxu0
    %v2703 = vmul.f32 %v2690, 0.5
    %v2704 = vmul.f32 %v2692, 0.5
    %v2705 = vmul.f32 %v2695, 0.5
    %v2706 = vmul.f32 %v2697, 0.5
    %v2707 = vmul.f32 %v2700, 0.5
    %v2708 = vmul.f32 %v2690, 0.70710677
    %v2709 = vmul.f32 %v2692, 0.70710677
    %v2710 = vmul.f32 %v2695, 0.70710677
    %v2711 = vmul.f32 %v2697, 0.70710677
    %v2712 = vmul.f32 %v2700, 0.70710677
    %v2713 = vmul.f32 %v2708, %v2708
    %v2714 = vmin.f32 16.0, %v2713
    %v2715 = vmul.f32 %v2714, 2.1237322e-06
    %v2716 = vadd.f32 %v2715, 0.00028619796
    %v2717 = vmul.f32 %v2714, %v2716
    %v2718 = vadd.f32 %v2717, 0.0036580483
    %v2719 = vmul.f32 %v2714, %v2718
    %v2720 = vadd.f32 %v2719, 0.05243302
    %v2721 = vmul.f32 %v2714, %v2720
    %v2722 = vadd.f32 %v2721, 0.18741608
    %v2723 = vmul.f32 %v2714, %v2722
    %v2724 = vadd.f32 %v2723, 1.1283791
    %v2725 = vmul.f32 %v2708, %v2724
    %v2726 = vmul.f32 %v2714, 3.8918573e-05
    %v2727 = vadd.f32 %v2726, 0.001143296
    %v2728 = vmul.f32 %v2714, %v2727
    %v2729 = vadd.f32 %v2728, 0.014752088
    %v2730 = vmul.f32 %v2714, %v2729
    %v2731 = vadd.f32 %v2730, 0.112945676
    %v2732 = vmul.f32 %v2714, %v2731
    %v2733 = vadd.f32 %v2732, 0.4994258
    %v2734 = vmul.f32 %v2714, %v2733
    %v2735 = vadd.f32 %v2734, 1.0
    %v2736 = vrcp.pop %v2735
    %v2737 = vmul.f32 %v2735, %v2736
    %v2738 = vsub.f32 1.0, %v2737
    %v2739 = vmul.f32 %v2736, %v2738
    %v2740 = vadd.f32 %v2736, %v2739
    %vm2741 = vweird.f32 %v2735
    %vm2742 = vweird.f32 %v2736
    %vm2743 = vmor %vm2741, %vm2742
    %v2744 = vsel %vm2743, %v2736, %v2740
    %v2745 = vand.u32 2147483647, %v2735
    %vm2746 = vcmp.eq.f32.partialorder %v2745, 8.507059e+37
    %v2747 = vand.u32 %v2735, 2147483648
    %v2748 = vor.u32 1.1754944e-38, %v2747
    %v2749 = vsel %vm2746, %v2748, %v2744
    %v2750 = vmul.f32 %v2725, %v2749
    %v2751 = vmin.f32 %v2750, 1.0
    %v2752 = vmax.f32 %v2751, -1.0
    %v2753 = vmul.f32 %v2709, %v2709
    %v2754 = vmin.f32 16.0, %v2753
    %v2755 = vmul.f32 %v2754, 2.1237322e-06
    %v2756 = vadd.f32 %v2755, 0.00028619796
    %v2757 = vmul.f32 %v2754, %v2756
    %v2758 = vadd.f32 %v2757, 0.0036580483
    %v2759 = vmul.f32 %v2754, %v2758
    %v2760 = vadd.f32 %v2759, 0.05243302
    %v2761 = vmul.f32 %v2754, %v2760
    %v2762 = vadd.f32 %v2761, 0.18741608
    %v2763 = vmul.f32 %v2754, %v2762
    %v2764 = vadd.f32 %v2763, 1.1283791
    %v2765 = vmul.f32 %v2709, %v2764
    %v2766 = vmul.f32 %v2754, 3.8918573e-05
    %v2767 = vadd.f32 %v2766, 0.001143296
    %v2768 = vmul.f32 %v2754, %v2767
    %v2769 = vadd.f32 %v2768, 0.014752088
    %v2770 = vmul.f32 %v2754, %v2769
    %v2771 = vadd.f32 %v2770, 0.112945676
    %v2772 = vmul.f32 %v2754, %v2771
    %v2773 = vadd.f32 %v2772, 0.4994258
    %v2774 = vmul.f32 %v2754, %v2773
    %v2775 = vadd.f32 %v2774, 1.0
    %v2776 = vrcp.pop %v2775
    %v2777 = vmul.f32 %v2775, %v2776
    %v2778 = vsub.f32 1.0, %v2777
    %v2779 = vmul.f32 %v2776, %v2778
    %v2780 = vadd.f32 %v2776, %v2779
    %vm2781 = vweird.f32 %v2775
    %vm2782 = vweird.f32 %v2776
    %vm2783 = vmor %vm2781, %vm2782
    %v2784 = vsel %vm2783, %v2776, %v2780
    %v2785 = vand.u32 2147483647, %v2775
    %vm2786 = vcmp.eq.f32.partialorder %v2785, 8.507059e+37
    %v2787 = vand.u32 %v2775, 2147483648
    %v2788 = vor.u32 1.1754944e-38, %v2787
    %v2789 = vsel %vm2786, %v2788, %v2784
    %v2790 = vmul.f32 %v2765, %v2789
    %v2791 = vmin.f32 %v2790, 1.0
    %v2792 = vmax.f32 %v2791, -1.0
    %v2793 = vmul.f32 %v2710, %v2710
    %v2794 = vmin.f32 16.0, %v2793
    %v2795 = vmul.f32 %v2794, 2.1237322e-06
    %v2796 = vadd.f32 %v2795, 0.00028619796
    %v2797 = vmul.f32 %v2794, %v2796
    %v2798 = vadd.f32 %v2797, 0.0036580483
    %v2799 = vmul.f32 %v2794, %v2798
    %v2800 = vadd.f32 %v2799, 0.05243302
    %v2801 = vmul.f32 %v2794, %v2800
    %v2802 = vadd.f32 %v2801, 0.18741608
    %v2803 = vmul.f32 %v2794, %v2802
    %v2804 = vadd.f32 %v2803, 1.1283791
    %v2805 = vmul.f32 %v2710, %v2804
    %v2806 = vmul.f32 %v2794, 3.8918573e-05
    %v2807 = vadd.f32 %v2806, 0.001143296
    %v2808 = vmul.f32 %v2794, %v2807
    %v2809 = vadd.f32 %v2808, 0.014752088
    %v2810 = vmul.f32 %v2794, %v2809
    %v2811 = vadd.f32 %v2810, 0.112945676
    %v2812 = vmul.f32 %v2794, %v2811
    %v2813 = vadd.f32 %v2812, 0.4994258
    %v2814 = vmul.f32 %v2794, %v2813
    %v2815 = vadd.f32 %v2814, 1.0
    %v2816 = vrcp.pop %v2815
    %v2817 = vmul.f32 %v2815, %v2816
    %v2818 = vsub.f32 1.0, %v2817
    %v2819 = vmul.f32 %v2816, %v2818
    %v2820 = vadd.f32 %v2816, %v2819
    %vm2821 = vweird.f32 %v2815
    %vm2822 = vweird.f32 %v2816
    %vm2823 = vmor %vm2821, %vm2822
    %v2824 = vsel %vm2823, %v2816, %v2820
    %v2825 = vand.u32 2147483647, %v2815
    %vm2826 = vcmp.eq.f32.partialorder %v2825, 8.507059e+37
    %v2827 = vand.u32 %v2815, 2147483648
    %v2828 = vor.u32 1.1754944e-38, %v2827
    %v2829 = vsel %vm2826, %v2828, %v2824
    %v2830 = vmul.f32 %v2805, %v2829
    %v2831 = vmin.f32 %v2830, 1.0
    %v2832 = vmax.f32 %v2831, -1.0
    %v2833 = vmul.f32 %v2711, %v2711
    %v2834 = vmin.f32 16.0, %v2833
    %v2835 = vmul.f32 %v2834, 2.1237322e-06
    %v2836 = vadd.f32 %v2835, 0.00028619796
    %v2837 = vmul.f32 %v2834, %v2836
    %v2838 = vadd.f32 %v2837, 0.0036580483
    %v2839 = vmul.f32 %v2834, %v2838
    %v2840 = vadd.f32 %v2839, 0.05243302
    %v2841 = vmul.f32 %v2834, %v2840
    %v2842 = vadd.f32 %v2841, 0.18741608
    %v2843 = vmul.f32 %v2834, %v2842
    %v2844 = vadd.f32 %v2843, 1.1283791
    %v2845 = vmul.f32 %v2711, %v2844
    %v2846 = vmul.f32 %v2834, 3.8918573e-05
    %v2847 = vadd.f32 %v2846, 0.001143296
    %v2848 = vmul.f32 %v2834, %v2847
    %v2849 = vadd.f32 %v2848, 0.014752088
    %v2850 = vmul.f32 %v2834, %v2849
    %v2851 = vadd.f32 %v2850, 0.112945676
    %v2852 = vmul.f32 %v2834, %v2851
    %v2853 = vadd.f32 %v2852, 0.4994258
    %v2854 = vmul.f32 %v2834, %v2853
    %v2855 = vadd.f32 %v2854, 1.0
    %v2856 = vrcp.pop %v2855
    %v2857 = vmul.f32 %v2855, %v2856
    %v2858 = vsub.f32 1.0, %v2857
    %v2859 = vmul.f32 %v2856, %v2858
    %v2860 = vadd.f32 %v2856, %v2859
    %vm2861 = vweird.f32 %v2855
    %vm2862 = vweird.f32 %v2856
    %vm2863 = vmor %vm2861, %vm2862
    %v2864 = vsel %vm2863, %v2856, %v2860
    %v2865 = vand.u32 2147483647, %v2855
    %vm2866 = vcmp.eq.f32.partialorder %v2865, 8.507059e+37
    %v2867 = vand.u32 %v2855, 2147483648
    %v2868 = vor.u32 1.1754944e-38, %v2867
    %v2869 = vsel %vm2866, %v2868, %v2864
    %v2870 = vmul.f32 %v2845, %v2869
    %v2871 = vmin.f32 %v2870, 1.0
    %v2872 = vmax.f32 %v2871, -1.0
    %v2873 = vmul.f32 %v2712, %v2712
    %v2874 = vmin.f32 16.0, %v2873
    %v2875 = vmul.f32 %v2874, 2.1237322e-06
    %v2876 = vadd.f32 %v2875, 0.00028619796
    %v2877 = vmul.f32 %v2874, %v2876
    %v2878 = vadd.f32 %v2877, 0.0036580483
    %v2879 = vmul.f32 %v2874, %v2878
    %v2880 = vadd.f32 %v2879, 0.05243302
    %v2881 = vmul.f32 %v2874, %v2880
    %v2882 = vadd.f32 %v2881, 0.18741608
    %v2883 = vmul.f32 %v2874, %v2882
    %v2884 = vadd.f32 %v2883, 1.1283791
    %v2885 = vmul.f32 %v2712, %v2884
    %v2886 = vmul.f32 %v2874, 3.8918573e-05
    %v2887 = vadd.f32 %v2886, 0.001143296
    %v2888 = vmul.f32 %v2874, %v2887
    %v2889 = vadd.f32 %v2888, 0.014752088
    %v2890 = vmul.f32 %v2874, %v2889
    %v2891 = vadd.f32 %v2890, 0.112945676
    %v2892 = vmul.f32 %v2874, %v2891
    %v2893 = vadd.f32 %v2892, 0.4994258
    %v2894 = vmul.f32 %v2874, %v2893
    %v2895 = vadd.f32 %v2894, 1.0
    %v2896 = vrcp.pop %v2895
    %v2897 = vmul.f32 %v2895, %v2896
    %v2898 = vsub.f32 1.0, %v2897
    %v2899 = vmul.f32 %v2896, %v2898
    %v2900 = vadd.f32 %v2896, %v2899
    %vm2901 = vweird.f32 %v2895
    %vm2902 = vweird.f32 %v2896
    %vm2903 = vmor %vm2901, %vm2902
    %v2904 = vsel %vm2903, %v2896, %v2900
    %v2905 = vand.u32 2147483647, %v2895
    %vm2906 = vcmp.eq.f32.partialorder %v2905, 8.507059e+37
    %v2907 = vand.u32 %v2895, 2147483648
    %v2908 = vor.u32 1.1754944e-38, %v2907
    %v2909 = vsel %vm2906, %v2908, %v2904
    %v2910 = vmul.f32 %v2885, %v2909
    %v2911 = vmin.f32 %v2910, 1.0
    %v2912 = vmax.f32 %v2911, -1.0
    %v2913 = vadd.f32 %v2752, 1.0
    %v2914 = vadd.f32 %v2792, 1.0
    %v2915 = vadd.f32 %v2832, 1.0
    %v2916 = vadd.f32 %v2872, 1.0
    %v2917 = vadd.f32 %v2912, 1.0
    %v2918 = vmul.f32 %v2703, %v2913
    %v2919 = vmul.f32 %v2704, %v2914
    %v2920 = vmul.f32 %v2705, %v2915
    %v2921 = vmul.f32 %v2706, %v2916
    %v2922 = vmul.f32 %v2707, %v2917
    %v2923 = vpack.c.bf16 %v2919, %v2918
    %v2924 = vpack.c.bf16 %v2921, %v2920
    %v2925 = vpack.c.bf16 %v2922, %v2922
    %v2926 = vld [vmem:[%s1 + $0xe0] sm:$0xf]
    %v2927 = vld [vmem:[%s1 + $0xe4] sm:$0xf]
    %v2928 = vld [vmem:[%s1 + $0xe8] sm:$0xf]
    %v2929 = vld [vmem:[%s1 + $0xec] sm:$0xf]
    %v2930 = vld [vmem:[%s1 + $0xf0] sm:$0xf]
    %v2931 = vld [vmem:[%s1 + $0xf4] sm:$0xf]
    %v2932 = vld [vmem:[%s1 + $0xf8] sm:$0xf]
    %v2933 = vld [vmem:[%s1 + $0xfc] sm:$0xf]
    %v2934 = vld [vmem:[%s1 + $0x100] sm:$0xf]
    %v2935 = vld [vmem:[%s1 + $0x104] sm:$0xf]
    %v2936 = vld [vmem:[%s1 + $0x108] sm:$0xf]
    %v2937 = vld [vmem:[%s1 + $0x10c] sm:$0xf]
    %v2938 = vld [vmem:[%s1 + $0x110] sm:$0xf]
    %v2939 = vld [vmem:[%s1 + $0x114] sm:$0xf]
    %v2940 = vld [vmem:[%s1 + $0x118] sm:$0xf]
    %v2941 = vld [vmem:[%s1 + $0x11c] sm:$0xf]
    %v2958 = vunpack.c.l.b16 %v2926
    %v2959 = vunpack.c.l.b16 %v2927
    %v2960 = vunpack.c.l.b16 %v2928
    %v2961 = vunpack.c.l.b16 %v2929
    %v2962 = vunpack.c.l.b16 %v2930
    %v2963 = vunpack.c.l.b16 %v2931
    %v2964 = vunpack.c.l.b16 %v2932
    %v2965 = vunpack.c.l.b16 %v2933
    %v2966 = vunpack.c.l.b16 %v2934
    %v2967 = vunpack.c.l.b16 %v2935
    %v2968 = vunpack.c.l.b16 %v2936
    %v2969 = vunpack.c.l.b16 %v2937
    %v2970 = vunpack.c.l.b16 %v2938
    %v2971 = vunpack.c.l.b16 %v2939
    %v2972 = vunpack.c.l.b16 %v2940
    %v2973 = vunpack.c.l.b16 %v2941
    %v2974 = vpack.c.b16 %v2959, %v2958
    %v2975 = vpack.c.b16 %v2961, %v2960
    %v2976 = vpack.c.b16 %v2963, %v2962
    %v2977 = vpack.c.b16 %v2965, %v2964
    %v2978 = vpack.c.b16 %v2967, %v2966
    %v2979 = vpack.c.b16 %v2969, %v2968
    %v2980 = vpack.c.b16 %v2971, %v2970
    %v2981 = vpack.c.b16 %v2973, %v2972
    %2990 = vmatpush.bf16.msra.mxu0 %v2981
    %2991 = vmatpush.bf16.msra.mxu0 %v2980
    %2992 = vmatpush.bf16.msra.mxu0 %v2979
    %2993 = vmatpush.bf16.msra.mxu0 %v2978
    %2994 = vmatpush.bf16.msra.mxu0 %v2977
    %2995 = vmatpush.bf16.msra.mxu0 %v2976
    %2996 = vmatpush.bf16.msra.mxu0 %v2975
    %2997 = vmatpush.bf16.msra.mxu0 %v2974
    %2998 = vmatmul.bf16.gmra.mxu0 %v2923
    %v2999 = vpop.f32.mrf.mxu0
    %v3000 = vpop.f32.mrf.mxu0
    %3001 = vmatmul.bf16.gmra.mxu0 %v2924
    %v3002 = vpop.f32.mrf.mxu0
    %v3003 = vadd.f32 0.0, %v3002
    %v3004 = vpop.f32.mrf.mxu0
    %3005 = vmatmul.bf16.gmra.mxu0 %v2925
    %v3006 = vpop.f32.mrf.mxu0
    %v3007 = vadd.f32 0.0, %v3006
    %v3008 = vpop.f32.mrf.mxu0
    %3009 = vdwg.mxu0
    %v3010 = vadd.f32 %v2526, %v3003
    %v3011 = vadd.f32 %v2528, %v3007
    %v3012 = vperm.slane %v1589, 7
    %v3013 = vadd.f32 %v3010, %v3012
    %v3014 = vadd.f32 %v3011, %v3012
    %v3015 = vld [vmem:[%s2 + $0x60] sm:$0xff]
    %v3016 = vsel %vm466, %v3013, %v3014
    %v3017 = vsel %vm153, %v3016, 0.0
    %3018 = vadd.xlane.f32.xlu0 %v3017
    %v3019 = vpop.xlane.xlu0 %3018
    %v3020 = vmul.f32 %v3019, %v163
    %v3021 = vsub.f32 %v3016, %v3020
    %v3022 = vmul.f32 %v3021, %v3021
    %v3023 = vsel %vm153, %v3022, 0.0
    %3024 = vadd.xlane.f32.xlu0 %v3023
    %v3025 = vpop.xlane.xlu0 %3024
    %v3026 = vmul.f32 %v3025, %v163
    %v3027 = vadd.f32 %v3026, 1e-06
    %v3028 = vrsqrt.pop %v3027
    %v3029 = vmul.f32 %v3028, %v3027
    %v3030 = vmul.f32 %v3029, %v3028
    %v3031 = vmul.f32 0.5, %v3030
    %v3032 = vsub.f32 1.5, %v3031
    %v3033 = vmul.f32 %v3028, %v3032
    %vm3034 = vweird.f32 %v3027
    %vm3035 = vweird.f32 %v3028
    %vm3036 = vmor %vm3034, %vm3035
    %v3037 = vsel %vm3036, %v3028, %v3033
    %v3038 = vmul.f32 %v3021, %v3037
    %v3039 = vperm.slane %v3015, 0
    %v3040 = vmul.f32 %v3038, %v3039
    %v3041 = vperm.slane %v3015, 1
    %v3042 = vadd.f32 %v3040, %v3041
    %v3043 = vpack.c.bf16 %v3042, %v3042
    %v3044 = vld [vmem:[%s1 + $0x120] sm:$0xf]
    %v3045 = vld [vmem:[%s1 + $0x124] sm:$0xf]
    %v3046 = vld [vmem:[%s1 + $0x128] sm:$0xf]
    %v3047 = vld [vmem:[%s1 + $0x12c] sm:$0xf]
    %v3048 = vperm.slane %v3015, 2
    %v3053 = vunpack.c.l.b16 %v3044
    %v3054 = vunpack.c.l.b16 %v3045
    %v3055 = vunpack.c.l.b16 %v3046
    %v3056 = vunpack.c.l.b16 %v3047
    %v3057 = vpack.c.b16 %v3054, %v3053
    %v3058 = vpack.c.b16 %v3056, %v3055
    %v3062 = vsel %vm140, %v3043, 0
    %3064 = vmatpush.bf16.msra.mxu0 0
    %3065 = vmatpush.bf16.msra.mxu0 0
    %3066 = vmatpush.bf16.msra.mxu0 0
    %3067 = vmatpush.bf16.msra.mxu0 0
    %3068 = vmatpush.bf16.msra.mxu0 0
    %3069 = vmatpush.bf16.msra.mxu0 0
    %3070 = vmatpush.bf16.msra.mxu0 %v3058
    %3071 = vmatpush.bf16.msra.mxu0 %v3057
    %3072 = vmatmul.bf16.gmra.mxu0 %v3062
    %v3073 = vpop.f32.mrf.mxu0
    %v3074 = vadd.f32 %v3048, %v3073
    %v3075 = vpop.f32.mrf.mxu0
    %3076 = vdwg.mxu0
    %3077 = vst [vmem:[#allocation2] sm:$0x3] %v3074
    // Predicated region
    $region14: #{vit_forward.1} parent=1 // pred_check
      _
    $region15: #{vit_forward.1} parent=1 // pred_check_branch
      %3079 = sbr.rel (0) target = $region17
    $region16: #{vit_forward.1} parent=1 // pred_region
      %3081 = vsyncadd [#allocation3], 0
      %s3083 = sshll.u32 [#allocation2], 4
      %s3084 = int_to_ptr.vmem [resolvable:$true] %s3083
      %s3085 = sshll.u32 %s3, 4
      %s3086 = int_to_ptr.hbm [resolvable:$true] %s3085
      %3088 = dma.vmem_to_hbm [thread:$0]  %s3084, 32, %s3086, [#allocation3]
    $region17: #{vit_forward.1} parent=1 // pred_fallthru
      _
    // Predicated region
    $region18: #{vit_forward.1} parent=1 // pred_check
      _
    $region19: #{vit_forward.1} parent=1 // pred_check_branch
      %3090 = sbr.rel (0) target = $region21
    $region20: #{vit_forward.1} parent=1 // pred_region
      %3092 = dma.done [#allocation3], 32
    $region21: #{vit_forward.1} parent=1 // pred_fallthru
      _
    %3093 = vsyncpa [#allocation3], 1

</llo_original>
